<compile_context>
chip_gen: v7x
topology: tpu7x:2x2x1
jax: 0.10.0
libtpu: 0.0.40
codegen_flags: <defaults>
</compile_context>

<pallas_src>
import math
import numpy as np

import jax
import jax.numpy as jnp
from jax import lax
from jax.experimental import pallas as pl
from jax.experimental.pallas import tpu as pltpu

CHANNELS = 64
NUM_EXPERTS = 4
C8 = CHANNELS // 8


# --------------------------------------------------------------------------
# Row-tile selection: biggest halo band that keeps the fused kernel's VMEM
# footprint modest (safe on v5e 16 MiB scoped default and v7x 64 MiB physical)
# while keeping >= 2 row tiles for megacore whenever possible.
# --------------------------------------------------------------------------
def _pick_row_tile(H, W):
    for th in (32, 16, 8, 4):
        if (th + 2) * (W + 2) <= 6144 and H >= 2 * th:
            return th
    # TODO(synk): for very wide HR images (W >~ 2k) also tile along W.
    return 4


# --------------------------------------------------------------------------
# Pallas kernel 1: body MLP + routing(sigmoid) + offset over the padded,
# halo-duplicated HR grid.  Runs once per target scale.
# --------------------------------------------------------------------------
def routing_offset(n_rt, th, Hb, Wp, scale, w1, b1, w2, b2, w_ro, b_ro):
    """Returns (routing (n_rt, Hb*Wp, 4) bf16, offset (n_rt, Hb*Wp, 2) f32)."""
    inv_scale = float(1.0 / scale)
    npix = Hb * Wp
    inv_wp = float(1.0 / Wp)

    def kernel(w1_ref, b1_ref, w2_ref, b2_ref, wro_ref, bro_ref,
               rout_ref, off_ref):
        rt = pl.program_id(0)
        idx = jax.lax.broadcasted_iota(jnp.int32, (npix, 1), 0).astype(jnp.float32)
        # npix is at most a few thousand, so the +0.5-nudged f32 division below
        # recovers the band-local row index exactly (quotient is always at
        # least 0.5/Wp away from an integer).
        lrow = jnp.floor((idx + 0.5) * inv_wp)
        lcol = idx - lrow * Wp
        row0 = (rt * th - 1).astype(jnp.float32)          # padded band start row
        irow = lrow + row0                                # image row (may be -1 / >=H)
        icol = lcol - 1.0                                 # image col (may be -1 / ==W)
        ph = (irow + 0.5) * inv_scale
        coor_h = ph - jnp.floor(ph + 0.001) - 0.5
        pw = (icol + 0.5) * inv_scale
        coor_w = pw - jnp.floor(pw + 0.001) - 0.5
        sch = jnp.full((npix, 1), inv_scale, jnp.float32)
        x = jnp.concatenate([sch, sch, coor_h, coor_w], axis=1).astype(jnp.bfloat16)

        h1 = jnp.maximum(
            jnp.dot(x, w1_ref[...], preferred_element_type=jnp.float32)
            + b1_ref[...], 0.0)
        h2 = jnp.maximum(
            jnp.dot(h1.astype(jnp.bfloat16), w2_ref[...],
                    preferred_element_type=jnp.float32) + b2_ref[...], 0.0)
        ro = (jnp.dot(h2.astype(jnp.bfloat16), wro_ref[...],
                      preferred_element_type=jnp.float32) + bro_ref[...])
        routing = 1.0 / (1.0 + jnp.exp(-ro[:, :NUM_EXPERTS]))          # sigmoid
        rout_ref[0] = routing.astype(jnp.bfloat16)
        off_ref[0] = ro[:, NUM_EXPERTS:NUM_EXPERTS + 2]

    return pl.pallas_call(
        kernel,
        out_shape=(jax.ShapeDtypeStruct((n_rt, npix, NUM_EXPERTS), jnp.bfloat16),
                   jax.ShapeDtypeStruct((n_rt, npix, 2), jnp.float32)),
        grid=(n_rt,),
        in_specs=[pl.BlockSpec(w1.shape, lambda rt: (0, 0)),
                  pl.BlockSpec(b1.shape, lambda rt: (0, 0)),
                  pl.BlockSpec(w2.shape, lambda rt: (0, 0)),
                  pl.BlockSpec(b2.shape, lambda rt: (0, 0)),
                  pl.BlockSpec(w_ro.shape, lambda rt: (0, 0)),
                  pl.BlockSpec(b_ro.shape, lambda rt: (0, 0))],
        out_specs=(pl.BlockSpec((1, npix, NUM_EXPERTS), lambda rt: (rt, 0, 0)),
                   pl.BlockSpec((1, npix, 2), lambda rt: (rt, 0, 0))),
        compiler_params=pltpu.CompilerParams(dimension_semantics=("parallel",)),
    )(w1, b1, w2, b2, w_ro, b_ro)


# --------------------------------------------------------------------------
# Pallas kernel 2: FUSED per-pixel expert-mixed compress/expand (+residual)
# and 3x3 tail conv, row-banded with a 1-row halo.
# --------------------------------------------------------------------------
def dyn_tail_fused(fea_dup, rout, wc_cat, we_aug, w_tail, b_tail, th, W, Hb, Wp):
    """fea_dup: (G, n_rt, Hb*Wp, 64) bf16 -> pred (G, n_rt, th, W*3) f32."""
    G, n_rt, npix, c = fea_dup.shape
    thW = th * W

    def kernel(fea_ref, ro_ref, wc_ref, wea_ref, wt_ref, bt_ref, out_ref):
        f = fea_ref[0, 0]                                      # (npix, 64) bf16
        r = ro_ref[0].astype(jnp.float32)                      # (npix, 4)
        # ---- dyn conv: expert-mixed compress ----------------------------- #
        z = jnp.dot(f, wc_ref[...], preferred_element_type=jnp.float32)   # (npix, 32)
        t = (r[:, 0:1] * z[:, 0:C8] + r[:, 1:2] * z[:, C8:2 * C8]
             + r[:, 2:3] * z[:, 2 * C8:3 * C8] + r[:, 3:4] * z[:, 3 * C8:4 * C8])
        s = jnp.concatenate([r[:, 0:1] * t, r[:, 1:2] * t,
                             r[:, 2:3] * t, r[:, 3:4] * t], axis=1)        # (npix, 32)
        # ---- expand + residual folded via [we_stk ; I64] (K = 96) --------- #
        su = jnp.concatenate([s.astype(jnp.bfloat16), f], axis=1)          # (npix, 96)
        o64 = jnp.dot(su, wea_ref[...], preferred_element_type=jnp.float32)
        o_b = o64.astype(jnp.bfloat16).reshape(Hb, Wp, c)                  # (Hb, Wp, 64)
        # ---- 3x3 tail conv on the band ------------------------------------ #
        # dj-im2col built once, single matmul over (di, out_ch) lanes,
        # then 3 row-shifted adds (accumulator produced once).
        colcat = jnp.concatenate(
            [o_b[:, 0:W, :], o_b[:, 1:W + 1, :], o_b[:, 2:W + 2, :]], axis=2)  # (Hb, W, 192)
        tmp = jnp.dot(colcat.reshape(Hb * W, 3 * c), wt_ref[...],
                      preferred_element_type=jnp.float32)                 # (Hb*W, 16)
        out3 = (tmp[0:thW, 0:3] + tmp[W:W + thW, 3:6]
                + tmp[2 * W:2 * W + thW, 6:9] + bt_ref[...])               # (th*W, 3)
        out_ref[0, 0] = out3.reshape(th, W * 3)

    return pl.pallas_call(
        kernel,
        out_shape=jax.ShapeDtypeStruct((G, n_rt, th, W * 3), jnp.float32),
        grid=(G, n_rt),
        in_specs=[pl.BlockSpec((1, 1, npix, c), lambda g, rt: (g, rt, 0, 0)),
                  pl.BlockSpec((1, npix, NUM_EXPERTS), lambda g, rt: (rt, 0, 0)),
                  pl.BlockSpec(wc_cat.shape, lambda g, rt: (0, 0)),
                  pl.BlockSpec(we_aug.shape, lambda g, rt: (0, 0)),
                  pl.BlockSpec(w_tail.shape, lambda g, rt: (0, 0)),
                  pl.BlockSpec(b_tail.shape, lambda g, rt: (0, 0))],
        out_specs=pl.BlockSpec((1, 1, th, W * 3), lambda g, rt: (g, rt, 0, 0)),
        compiler_params=pltpu.CompilerParams(
            dimension_semantics=("parallel", "parallel"),
            vmem_limit_bytes=32 * 1024 * 1024),
    )(fea_dup, rout, wc_cat, we_aug, w_tail, b_tail)


# --------------------------------------------------------------------------
# Plain-JAX glue (grid building, grid_sample gathers, encoder)
# --------------------------------------------------------------------------
def bilinear_sample_zeros_hwc(x_hwc, gx, gy):
    """F.grid_sample(x, grid, mode='bilinear', padding_mode='zeros', align_corners=True)."""
    h, w, _ = x_hwc.shape
    px = (gx + 1.0) * 0.5 * (w - 1)
    py = (gy + 1.0) * 0.5 * (h - 1)
    x0 = jnp.floor(px)
    y0 = jnp.floor(py)
    x1 = x0 + 1.0
    y1 = y0 + 1.0
    wx1 = px - x0
    wx0 = 1.0 - wx1
    wy1 = py - y0
    wy0 = 1.0 - wy1

    def tap(xi, yi, wgt):
        valid = (xi >= 0) & (xi <= w - 1) & (yi >= 0) & (yi <= h - 1)
        xic = jnp.clip(xi, 0, w - 1).astype(jnp.int32)
        yic = jnp.clip(yi, 0, h - 1).astype(jnp.int32)
        v = x_hwc[yic, xic, :]
        return v * (wgt * valid.astype(x_hwc.dtype))[..., None]

    return (tap(x0, y0, wx0 * wy0) + tap(x1, y0, wx1 * wy0)
            + tap(x0, y1, wx0 * wy1) + tap(x1, y1, wx1 * wy1))


def build_sampling_grid(h, w, H, W, scale, offset_hw2, n_rt, th):
    """Halo-duplicated, zero-padded HR sampling grid (reference grid_sample math).

    Border / extra rows use coordinate -10 so the zero-padding bilinear sample
    returns exactly 0 there (this zero padding commutes through the bias-free
    dyn conv and is exactly the tail conv's padding=1 zeros).
    """
    Hb = th + 2
    Hp = n_rt * th + 2
    # Reference always calls grid_sample(feat, offset, scale, scale); asymmetric
    # H/W scales never occur in its code path, so scale2 == scale here too.
    xs = (jnp.arange(W, dtype=jnp.float32) + 0.5) / scale - 0.5
    ys = (jnp.arange(H, dtype=jnp.float32) + 0.5) / scale - 0.5
    gx = xs[None, :] * 2.0 / (w - 1) - 1.0
    gy = ys[:, None] * 2.0 / (h - 1) - 1.0
    gx = jnp.broadcast_to(gx, (H, W)) + offset_hw2[..., 0] * 2.0 / (w - 1)
    gy = jnp.broadcast_to(gy, (H, W)) + offset_hw2[..., 1] * 2.0 / (h - 1)
    pad = ((1, Hp - H - 1), (1, 1))
    gx_p = jnp.pad(gx, pad, constant_values=-10.0)
    gy_p = jnp.pad(gy, pad, constant_values=-10.0)
    row_sel = np.concatenate([np.arange(rt * th, rt * th + Hb) for rt in range(n_rt)])
    return gx_p[row_sel, :], gy_p[row_sel, :]          # (n_rt*(th+2), W+2)


def encoder(params, inp):
    # TODO(synk): encoder_spec is an external module; substituted with a fixed 3x3 conv.
    out = lax.conv_general_dilated(
        inp, params['enc_w'], window_strides=(1, 1), padding='SAME',
        dimension_numbers=('NCHW', 'OIHW', 'NCHW'))
    return out + params['enc_b'][None, :, None, None]


# --------------------------------------------------------------------------
# Parameters (deterministic, synthetic)
# --------------------------------------------------------------------------
def init_params(key):
    keys = jax.random.split(key, 14)

    def u(k, shape, fan_in):
        b = 1.0 / math.sqrt(fan_in)
        return jax.random.uniform(k, shape, jnp.float32, -b, b)

    p = {}
    p['enc_w'] = u(keys[0], (CHANNELS, 3, 3, 3), 3 * 9)
    p['enc_b'] = u(keys[1], (CHANNELS,), 3 * 9)
    # body: Conv2d(4,64,1) -> ReLU -> Conv2d(64,64,1) -> ReLU
    p['w1'] = u(keys[2], (CHANNELS, 4, 1, 1), 4)
    p['b1'] = u(keys[3], (CHANNELS,), 4)
    p['w2'] = u(keys[4], (CHANNELS, CHANNELS, 1, 1), CHANNELS)
    p['b2'] = u(keys[5], (CHANNELS,), CHANNELS)
    # routing: Conv2d(64, num_experts, 1) -> Sigmoid
    p['wr'] = u(keys[6], (NUM_EXPERTS, CHANNELS, 1, 1), CHANNELS)
    p['br'] = u(keys[7], (NUM_EXPERTS,), CHANNELS)
    # offset: Conv2d(64, 2, 1)
    p['wo'] = u(keys[8], (2, CHANNELS, 1, 1), CHANNELS)
    p['bo'] = u(keys[9], (2,), CHANNELS)
    # expert weights (kaiming_uniform(a=sqrt(5)) == U(-1/sqrt(fan_in), 1/sqrt(fan_in)))
    p['weight_compress'] = u(keys[10], (NUM_EXPERTS, C8, CHANNELS, 1, 1), CHANNELS)
    p['weight_expand'] = u(keys[11], (NUM_EXPERTS, CHANNELS, C8, 1, 1), C8)
    # tail: Conv2d(64, 3, 3, padding=1)
    p['tail_w'] = u(keys[12], (3, CHANNELS, 3, 3), CHANNELS * 9)
    p['tail_b'] = u(keys[13], (3,), CHANNELS * 9)
    return p


# --------------------------------------------------------------------------
# Full forward (ArbSR.forward)
# --------------------------------------------------------------------------
def arbsr_forward(params, inp, coord, cell):
    feat = encoder(params, inp)                                   # (B, 64, h, w)
    B, c, h, w = feat.shape
    feat_hwc = jnp.transpose(feat, (0, 2, 3, 1))                  # (B, h, w, 64)

    coord_ = coord - cell / 2.0
    coord_q = jnp.clip(coord_ + 1e-6, -1.0 + 1e-6, 1.0 - 1e-6)
    cell_np = np.asarray(cell)                                    # scale is static

    # ---- weight prep, hoisted out of the per-scale / per-batch loop ----
    w1b = params['w1'][:, :, 0, 0].T.astype(jnp.bfloat16)         # (4, 64)
    b1 = params['b1'][None, :]                                    # (1, 64) f32
    w2b = params['w2'][:, :, 0, 0].T.astype(jnp.bfloat16)         # (64, 64)
    b2 = params['b2'][None, :]
    wr = params['wr'][:, :, 0, 0].T                               # (64, E)
    wo = params['wo'][:, :, 0, 0].T                               # (64, 2)
    # fused routing+offset head, zero-padded to 8 output lanes
    w_rob = jnp.concatenate([wr, wo, jnp.zeros((c, 2), jnp.float32)],
                            axis=1).astype(jnp.bfloat16)          # (64, 8)
    b_ro = jnp.concatenate([params['br'], params['bo'],
                            jnp.zeros((2,), jnp.float32)])[None, :]  # (1, 8)
    wc = params['weight_compress'][:, :, :, 0, 0]                 # (E, 8, 64)
    we = params['weight_expand'][:, :, :, 0, 0]                   # (E, 64, 8)
    wc_cat = jnp.transpose(wc, (2, 0, 1)).reshape(c, NUM_EXPERTS * C8).astype(jnp.bfloat16)
    we_stk = jnp.transpose(we, (0, 2, 1)).reshape(NUM_EXPERTS * C8, c)
    # residual folded into the expand matmul via an appended identity
    we_aug = jnp.concatenate([we_stk, jnp.eye(c, dtype=jnp.float32)],
                             axis=0).astype(jnp.bfloat16)         # (96, 64)
    # tail 3x3 conv as a single (192, 16) matrix over (dj, in_ch) -> (di, out_ch)
    w_big = jnp.transpose(params['tail_w'], (3, 1, 2, 0)).reshape(3 * c, 9)
    w_big = jnp.concatenate([w_big, jnp.zeros((3 * c, 7), jnp.float32)],
                            axis=1).astype(jnp.bfloat16)          # (192, 16)
    b_tail = params['tail_b'][None, :]                            # (1, 3) f32

    # ---- group batch elements that share the same target scale ----
    groups = {}
    for _b in range(B):
        scale = round(2.0 / float(cell_np[_b, 0, 0])) / h
        key = (int(round(scale * h)), int(round(scale * w)), float(scale))
        groups.setdefault(key, []).append(_b)

    results = [None] * B
    for (H, W, scale), bs in groups.items():
        G = len(bs)
        th = _pick_row_tile(H, W)
        n_rt = max(1, -(-H // th))
        Hb, Wp = th + 2, W + 2

        # [kernel 1] routing + offset over the padded / banded HR grid (once per scale)
        rout, off = routing_offset(n_rt, th, Hb, Wp, scale,
                                   w1b, b1, w2b, b2, w_rob, b_ro)
        off_hw = (off.reshape(n_rt, Hb, Wp, 2)[:, 1:1 + th, 1:1 + W, :]
                  .reshape(n_rt * th, W, 2)[:H])                  # (H, W, 2)

        # bilinear grid_sample of the LR features directly onto the banded grid
        gxd, gyd = build_sampling_grid(h, w, H, W, scale, off_hw, n_rt, th)
        feats_g = feat_hwc[jnp.asarray(bs)]                       # (G, h, w, 64)
        fea_dup = jax.vmap(lambda f: bilinear_sample_zeros_hwc(f, gxd, gyd))(feats_g)
        fea_dup = fea_dup.astype(jnp.bfloat16).reshape(G, n_rt, Hb * Wp, c)

        # [kernel 2] fused dyn conv + residual + 3x3 tail conv
        pred = dyn_tail_fused(fea_dup, rout, wc_cat, we_aug, w_big, b_tail,
                              th, W, Hb, Wp)                      # (G, n_rt, th, W*3)
        pred = pred.reshape(G, n_rt * th, W, 3)[:, :H]            # (G, H, W, 3)

        # nearest grid_sample at the per-element query coordinates (plain JAX)
        # TODO(synk): PyTorch 'nearest' uses nearbyint; jnp.round (half-to-even)
        # may differ exactly on .5 boundaries.
        for gi, _b in enumerate(bs):
            qy = coord_q[_b, :, 0]
            qx = coord_q[_b, :, 1]
            px = (qx + 1.0) * 0.5 * (W - 1)
            py = (qy + 1.0) * 0.5 * (H - 1)
            xi = jnp.clip(jnp.round(px), 0, W - 1).astype(jnp.int32)
            yi = jnp.clip(jnp.round(py), 0, H - 1).astype(jnp.int32)
            results[_b] = pred[gi][yi, xi, :]                     # (Q, 3)

    return jnp.stack(results, axis=0)                             # (B, Q, 3)


# --------------------------------------------------------------------------
if __name__ == "__main__":
    key = jax.random.PRNGKey(0)
    k_p, k_x, k_c = jax.random.split(key, 3)

    params = init_params(k_p)

    B, H_LR, W_LR, Q = 2, 16, 16, 64
    inp = jax.random.normal(k_x, (B, 3, H_LR, W_LR), jnp.float32)
    coord = jax.random.uniform(k_c, (B, Q, 2), jnp.float32, -1.0, 1.0)
    # cell for a x2 target (HR = 32x32)  ->  scale = round(2 / cell)/h = 2.0
    cell = jnp.full((B, Q, 2), 2.0 / 32.0, jnp.float32)

    out = arbsr_forward(params, inp, coord, cell)
    jax.block_until_ready(out)
    assert out.shape == (B, Q, 3)
    print("KERNEL_OK")
</pallas_src>

<mosaic_0001>
module attributes {stable_mosaic.version = 11 : i64} {
  func.func @kernel(%arg0: i32, %arg1: memref<4x64xbf16, #tpu.memory_space<vmem>>, %arg2: memref<1x64xf32, #tpu.memory_space<vmem>>, %arg3: memref<64x64xbf16, #tpu.memory_space<vmem>>, %arg4: memref<1x64xf32, #tpu.memory_space<vmem>>, %arg5: memref<64x8xbf16, #tpu.memory_space<vmem>>, %arg6: memref<1x8xf32, #tpu.memory_space<vmem>>, %arg7: memref<1x612x4xbf16, #tpu.memory_space<vmem>>, %arg8: memref<1x612x2xf32, #tpu.memory_space<vmem>>) attributes {dimension_semantics = [#tpu.dimension_semantics<parallel>], iteration_bounds = array<i64: 2>, scalar_prefetch = 0 : i64, scratch_operands = 0 : i64, tpu.core_type = #tpu.core_type<tc>, window_params = [{pipeline_mode = #tpu.pipeline_mode<synchronous>, transform_indices = @transform_0, window_bounds = array<i64: 4, 64>}, {pipeline_mode = #tpu.pipeline_mode<synchronous>, transform_indices = @transform_1, window_bounds = array<i64: 1, 64>}, {pipeline_mode = #tpu.pipeline_mode<synchronous>, transform_indices = @transform_2, window_bounds = array<i64: 64, 64>}, {pipeline_mode = #tpu.pipeline_mode<synchronous>, transform_indices = @transform_3, window_bounds = array<i64: 1, 64>}, {pipeline_mode = #tpu.pipeline_mode<synchronous>, transform_indices = @transform_4, window_bounds = array<i64: 64, 8>}, {pipeline_mode = #tpu.pipeline_mode<synchronous>, transform_indices = @transform_5, window_bounds = array<i64: 1, 8>}, {transform_indices = @transform_6, window_bounds = array<i64: 1, 612, 4>}, {transform_indices = @transform_7, window_bounds = array<i64: 1, 612, 2>}]} {
    %0 = tpu.iota {dimensions = array<i32: 0>} : vector<612x1xi32>
    %1 = arith.sitofp %0 : vector<612x1xi32> to vector<612x1xf32>
    %cst = arith.constant 5.000000e-01 : f32
    %2 = vector.broadcast %cst : f32 to vector<612x1xf32>
    %3 = arith.addf %1, %2 : vector<612x1xf32>
    %cst_0 = arith.constant 0.0294117648 : f32
    %4 = vector.broadcast %cst_0 : f32 to vector<612x1xf32>
    %5 = arith.mulf %3, %4 : vector<612x1xf32>
    %6 = math.floor %5 : vector<612x1xf32>
    %cst_1 = arith.constant 3.400000e+01 : f32
    %7 = vector.broadcast %cst_1 : f32 to vector<612x1xf32>
    %8 = arith.mulf %6, %7 : vector<612x1xf32>
    %9 = arith.subf %1, %8 : vector<612x1xf32>
    %c16_i32 = arith.constant 16 : i32
    %10 = arith.muli %arg0, %c16_i32 : i32
    %c1_i32 = arith.constant 1 : i32
    %11 = arith.subi %10, %c1_i32 : i32
    %12 = arith.sitofp %11 : i32 to f32
    %13 = vector.broadcast %12 : f32 to vector<612x1xf32>
    %14 = arith.addf %6, %13 : vector<612x1xf32>
    %cst_2 = arith.constant 1.000000e+00 : f32
    %15 = vector.broadcast %cst_2 : f32 to vector<612x1xf32>
    %16 = arith.subf %9, %15 : vector<612x1xf32>
    %cst_3 = arith.constant 5.000000e-01 : f32
    %17 = vector.broadcast %cst_3 : f32 to vector<612x1xf32>
    %18 = arith.addf %14, %17 : vector<612x1xf32>
    %cst_4 = arith.constant 5.000000e-01 : f32
    %19 = vector.broadcast %cst_4 : f32 to vector<612x1xf32>
    %20 = arith.mulf %18, %19 : vector<612x1xf32>
    %cst_5 = arith.constant 1.000000e-03 : f32
    %21 = vector.broadcast %cst_5 : f32 to vector<612x1xf32>
    %22 = arith.addf %20, %21 : vector<612x1xf32>
    %23 = math.floor %22 : vector<612x1xf32>
    %24 = arith.subf %20, %23 : vector<612x1xf32>
    %cst_6 = arith.constant 5.000000e-01 : f32
    %25 = vector.broadcast %cst_6 : f32 to vector<612x1xf32>
    %26 = arith.subf %24, %25 : vector<612x1xf32>
    %cst_7 = arith.constant 5.000000e-01 : f32
    %27 = vector.broadcast %cst_7 : f32 to vector<612x1xf32>
    %28 = arith.addf %16, %27 : vector<612x1xf32>
    %cst_8 = arith.constant 5.000000e-01 : f32
    %29 = vector.broadcast %cst_8 : f32 to vector<612x1xf32>
    %30 = arith.mulf %28, %29 : vector<612x1xf32>
    %cst_9 = arith.constant 1.000000e-03 : f32
    %31 = vector.broadcast %cst_9 : f32 to vector<612x1xf32>
    %32 = arith.addf %30, %31 : vector<612x1xf32>
    %33 = math.floor %32 : vector<612x1xf32>
    %34 = arith.subf %30, %33 : vector<612x1xf32>
    %cst_10 = arith.constant 5.000000e-01 : f32
    %35 = vector.broadcast %cst_10 : f32 to vector<612x1xf32>
    %36 = arith.subf %34, %35 : vector<612x1xf32>
    %cst_11 = arith.constant 5.000000e-01 : f32
    %37 = vector.broadcast %cst_11 : f32 to vector<612x1xf32>
    %38 = tpu.concatenate %37, %37, %26, %36 in 1 : vector<612x1xf32>, vector<612x1xf32>, vector<612x1xf32>, vector<612x1xf32> -> vector<612x4xf32>
    %39 = arith.truncf %38 : vector<612x4xf32> to vector<612x4xbf16>
    %c0 = arith.constant 0 : index
    %c0_12 = arith.constant 0 : index
    %40 = vector.load %arg1[%c0, %c0_12] : memref<4x64xbf16, #tpu.memory_space<vmem>>, vector<4x64xbf16>
    %cst_13 = arith.constant dense<0.000000e+00> : vector<612x64xf32>
    %41 = tpu.matmul %39, %40, %cst_13 {dimension_numbers = #tpu.dot_dimension_numbers<[1], [0], [0], [1], [0, 0, 1, 1], [], []>} : vector<612x4xbf16>, vector<4x64xbf16>, vector<612x64xf32> -> vector<612x64xf32>
    %c0_14 = arith.constant 0 : index
    %c0_15 = arith.constant 0 : index
    %42 = vector.load %arg2[%c0_14, %c0_15] : memref<1x64xf32, #tpu.memory_space<vmem>>, vector<1x64xf32>
    %43 = vector.broadcast %42 : vector<1x64xf32> to vector<612x64xf32>
    %44 = arith.addf %41, %43 : vector<612x64xf32>
    %cst_16 = arith.constant 0.000000e+00 : f32
    %45 = vector.broadcast %cst_16 : f32 to vector<612x64xf32>
    %46 = arith.maximumf %44, %45 : vector<612x64xf32>
    %47 = arith.truncf %46 : vector<612x64xf32> to vector<612x64xbf16>
    %c0_17 = arith.constant 0 : index
    %c0_18 = arith.constant 0 : index
    %48 = vector.load %arg3[%c0_17, %c0_18] : memref<64x64xbf16, #tpu.memory_space<vmem>>, vector<64x64xbf16>
    %cst_19 = arith.constant dense<0.000000e+00> : vector<612x64xf32>
    %49 = tpu.matmul %47, %48, %cst_19 {dimension_numbers = #tpu.dot_dimension_numbers<[1], [0], [0], [1], [0, 0, 1, 1], [], []>} : vector<612x64xbf16>, vector<64x64xbf16>, vector<612x64xf32> -> vector<612x64xf32>
    %c0_20 = arith.constant 0 : index
    %c0_21 = arith.constant 0 : index
    %50 = vector.load %arg4[%c0_20, %c0_21] : memref<1x64xf32, #tpu.memory_space<vmem>>, vector<1x64xf32>
    %51 = vector.broadcast %50 : vector<1x64xf32> to vector<612x64xf32>
    %52 = arith.addf %49, %51 : vector<612x64xf32>
    %cst_22 = arith.constant 0.000000e+00 : f32
    %53 = vector.broadcast %cst_22 : f32 to vector<612x64xf32>
    %54 = arith.maximumf %52, %53 : vector<612x64xf32>
    %55 = arith.truncf %54 : vector<612x64xf32> to vector<612x64xbf16>
    %c0_23 = arith.constant 0 : index
    %c0_24 = arith.constant 0 : index
    %56 = vector.load %arg5[%c0_23, %c0_24] : memref<64x8xbf16, #tpu.memory_space<vmem>>, vector<64x8xbf16>
    %cst_25 = arith.constant dense<0.000000e+00> : vector<612x8xf32>
    %57 = tpu.matmul %55, %56, %cst_25 {dimension_numbers = #tpu.dot_dimension_numbers<[1], [0], [0], [1], [0, 0, 1, 1], [], []>} : vector<612x64xbf16>, vector<64x8xbf16>, vector<612x8xf32> -> vector<612x8xf32>
    %c0_26 = arith.constant 0 : index
    %c0_27 = arith.constant 0 : index
    %58 = vector.load %arg6[%c0_26, %c0_27] : memref<1x8xf32, #tpu.memory_space<vmem>>, vector<1x8xf32>
    %59 = vector.broadcast %58 : vector<1x8xf32> to vector<612x8xf32>
    %60 = arith.addf %57, %59 : vector<612x8xf32>
    %61 = vector.extract_strided_slice %60 {offsets = [0, 0], sizes = [612, 4], strides = [1, 1]} : vector<612x8xf32> to vector<612x4xf32>
    %cst_28 = arith.constant 0.000000e+00 : f32
    %62 = vector.broadcast %cst_28 : f32 to vector<612x4xf32>
    %63 = arith.subf %62, %61 : vector<612x4xf32>
    %64 = math.exp %63 : vector<612x4xf32>
    %cst_29 = arith.constant 1.000000e+00 : f32
    %65 = vector.broadcast %cst_29 : f32 to vector<612x4xf32>
    %66 = arith.addf %65, %64 : vector<612x4xf32>
    %cst_30 = arith.constant 1.000000e+00 : f32
    %67 = vector.broadcast %cst_30 : f32 to vector<612x4xf32>
    %68 = arith.divf %67, %66 : vector<612x4xf32>
    %69 = arith.truncf %68 : vector<612x4xf32> to vector<612x4xbf16>
    %c0_31 = arith.constant 0 : index
    %c0_32 = arith.constant 0 : index
    %c0_33 = arith.constant 0 : index
    %70 = vector.load %arg7[%c0_31, %c0_32, %c0_33] : memref<1x612x4xbf16, #tpu.memory_space<vmem>>, vector<1x612x4xbf16>
    %71 = vector.shape_cast %70 : vector<1x612x4xbf16> to vector<612x4xbf16>
    %72 = vector.shape_cast %69 : vector<612x4xbf16> to vector<1x612x4xbf16>
    tpu.vector_store %arg7[%c0_31, %c0_32, %c0_33], %72 {strides = array<i32>} : memref<1x612x4xbf16, #tpu.memory_space<vmem>>, vector<1x612x4xbf16>,
    %73 = vector.extract_strided_slice %60 {offsets = [0, 4], sizes = [612, 2], strides = [1, 1]} : vector<612x8xf32> to vector<612x2xf32>
    %c0_34 = arith.constant 0 : index
    %c0_35 = arith.constant 0 : index
    %c0_36 = arith.constant 0 : index
    %74 = vector.load %arg8[%c0_34, %c0_35, %c0_36] : memref<1x612x2xf32, #tpu.memory_space<vmem>>, vector<1x612x2xf32>
    %75 = vector.shape_cast %74 : vector<1x612x2xf32> to vector<612x2xf32>
    %76 = vector.shape_cast %73 : vector<612x2xf32> to vector<1x612x2xf32>
    tpu.vector_store %arg8[%c0_34, %c0_35, %c0_36], %76 {strides = array<i32>} : memref<1x612x2xf32, #tpu.memory_space<vmem>>, vector<1x612x2xf32>,
    return
  }
  func.func @transform_0(%arg0: i32) -> (i32, i32) {
    %c0_i32 = arith.constant 0 : i32
    %c0_i32_0 = arith.constant 0 : i32
    %c0_i32_1 = arith.constant 0 : i32
    return %c0_i32, %c0_i32_0 : i32, i32
  }
  func.func @transform_1(%arg0: i32) -> (i32, i32) {
    %c0_i32 = arith.constant 0 : i32
    %c0_i32_0 = arith.constant 0 : i32
    %c0_i32_1 = arith.constant 0 : i32
    return %c0_i32, %c0_i32_0 : i32, i32
  }
  func.func @transform_2(%arg0: i32) -> (i32, i32) {
    %c0_i32 = arith.constant 0 : i32
    %c0_i32_0 = arith.constant 0 : i32
    %c0_i32_1 = arith.constant 0 : i32
    return %c0_i32, %c0_i32_0 : i32, i32
  }
  func.func @transform_3(%arg0: i32) -> (i32, i32) {
    %c0_i32 = arith.constant 0 : i32
    %c0_i32_0 = arith.constant 0 : i32
    %c0_i32_1 = arith.constant 0 : i32
    return %c0_i32, %c0_i32_0 : i32, i32
  }
  func.func @transform_4(%arg0: i32) -> (i32, i32) {
    %c0_i32 = arith.constant 0 : i32
    %c0_i32_0 = arith.constant 0 : i32
    %c0_i32_1 = arith.constant 0 : i32
    return %c0_i32, %c0_i32_0 : i32, i32
  }
  func.func @transform_5(%arg0: i32) -> (i32, i32) {
    %c0_i32 = arith.constant 0 : i32
    %c0_i32_0 = arith.constant 0 : i32
    %c0_i32_1 = arith.constant 0 : i32
    return %c0_i32, %c0_i32_0 : i32, i32
  }
  func.func @transform_6(%arg0: i32) -> (i32, i32, i32) {
    %c0_i32 = arith.constant 0 : i32
    %c0_i32_0 = arith.constant 0 : i32
    %c0_i32_1 = arith.constant 0 : i32
    return %arg0, %c0_i32, %c0_i32_0 : i32, i32, i32
  }
  func.func @transform_7(%arg0: i32) -> (i32, i32, i32) {
    %c0_i32 = arith.constant 0 : i32
    %c0_i32_0 = arith.constant 0 : i32
    %c0_i32_1 = arith.constant 0 : i32
    return %arg0, %c0_i32, %c0_i32_0 : i32, i32, i32
  }
}

</mosaic_0001>

<llo_original>
// kernel: tpu_custom_call.1
$region0: #{tpu_custom_call.1}
  #allocation0 [shape = 'u32[]', space=smem, size = 0x4, offset = 0x4, fixed_abs, tag = 'smem constant byte address 0x4 - core index']
  #allocation1 [shape = 'u32[144,128]{1,0:T(1,128)}', space=vmem, size = 0x12000, scoped, tag = 'internal scratch']
  %s0 = inlined_call_operand.vmem [shape: bf16[4,64], index: 0, kind: input, shape index: {}]
  %s1 = inlined_call_operand.vmem [shape: f32[1,64], index: 1, kind: input, shape index: {}]
  %s2 = inlined_call_operand.vmem [shape: bf16[64,64], index: 2, kind: input, shape index: {}]
  %s3 = inlined_call_operand.vmem [shape: f32[1,64], index: 3, kind: input, shape index: {}]
  %s4 = inlined_call_operand.vmem [shape: bf16[64,8], index: 4, kind: input, shape index: {}]
  %s5 = inlined_call_operand.vmem [shape: f32[1,8], index: 5, kind: input, shape index: {}]
  %s6 = inlined_call_operand.vmem [shape: bf16[2,612,4], index: 6, kind: output, shape index: {0}]
  %s7 = inlined_call_operand.vmem [shape: f32[2,612,2], index: 7, kind: output, shape index: {1}]
  %8 = xla_tuple %s6, %s7
  %s9 = sld [smem:[#allocation0]]
  $region65: #{tpu_custom_call.1} parent=0
    _
  %s11 = ssub.s32 1, %s9
  %s12 = scalar_select 0, %s11, %s9
  loop: start=0, step=1, limit=4
  $region2: #{tpu_custom_call.1} parent=0 // loop_pre_header
    _
  $region3: #{tpu_custom_call.1} parent=0 // loop_header
    %s14 = sphi 0, %s18
    %p15 = scmp.ge.s32.totalorder %s14, 4
    %s22 = sphi 0, %s22
    %s24 = sphi 0, %s22
    %s25 = sphi 0, %s24
    %s39 = sphi 0, %s25
    %s43 = sphi 0, %s43
    %s45 = sphi 0, %s43
    %s46 = sphi 0, %s45
    %s60 = sphi 0, %s46
    %s64 = sphi 0, %s64
    %s66 = sphi 0, %s64
    %s67 = sphi 0, %s66
    %s81 = sphi 0, %s67
    %s85 = sphi 0, %s85
    %s87 = sphi 0, %s85
    %s88 = sphi 0, %s87
    %s102 = sphi 0, %s88
    %s106 = sphi 0, %s106
    %s108 = sphi 0, %s106
    %s109 = sphi 0, %s108
    %s123 = sphi 0, %s109
    %s127 = sphi 0, %s127
    %s129 = sphi 0, %s127
    %s130 = sphi 0, %s129
    %s144 = sphi 0, %s130
    %s150 = sphi 0, %s152
    %s153 = sphi 0, %s150
    %s154 = sphi 0, %s153
    %s170 = sphi 0, %s154
    %s176 = sphi 0, %s178
    %s179 = sphi 0, %s176
    %s180 = sphi 0, %s179
    %s196 = sphi 0, %s180
  $region4: #{tpu_custom_call.1} parent=0 // loop_header_branch
    %17 = sbr.rel (%p15) target = $region8
  $region5: #{tpu_custom_call.1} parent=0 // loop_body
    %s19 = ssub.s32 %s14, 1
    %s20 = ssub.s32 %s14, 2
    %s21 = sadd.s32 %s14, 1
    %s23 = sadd.s32 %s22, 1
    %p26 = scmp.eq.s32.totalorder %s14, 1
    %p27 = scmp.ne.s32.totalorder %s22, %s24
    %p28 = scmp.eq.s32.totalorder %s14, 0
    %p29 = por %p27, %p28
    %p30 = scmp.ne.s32.totalorder %s22, %s24
    %p31 = scmp.eq.s32.totalorder %s19, 1
    %p32 = por %p30, %p31
    %p33 = scmp.ne.s32.totalorder %s24, %s25
    %p34 = scmp.eq.s32.totalorder %s19, 0
    %p35 = por %p33, %p34
    %p36 = scmp.ne.s32.totalorder %s24, %s25
    %p37 = scmp.eq.s32.totalorder %s20, 1
    %p38 = por %p36, %p37
    %p40 = scmp.ne.s32.totalorder %s25, %s39
    %p41 = scmp.eq.s32.totalorder %s20, 0
    %p42 = por %p40, %p41
    %s44 = sadd.s32 %s43, 1
    %p47 = scmp.eq.s32.totalorder %s14, 1
    %p48 = scmp.ne.s32.totalorder %s43, %s45
    %p49 = scmp.eq.s32.totalorder %s14, 0
    %p50 = por %p48, %p49
    %p51 = scmp.ne.s32.totalorder %s43, %s45
    %p52 = scmp.eq.s32.totalorder %s19, 1
    %p53 = por %p51, %p52
    %p54 = scmp.ne.s32.totalorder %s45, %s46
    %p55 = scmp.eq.s32.totalorder %s19, 0
    %p56 = por %p54, %p55
    %p57 = scmp.ne.s32.totalorder %s45, %s46
    %p58 = scmp.eq.s32.totalorder %s20, 1
    %p59 = por %p57, %p58
    %p61 = scmp.ne.s32.totalorder %s46, %s60
    %p62 = scmp.eq.s32.totalorder %s20, 0
    %p63 = por %p61, %p62
    %s65 = sadd.s32 %s64, 1
    %p68 = scmp.eq.s32.totalorder %s14, 1
    %p69 = scmp.ne.s32.totalorder %s64, %s66
    %p70 = scmp.eq.s32.totalorder %s14, 0
    %p71 = por %p69, %p70
    %p72 = scmp.ne.s32.totalorder %s64, %s66
    %p73 = scmp.eq.s32.totalorder %s19, 1
    %p74 = por %p72, %p73
    %p75 = scmp.ne.s32.totalorder %s66, %s67
    %p76 = scmp.eq.s32.totalorder %s19, 0
    %p77 = por %p75, %p76
    %p78 = scmp.ne.s32.totalorder %s66, %s67
    %p79 = scmp.eq.s32.totalorder %s20, 1
    %p80 = por %p78, %p79
    %p82 = scmp.ne.s32.totalorder %s67, %s81
    %p83 = scmp.eq.s32.totalorder %s20, 0
    %p84 = por %p82, %p83
    %s86 = sadd.s32 %s85, 1
    %p89 = scmp.eq.s32.totalorder %s14, 1
    %p90 = scmp.ne.s32.totalorder %s85, %s87
    %p91 = scmp.eq.s32.totalorder %s14, 0
    %p92 = por %p90, %p91
    %p93 = scmp.ne.s32.totalorder %s85, %s87
    %p94 = scmp.eq.s32.totalorder %s19, 1
    %p95 = por %p93, %p94
    %p96 = scmp.ne.s32.totalorder %s87, %s88
    %p97 = scmp.eq.s32.totalorder %s19, 0
    %p98 = por %p96, %p97
    %p99 = scmp.ne.s32.totalorder %s87, %s88
    %p100 = scmp.eq.s32.totalorder %s20, 1
    %p101 = por %p99, %p100
    %p103 = scmp.ne.s32.totalorder %s88, %s102
    %p104 = scmp.eq.s32.totalorder %s20, 0
    %p105 = por %p103, %p104
    %s107 = sadd.s32 %s106, 1
    %p110 = scmp.eq.s32.totalorder %s14, 1
    %p111 = scmp.ne.s32.totalorder %s106, %s108
    %p112 = scmp.eq.s32.totalorder %s14, 0
    %p113 = por %p111, %p112
    %p114 = scmp.ne.s32.totalorder %s106, %s108
    %p115 = scmp.eq.s32.totalorder %s19, 1
    %p116 = por %p114, %p115
    %p117 = scmp.ne.s32.totalorder %s108, %s109
    %p118 = scmp.eq.s32.totalorder %s19, 0
    %p119 = por %p117, %p118
    %p120 = scmp.ne.s32.totalorder %s108, %s109
    %p121 = scmp.eq.s32.totalorder %s20, 1
    %p122 = por %p120, %p121
    %p124 = scmp.ne.s32.totalorder %s109, %s123
    %p125 = scmp.eq.s32.totalorder %s20, 0
    %p126 = por %p124, %p125
    %s128 = sadd.s32 %s127, 1
    %p131 = scmp.eq.s32.totalorder %s14, 1
    %p132 = scmp.ne.s32.totalorder %s127, %s129
    %p133 = scmp.eq.s32.totalorder %s14, 0
    %p134 = por %p132, %p133
    %p135 = scmp.ne.s32.totalorder %s127, %s129
    %p136 = scmp.eq.s32.totalorder %s19, 1
    %p137 = por %p135, %p136
    %p138 = scmp.ne.s32.totalorder %s129, %s130
    %p139 = scmp.eq.s32.totalorder %s19, 0
    %p140 = por %p138, %p139
    %p141 = scmp.ne.s32.totalorder %s129, %s130
    %p142 = scmp.eq.s32.totalorder %s20, 1
    %p143 = por %p141, %p142
    %p145 = scmp.ne.s32.totalorder %s130, %s144
    %p146 = scmp.eq.s32.totalorder %s20, 0
    %p147 = por %p145, %p146
    %s148 = ssub.s32 %s14, %s21
    %p149 = scmp.eq.s32.totalorder %s148, 0
    %s151 = sadd.s32 %s150, 1
    %s152 = scalar_select %p149, %s150, %s151
    %p155 = pneg %p149
    %p156 = scmp.eq.s32.totalorder %s14, 1
    %p157 = por %p155, %p156
    %p158 = scmp.ne.s32.totalorder %s150, %s153
    %p159 = scmp.eq.s32.totalorder %s14, 0
    %p160 = por %p158, %p159
    %p161 = scmp.ne.s32.totalorder %s150, %s153
    %p162 = scmp.eq.s32.totalorder %s19, 1
    %p163 = por %p161, %p162
    %p164 = scmp.ne.s32.totalorder %s153, %s154
    %p165 = scmp.eq.s32.totalorder %s19, 0
    %p166 = por %p164, %p165
    %p167 = scmp.ne.s32.totalorder %s153, %s154
    %p168 = scmp.eq.s32.totalorder %s20, 1
    %p169 = por %p167, %p168
    %p171 = scmp.ne.s32.totalorder %s154, %s170
    %p172 = scmp.eq.s32.totalorder %s20, 0
    %p173 = por %p171, %p172
    %s174 = ssub.s32 %s14, %s21
    %p175 = scmp.eq.s32.totalorder %s174, 0
    %s177 = sadd.s32 %s176, 1
    %s178 = scalar_select %p175, %s176, %s177
    %p181 = pneg %p175
    %p182 = scmp.eq.s32.totalorder %s14, 1
    %p183 = por %p181, %p182
    %p184 = scmp.ne.s32.totalorder %s176, %s179
    %p185 = scmp.eq.s32.totalorder %s14, 0
    %p186 = por %p184, %p185
    %p187 = scmp.ne.s32.totalorder %s176, %s179
    %p188 = scmp.eq.s32.totalorder %s19, 1
    %p189 = por %p187, %p188
    %p190 = scmp.ne.s32.totalorder %s179, %s180
    %p191 = scmp.eq.s32.totalorder %s19, 0
    %p192 = por %p190, %p191
    %p193 = scmp.ne.s32.totalorder %s179, %s180
    %p194 = scmp.eq.s32.totalorder %s20, 1
    %p195 = por %p193, %p194
    %p197 = scmp.ne.s32.totalorder %s180, %s196
    %p198 = scmp.eq.s32.totalorder %s20, 0
    %p199 = por %p197, %p198
    %p200 = scmp.le.s32.totalorder 1, %s14
    %p201 = scmp.lt.s32.totalorder %s14, 3
    %p202 = pnand %p200, %p201
    %p203 = pneg %p202
    // Predicated region
    $region9: #{tpu_custom_call.1} parent=5 // pred_check
      _
    $region10: #{tpu_custom_call.1} parent=5 // pred_check_branch
      %205 = sbr.rel (%p202) target = $region12
    $region11: #{tpu_custom_call.1} parent=5 // pred_region
      %s206 = ssub.s32 %s14, 1
      // Predicated region
      $region13: #{tpu_custom_call.1} parent=11 // pred_check
        %p207 = pneg %p35
      $region14: #{tpu_custom_call.1} parent=11 // pred_check_branch
        %209 = sbr.rel (%p207) target = $region16
      $region15: #{tpu_custom_call.1} parent=11 // pred_region
        _
      $region16: #{tpu_custom_call.1} parent=11 // pred_fallthru
        _
      // Predicated region
      $region17: #{tpu_custom_call.1} parent=11 // pred_check
        %p210 = pneg %p56
      $region18: #{tpu_custom_call.1} parent=11 // pred_check_branch
        %212 = sbr.rel (%p210) target = $region20
      $region19: #{tpu_custom_call.1} parent=11 // pred_region
        _
      $region20: #{tpu_custom_call.1} parent=11 // pred_fallthru
        _
      // Predicated region
      $region21: #{tpu_custom_call.1} parent=11 // pred_check
        %p213 = pneg %p77
      $region22: #{tpu_custom_call.1} parent=11 // pred_check_branch
        %215 = sbr.rel (%p213) target = $region24
      $region23: #{tpu_custom_call.1} parent=11 // pred_region
        _
      $region24: #{tpu_custom_call.1} parent=11 // pred_fallthru
        _
      // Predicated region
      $region25: #{tpu_custom_call.1} parent=11 // pred_check
        %p216 = pneg %p98
      $region26: #{tpu_custom_call.1} parent=11 // pred_check_branch
        %218 = sbr.rel (%p216) target = $region28
      $region27: #{tpu_custom_call.1} parent=11 // pred_region
        _
      $region28: #{tpu_custom_call.1} parent=11 // pred_fallthru
        _
      // Predicated region
      $region29: #{tpu_custom_call.1} parent=11 // pred_check
        %p219 = pneg %p119
      $region30: #{tpu_custom_call.1} parent=11 // pred_check_branch
        %221 = sbr.rel (%p219) target = $region32
      $region31: #{tpu_custom_call.1} parent=11 // pred_region
        _
      $region32: #{tpu_custom_call.1} parent=11 // pred_fallthru
        _
      // Predicated region
      $region33: #{tpu_custom_call.1} parent=11 // pred_check
        %p222 = pneg %p140
      $region34: #{tpu_custom_call.1} parent=11 // pred_check_branch
        %224 = sbr.rel (%p222) target = $region36
      $region35: #{tpu_custom_call.1} parent=11 // pred_region
        _
      $region36: #{tpu_custom_call.1} parent=11 // pred_fallthru
        _
    $region12: #{tpu_custom_call.1} parent=5 // pred_fallthru
      _
    %p225 = scmp.lt.s32.totalorder %s14, 2
    // Predicated region
    $region37: #{tpu_custom_call.1} parent=5 // pred_check
      %p226 = pneg %p225
    $region38: #{tpu_custom_call.1} parent=5 // pred_check_branch
      %228 = sbr.rel (%p226) target = $region40
    $region39: #{tpu_custom_call.1} parent=5 // pred_region
      _
    $region40: #{tpu_custom_call.1} parent=5 // pred_fallthru
      _
    %p229 = scmp.le.s32.totalorder 1, %s14
    %p230 = scmp.lt.s32.totalorder %s14, 3
    %p231 = pnand %p229, %p230
    %p232 = pneg %p231
    // Predicated region
    $region41: #{tpu_custom_call.1} parent=5 // pred_check
      _
    $region42: #{tpu_custom_call.1} parent=5 // pred_check_branch
      %234 = sbr.rel (%p231) target = $region44
    $region43: #{tpu_custom_call.1} parent=5 // pred_region
      %s235 = ssub.s32 %s14, 1
      %p236 = pneg %p35
      %p237 = pneg %p32
      %p238 = pneg %p56
      %p239 = pneg %p53
      %p240 = pneg %p77
      %p241 = pneg %p74
      %p242 = pneg %p98
      %p243 = pneg %p95
      %p244 = pneg %p119
      %p245 = pneg %p116
      %p246 = pneg %p140
      %p247 = pneg %p137
      %p248 = pneg %p166
      %p249 = pneg %p163
      %p250 = scmp.lt.s32.totalorder %s19, 1
      %s251 = scalar_select %p250, %s19, 1
      %s252 = smul.addr %s251, 77
      %s253 = smul.addr %s252, 4
      %s254 = scalar_lea.vmem %s6, %s253
      %p255 = pneg %p192
      %p256 = pneg %p189
      %p257 = scmp.lt.s32.totalorder %s19, 1
      %s258 = scalar_select %p257, %s19, 1
      %s259 = smul.addr %s258, 77
      %s260 = smul.addr %s259, 8
      %s261 = scalar_lea.vmem %s7, %s260
      %p262 = scmp.lt.s32.totalorder %s19, 1
      %s263 = scalar_select %p262, %s19, 1
      %s264 = smul.addr %s263, 77
      %s265 = smul.addr %s264, 4
      %s266 = scalar_lea.vmem %s6, %s265
      %p267 = scmp.lt.s32.totalorder %s19, 1
      %s268 = scalar_select %p267, %s19, 1
      %s269 = smul.addr %s268, 77
      %s270 = smul.addr %s269, 8
      %s271 = scalar_lea.vmem %s7, %s270
      %v273 = vlaneseq
      %v274 = vshrl.u32 %v273, 7
      %v275 = vadd.s32 %v274, 8
      %v276 = vadd.s32 %v274, 16
      %v277 = vadd.s32 %v274, 24
      %v278 = vadd.s32 %v274, 32
      %v279 = vadd.s32 %v274, 40
      %v280 = vadd.s32 %v274, 48
      %v281 = vadd.s32 %v274, 56
      %v282 = vadd.s32 %v274, 64
      %v283 = vadd.s32 %v274, 72
      %v284 = vadd.s32 %v274, 80
      %v285 = vadd.s32 %v274, 88
      %v286 = vadd.s32 %v274, 96
      %v287 = vadd.s32 %v274, 104
      %v288 = vadd.s32 %v274, 112
      %v289 = vadd.s32 %v274, 120
      %v290 = vadd.s32 %v274, 128
      %v291 = vadd.s32 %v274, 136
      %v292 = vadd.s32 %v274, 144
      %v293 = vadd.s32 %v274, 152
      %v294 = vadd.s32 %v274, 160
      %v295 = vadd.s32 %v274, 168
      %v296 = vadd.s32 %v274, 176
      %v297 = vadd.s32 %v274, 184
      %v298 = vadd.s32 %v274, 192
      %v299 = vadd.s32 %v274, 200
      %v300 = vadd.s32 %v274, 208
      %v301 = vadd.s32 %v274, 216
      %v302 = vadd.s32 %v274, 224
      %v303 = vadd.s32 %v274, 232
      %v304 = vadd.s32 %v274, 240
      %v305 = vadd.s32 %v274, 248
      %v306 = vadd.s32 %v274, 256
      %v307 = vadd.s32 %v274, 264
      %v308 = vadd.s32 %v274, 272
      %v309 = vadd.s32 %v274, 280
      %v310 = vadd.s32 %v274, 288
      %v311 = vadd.s32 %v274, 296
      %v312 = vadd.s32 %v274, 304
      %v313 = vadd.s32 %v274, 312
      %v314 = vadd.s32 %v274, 320
      %v315 = vadd.s32 %v274, 328
      %v316 = vadd.s32 %v274, 336
      %v317 = vadd.s32 %v274, 344
      %v318 = vadd.s32 %v274, 352
      %v319 = vadd.s32 %v274, 360
      %v320 = vadd.s32 %v274, 368
      %v321 = vadd.s32 %v274, 376
      %v322 = vadd.s32 %v274, 384
      %v323 = vadd.s32 %v274, 392
      %v324 = vadd.s32 %v274, 400
      %v325 = vadd.s32 %v274, 408
      %v326 = vadd.s32 %v274, 416
      %v327 = vadd.s32 %v274, 424
      %v328 = vadd.s32 %v274, 432
      %v329 = vadd.s32 %v274, 440
      %v330 = vadd.s32 %v274, 448
      %v331 = vadd.s32 %v274, 456
      %v332 = vadd.s32 %v274, 464
      %v333 = vadd.s32 %v274, 472
      %v334 = vadd.s32 %v274, 480
      %v335 = vadd.s32 %v274, 488
      %v336 = vadd.s32 %v274, 496
      %v337 = vadd.s32 %v274, 504
      %v338 = vadd.s32 %v274, 512
      %v339 = vadd.s32 %v274, 520
      %v340 = vadd.s32 %v274, 528
      %v341 = vadd.s32 %v274, 536
      %v342 = vadd.s32 %v274, 544
      %v343 = vadd.s32 %v274, 552
      %v344 = vadd.s32 %v274, 560
      %v345 = vadd.s32 %v274, 568
      %v346 = vadd.s32 %v274, 576
      %v347 = vadd.s32 %v274, 584
      %v348 = vadd.s32 %v274, 592
      %v349 = vadd.s32 %v274, 600
      %v350 = vadd.s32 %v274, 608
      %v351 = vcvt.s32.f32 %v274
      %v352 = vcvt.s32.f32 %v275
      %v353 = vcvt.s32.f32 %v276
      %v354 = vcvt.s32.f32 %v277
      %v355 = vcvt.s32.f32 %v278
      %v356 = vcvt.s32.f32 %v279
      %v357 = vcvt.s32.f32 %v280
      %v358 = vcvt.s32.f32 %v281
      %v359 = vcvt.s32.f32 %v282
      %v360 = vcvt.s32.f32 %v283
      %v361 = vcvt.s32.f32 %v284
      %v362 = vcvt.s32.f32 %v285
      %v363 = vcvt.s32.f32 %v286
      %v364 = vcvt.s32.f32 %v287
      %v365 = vcvt.s32.f32 %v288
      %v366 = vcvt.s32.f32 %v289
      %v367 = vcvt.s32.f32 %v290
      %v368 = vcvt.s32.f32 %v291
      %v369 = vcvt.s32.f32 %v292
      %v370 = vcvt.s32.f32 %v293
      %v371 = vcvt.s32.f32 %v294
      %v372 = vcvt.s32.f32 %v295
      %v373 = vcvt.s32.f32 %v296
      %v374 = vcvt.s32.f32 %v297
      %v375 = vcvt.s32.f32 %v298
      %v376 = vcvt.s32.f32 %v299
      %v377 = vcvt.s32.f32 %v300
      %v378 = vcvt.s32.f32 %v301
      %v379 = vcvt.s32.f32 %v302
      %v380 = vcvt.s32.f32 %v303
      %v381 = vcvt.s32.f32 %v304
      %v382 = vcvt.s32.f32 %v305
      %v383 = vcvt.s32.f32 %v306
      %v384 = vcvt.s32.f32 %v307
      %v385 = vcvt.s32.f32 %v308
      %v386 = vcvt.s32.f32 %v309
      %v387 = vcvt.s32.f32 %v310
      %v388 = vcvt.s32.f32 %v311
      %v389 = vcvt.s32.f32 %v312
      %v390 = vcvt.s32.f32 %v313
      %v391 = vcvt.s32.f32 %v314
      %v392 = vcvt.s32.f32 %v315
      %v393 = vcvt.s32.f32 %v316
      %v394 = vcvt.s32.f32 %v317
      %v395 = vcvt.s32.f32 %v318
      %v396 = vcvt.s32.f32 %v319
      %v397 = vcvt.s32.f32 %v320
      %v398 = vcvt.s32.f32 %v321
      %v399 = vcvt.s32.f32 %v322
      %v400 = vcvt.s32.f32 %v323
      %v401 = vcvt.s32.f32 %v324
      %v402 = vcvt.s32.f32 %v325
      %v403 = vcvt.s32.f32 %v326
      %v404 = vcvt.s32.f32 %v327
      %v405 = vcvt.s32.f32 %v328
      %v406 = vcvt.s32.f32 %v329
      %v407 = vcvt.s32.f32 %v330
      %v408 = vcvt.s32.f32 %v331
      %v409 = vcvt.s32.f32 %v332
      %v410 = vcvt.s32.f32 %v333
      %v411 = vcvt.s32.f32 %v334
      %v412 = vcvt.s32.f32 %v335
      %v413 = vcvt.s32.f32 %v336
      %v414 = vcvt.s32.f32 %v337
      %v415 = vcvt.s32.f32 %v338
      %v416 = vcvt.s32.f32 %v339
      %v417 = vcvt.s32.f32 %v340
      %v418 = vcvt.s32.f32 %v341
      %v419 = vcvt.s32.f32 %v342
      %v420 = vcvt.s32.f32 %v343
      %v421 = vcvt.s32.f32 %v344
      %v422 = vcvt.s32.f32 %v345
      %v423 = vcvt.s32.f32 %v346
      %v424 = vcvt.s32.f32 %v347
      %v425 = vcvt.s32.f32 %v348
      %v426 = vcvt.s32.f32 %v349
      %v427 = vcvt.s32.f32 %v350
      %v428 = vadd.f32 %v351, 0.5
      %v429 = vadd.f32 %v352, 0.5
      %v430 = vadd.f32 %v353, 0.5
      %v431 = vadd.f32 %v354, 0.5
      %v432 = vadd.f32 %v355, 0.5
      %v433 = vadd.f32 %v356, 0.5
      %v434 = vadd.f32 %v357, 0.5
      %v435 = vadd.f32 %v358, 0.5
      %v436 = vadd.f32 %v359, 0.5
      %v437 = vadd.f32 %v360, 0.5
      %v438 = vadd.f32 %v361, 0.5
      %v439 = vadd.f32 %v362, 0.5
      %v440 = vadd.f32 %v363, 0.5
      %v441 = vadd.f32 %v364, 0.5
      %v442 = vadd.f32 %v365, 0.5
      %v443 = vadd.f32 %v366, 0.5
      %v444 = vadd.f32 %v367, 0.5
      %v445 = vadd.f32 %v368, 0.5
      %v446 = vadd.f32 %v369, 0.5
      %v447 = vadd.f32 %v370, 0.5
      %v448 = vadd.f32 %v371, 0.5
      %v449 = vadd.f32 %v372, 0.5
      %v450 = vadd.f32 %v373, 0.5
      %v451 = vadd.f32 %v374, 0.5
      %v452 = vadd.f32 %v375, 0.5
      %v453 = vadd.f32 %v376, 0.5
      %v454 = vadd.f32 %v377, 0.5
      %v455 = vadd.f32 %v378, 0.5
      %v456 = vadd.f32 %v379, 0.5
      %v457 = vadd.f32 %v380, 0.5
      %v458 = vadd.f32 %v381, 0.5
      %v459 = vadd.f32 %v382, 0.5
      %v460 = vadd.f32 %v383, 0.5
      %v461 = vadd.f32 %v384, 0.5
      %v462 = vadd.f32 %v385, 0.5
      %v463 = vadd.f32 %v386, 0.5
      %v464 = vadd.f32 %v387, 0.5
      %v465 = vadd.f32 %v388, 0.5
      %v466 = vadd.f32 %v389, 0.5
      %v467 = vadd.f32 %v390, 0.5
      %v468 = vadd.f32 %v391, 0.5
      %v469 = vadd.f32 %v392, 0.5
      %v470 = vadd.f32 %v393, 0.5
      %v471 = vadd.f32 %v394, 0.5
      %v472 = vadd.f32 %v395, 0.5
      %v473 = vadd.f32 %v396, 0.5
      %v474 = vadd.f32 %v397, 0.5
      %v475 = vadd.f32 %v398, 0.5
      %v476 = vadd.f32 %v399, 0.5
      %v477 = vadd.f32 %v400, 0.5
      %v478 = vadd.f32 %v401, 0.5
      %v479 = vadd.f32 %v402, 0.5
      %v480 = vadd.f32 %v403, 0.5
      %v481 = vadd.f32 %v404, 0.5
      %v482 = vadd.f32 %v405, 0.5
      %v483 = vadd.f32 %v406, 0.5
      %v484 = vadd.f32 %v407, 0.5
      %v485 = vadd.f32 %v408, 0.5
      %v486 = vadd.f32 %v409, 0.5
      %v487 = vadd.f32 %v410, 0.5
      %v488 = vadd.f32 %v411, 0.5
      %v489 = vadd.f32 %v412, 0.5
      %v490 = vadd.f32 %v413, 0.5
      %v491 = vadd.f32 %v414, 0.5
      %v492 = vadd.f32 %v415, 0.5
      %v493 = vadd.f32 %v416, 0.5
      %v494 = vadd.f32 %v417, 0.5
      %v495 = vadd.f32 %v418, 0.5
      %v496 = vadd.f32 %v419, 0.5
      %v497 = vadd.f32 %v420, 0.5
      %v498 = vadd.f32 %v421, 0.5
      %v499 = vadd.f32 %v422, 0.5
      %v500 = vadd.f32 %v423, 0.5
      %v501 = vadd.f32 %v424, 0.5
      %v502 = vadd.f32 %v425, 0.5
      %v503 = vadd.f32 %v426, 0.5
      %v504 = vadd.f32 %v427, 0.5
      %v505 = vmul.f32 %v428, 0.029411765
      %v506 = vmul.f32 %v429, 0.029411765
      %v507 = vmul.f32 %v430, 0.029411765
      %v508 = vmul.f32 %v431, 0.029411765
      %v509 = vmul.f32 %v432, 0.029411765
      %v510 = vmul.f32 %v433, 0.029411765
      %v511 = vmul.f32 %v434, 0.029411765
      %v512 = vmul.f32 %v435, 0.029411765
      %v513 = vmul.f32 %v436, 0.029411765
      %v514 = vmul.f32 %v437, 0.029411765
      %v515 = vmul.f32 %v438, 0.029411765
      %v516 = vmul.f32 %v439, 0.029411765
      %v517 = vmul.f32 %v440, 0.029411765
      %v518 = vmul.f32 %v441, 0.029411765
      %v519 = vmul.f32 %v442, 0.029411765
      %v520 = vmul.f32 %v443, 0.029411765
      %v521 = vmul.f32 %v444, 0.029411765
      %v522 = vmul.f32 %v445, 0.029411765
      %v523 = vmul.f32 %v446, 0.029411765
      %v524 = vmul.f32 %v447, 0.029411765
      %v525 = vmul.f32 %v448, 0.029411765
      %v526 = vmul.f32 %v449, 0.029411765
      %v527 = vmul.f32 %v450, 0.029411765
      %v528 = vmul.f32 %v451, 0.029411765
      %v529 = vmul.f32 %v452, 0.029411765
      %v530 = vmul.f32 %v453, 0.029411765
      %v531 = vmul.f32 %v454, 0.029411765
      %v532 = vmul.f32 %v455, 0.029411765
      %v533 = vmul.f32 %v456, 0.029411765
      %v534 = vmul.f32 %v457, 0.029411765
      %v535 = vmul.f32 %v458, 0.029411765
      %v536 = vmul.f32 %v459, 0.029411765
      %v537 = vmul.f32 %v460, 0.029411765
      %v538 = vmul.f32 %v461, 0.029411765
      %v539 = vmul.f32 %v462, 0.029411765
      %v540 = vmul.f32 %v463, 0.029411765
      %v541 = vmul.f32 %v464, 0.029411765
      %v542 = vmul.f32 %v465, 0.029411765
      %v543 = vmul.f32 %v466, 0.029411765
      %v544 = vmul.f32 %v467, 0.029411765
      %v545 = vmul.f32 %v468, 0.029411765
      %v546 = vmul.f32 %v469, 0.029411765
      %v547 = vmul.f32 %v470, 0.029411765
      %v548 = vmul.f32 %v471, 0.029411765
      %v549 = vmul.f32 %v472, 0.029411765
      %v550 = vmul.f32 %v473, 0.029411765
      %v551 = vmul.f32 %v474, 0.029411765
      %v552 = vmul.f32 %v475, 0.029411765
      %v553 = vmul.f32 %v476, 0.029411765
      %v554 = vmul.f32 %v477, 0.029411765
      %v555 = vmul.f32 %v478, 0.029411765
      %v556 = vmul.f32 %v479, 0.029411765
      %v557 = vmul.f32 %v480, 0.029411765
      %v558 = vmul.f32 %v481, 0.029411765
      %v559 = vmul.f32 %v482, 0.029411765
      %v560 = vmul.f32 %v483, 0.029411765
      %v561 = vmul.f32 %v484, 0.029411765
      %v562 = vmul.f32 %v485, 0.029411765
      %v563 = vmul.f32 %v486, 0.029411765
      %v564 = vmul.f32 %v487, 0.029411765
      %v565 = vmul.f32 %v488, 0.029411765
      %v566 = vmul.f32 %v489, 0.029411765
      %v567 = vmul.f32 %v490, 0.029411765
      %v568 = vmul.f32 %v491, 0.029411765
      %v569 = vmul.f32 %v492, 0.029411765
      %v570 = vmul.f32 %v493, 0.029411765
      %v571 = vmul.f32 %v494, 0.029411765
      %v572 = vmul.f32 %v495, 0.029411765
      %v573 = vmul.f32 %v496, 0.029411765
      %v574 = vmul.f32 %v497, 0.029411765
      %v575 = vmul.f32 %v498, 0.029411765
      %v576 = vmul.f32 %v499, 0.029411765
      %v577 = vmul.f32 %v500, 0.029411765
      %v578 = vmul.f32 %v501, 0.029411765
      %v579 = vmul.f32 %v502, 0.029411765
      %v580 = vmul.f32 %v503, 0.029411765
      %v581 = vmul.f32 %v504, 0.029411765
      %v582 = vfloor.f32 %v505
      %v583 = vfloor.f32 %v506
      %v584 = vfloor.f32 %v507
      %v585 = vfloor.f32 %v508
      %v586 = vfloor.f32 %v509
      %v587 = vfloor.f32 %v510
      %v588 = vfloor.f32 %v511
      %v589 = vfloor.f32 %v512
      %v590 = vfloor.f32 %v513
      %v591 = vfloor.f32 %v514
      %v592 = vfloor.f32 %v515
      %v593 = vfloor.f32 %v516
      %v594 = vfloor.f32 %v517
      %v595 = vfloor.f32 %v518
      %v596 = vfloor.f32 %v519
      %v597 = vfloor.f32 %v520
      %v598 = vfloor.f32 %v521
      %v599 = vfloor.f32 %v522
      %v600 = vfloor.f32 %v523
      %v601 = vfloor.f32 %v524
      %v602 = vfloor.f32 %v525
      %v603 = vfloor.f32 %v526
      %v604 = vfloor.f32 %v527
      %v605 = vfloor.f32 %v528
      %v606 = vfloor.f32 %v529
      %v607 = vfloor.f32 %v530
      %v608 = vfloor.f32 %v531
      %v609 = vfloor.f32 %v532
      %v610 = vfloor.f32 %v533
      %v611 = vfloor.f32 %v534
      %v612 = vfloor.f32 %v535
      %v613 = vfloor.f32 %v536
      %v614 = vfloor.f32 %v537
      %v615 = vfloor.f32 %v538
      %v616 = vfloor.f32 %v539
      %v617 = vfloor.f32 %v540
      %v618 = vfloor.f32 %v541
      %v619 = vfloor.f32 %v542
      %v620 = vfloor.f32 %v543
      %v621 = vfloor.f32 %v544
      %v622 = vfloor.f32 %v545
      %v623 = vfloor.f32 %v546
      %v624 = vfloor.f32 %v547
      %v625 = vfloor.f32 %v548
      %v626 = vfloor.f32 %v549
      %v627 = vfloor.f32 %v550
      %v628 = vfloor.f32 %v551
      %v629 = vfloor.f32 %v552
      %v630 = vfloor.f32 %v553
      %v631 = vfloor.f32 %v554
      %v632 = vfloor.f32 %v555
      %v633 = vfloor.f32 %v556
      %v634 = vfloor.f32 %v557
      %v635 = vfloor.f32 %v558
      %v636 = vfloor.f32 %v559
      %v637 = vfloor.f32 %v560
      %v638 = vfloor.f32 %v561
      %v639 = vfloor.f32 %v562
      %v640 = vfloor.f32 %v563
      %v641 = vfloor.f32 %v564
      %v642 = vfloor.f32 %v565
      %v643 = vfloor.f32 %v566
      %v644 = vfloor.f32 %v567
      %v645 = vfloor.f32 %v568
      %v646 = vfloor.f32 %v569
      %v647 = vfloor.f32 %v570
      %v648 = vfloor.f32 %v571
      %v649 = vfloor.f32 %v572
      %v650 = vfloor.f32 %v573
      %v651 = vfloor.f32 %v574
      %v652 = vfloor.f32 %v575
      %v653 = vfloor.f32 %v576
      %v654 = vfloor.f32 %v577
      %v655 = vfloor.f32 %v578
      %v656 = vfloor.f32 %v579
      %v657 = vfloor.f32 %v580
      %v658 = vfloor.f32 %v581
      %v659 = vmul.f32 %v582, 34.0
      %v660 = vmul.f32 %v583, 34.0
      %v661 = vmul.f32 %v584, 34.0
      %v662 = vmul.f32 %v585, 34.0
      %v663 = vmul.f32 %v586, 34.0
      %v664 = vmul.f32 %v587, 34.0
      %v665 = vmul.f32 %v588, 34.0
      %v666 = vmul.f32 %v589, 34.0
      %v667 = vmul.f32 %v590, 34.0
      %v668 = vmul.f32 %v591, 34.0
      %v669 = vmul.f32 %v592, 34.0
      %v670 = vmul.f32 %v593, 34.0
      %v671 = vmul.f32 %v594, 34.0
      %v672 = vmul.f32 %v595, 34.0
      %v673 = vmul.f32 %v596, 34.0
      %v674 = vmul.f32 %v597, 34.0
      %v675 = vmul.f32 %v598, 34.0
      %v676 = vmul.f32 %v599, 34.0
      %v677 = vmul.f32 %v600, 34.0
      %v678 = vmul.f32 %v601, 34.0
      %v679 = vmul.f32 %v602, 34.0
      %v680 = vmul.f32 %v603, 34.0
      %v681 = vmul.f32 %v604, 34.0
      %v682 = vmul.f32 %v605, 34.0
      %v683 = vmul.f32 %v606, 34.0
      %v684 = vmul.f32 %v607, 34.0
      %v685 = vmul.f32 %v608, 34.0
      %v686 = vmul.f32 %v609, 34.0
      %v687 = vmul.f32 %v610, 34.0
      %v688 = vmul.f32 %v611, 34.0
      %v689 = vmul.f32 %v612, 34.0
      %v690 = vmul.f32 %v613, 34.0
      %v691 = vmul.f32 %v614, 34.0
      %v692 = vmul.f32 %v615, 34.0
      %v693 = vmul.f32 %v616, 34.0
      %v694 = vmul.f32 %v617, 34.0
      %v695 = vmul.f32 %v618, 34.0
      %v696 = vmul.f32 %v619, 34.0
      %v697 = vmul.f32 %v620, 34.0
      %v698 = vmul.f32 %v621, 34.0
      %v699 = vmul.f32 %v622, 34.0
      %v700 = vmul.f32 %v623, 34.0
      %v701 = vmul.f32 %v624, 34.0
      %v702 = vmul.f32 %v625, 34.0
      %v703 = vmul.f32 %v626, 34.0
      %v704 = vmul.f32 %v627, 34.0
      %v705 = vmul.f32 %v628, 34.0
      %v706 = vmul.f32 %v629, 34.0
      %v707 = vmul.f32 %v630, 34.0
      %v708 = vmul.f32 %v631, 34.0
      %v709 = vmul.f32 %v632, 34.0
      %v710 = vmul.f32 %v633, 34.0
      %v711 = vmul.f32 %v634, 34.0
      %v712 = vmul.f32 %v635, 34.0
      %v713 = vmul.f32 %v636, 34.0
      %v714 = vmul.f32 %v637, 34.0
      %v715 = vmul.f32 %v638, 34.0
      %v716 = vmul.f32 %v639, 34.0
      %v717 = vmul.f32 %v640, 34.0
      %v718 = vmul.f32 %v641, 34.0
      %v719 = vmul.f32 %v642, 34.0
      %v720 = vmul.f32 %v643, 34.0
      %v721 = vmul.f32 %v644, 34.0
      %v722 = vmul.f32 %v645, 34.0
      %v723 = vmul.f32 %v646, 34.0
      %v724 = vmul.f32 %v647, 34.0
      %v725 = vmul.f32 %v648, 34.0
      %v726 = vmul.f32 %v649, 34.0
      %v727 = vmul.f32 %v650, 34.0
      %v728 = vmul.f32 %v651, 34.0
      %v729 = vmul.f32 %v652, 34.0
      %v730 = vmul.f32 %v653, 34.0
      %v731 = vmul.f32 %v654, 34.0
      %v732 = vmul.f32 %v655, 34.0
      %v733 = vmul.f32 %v656, 34.0
      %v734 = vmul.f32 %v657, 34.0
      %v735 = vmul.f32 %v658, 34.0
      %v736 = vsub.f32 %v351, %v659
      %v737 = vsub.f32 %v352, %v660
      %v738 = vsub.f32 %v353, %v661
      %v739 = vsub.f32 %v354, %v662
      %v740 = vsub.f32 %v355, %v663
      %v741 = vsub.f32 %v356, %v664
      %v742 = vsub.f32 %v357, %v665
      %v743 = vsub.f32 %v358, %v666
      %v744 = vsub.f32 %v359, %v667
      %v745 = vsub.f32 %v360, %v668
      %v746 = vsub.f32 %v361, %v669
      %v747 = vsub.f32 %v362, %v670
      %v748 = vsub.f32 %v363, %v671
      %v749 = vsub.f32 %v364, %v672
      %v750 = vsub.f32 %v365, %v673
      %v751 = vsub.f32 %v366, %v674
      %v752 = vsub.f32 %v367, %v675
      %v753 = vsub.f32 %v368, %v676
      %v754 = vsub.f32 %v369, %v677
      %v755 = vsub.f32 %v370, %v678
      %v756 = vsub.f32 %v371, %v679
      %v757 = vsub.f32 %v372, %v680
      %v758 = vsub.f32 %v373, %v681
      %v759 = vsub.f32 %v374, %v682
      %v760 = vsub.f32 %v375, %v683
      %v761 = vsub.f32 %v376, %v684
      %v762 = vsub.f32 %v377, %v685
      %v763 = vsub.f32 %v378, %v686
      %v764 = vsub.f32 %v379, %v687
      %v765 = vsub.f32 %v380, %v688
      %v766 = vsub.f32 %v381, %v689
      %v767 = vsub.f32 %v382, %v690
      %v768 = vsub.f32 %v383, %v691
      %v769 = vsub.f32 %v384, %v692
      %v770 = vsub.f32 %v385, %v693
      %v771 = vsub.f32 %v386, %v694
      %v772 = vsub.f32 %v387, %v695
      %v773 = vsub.f32 %v388, %v696
      %v774 = vsub.f32 %v389, %v697
      %v775 = vsub.f32 %v390, %v698
      %v776 = vsub.f32 %v391, %v699
      %v777 = vsub.f32 %v392, %v700
      %v778 = vsub.f32 %v393, %v701
      %v779 = vsub.f32 %v394, %v702
      %v780 = vsub.f32 %v395, %v703
      %v781 = vsub.f32 %v396, %v704
      %v782 = vsub.f32 %v397, %v705
      %v783 = vsub.f32 %v398, %v706
      %v784 = vsub.f32 %v399, %v707
      %v785 = vsub.f32 %v400, %v708
      %v786 = vsub.f32 %v401, %v709
      %v787 = vsub.f32 %v402, %v710
      %v788 = vsub.f32 %v403, %v711
      %v789 = vsub.f32 %v404, %v712
      %v790 = vsub.f32 %v405, %v713
      %v791 = vsub.f32 %v406, %v714
      %v792 = vsub.f32 %v407, %v715
      %v793 = vsub.f32 %v408, %v716
      %v794 = vsub.f32 %v409, %v717
      %v795 = vsub.f32 %v410, %v718
      %v796 = vsub.f32 %v411, %v719
      %v797 = vsub.f32 %v412, %v720
      %v798 = vsub.f32 %v413, %v721
      %v799 = vsub.f32 %v414, %v722
      %v800 = vsub.f32 %v415, %v723
      %v801 = vsub.f32 %v416, %v724
      %v802 = vsub.f32 %v417, %v725
      %v803 = vsub.f32 %v418, %v726
      %v804 = vsub.f32 %v419, %v727
      %v805 = vsub.f32 %v420, %v728
      %v806 = vsub.f32 %v421, %v729
      %v807 = vsub.f32 %v422, %v730
      %v808 = vsub.f32 %v423, %v731
      %v809 = vsub.f32 %v424, %v732
      %v810 = vsub.f32 %v425, %v733
      %v811 = vsub.f32 %v426, %v734
      %v812 = vsub.f32 %v427, %v735
      %s813 = smul.u32 %s19, 16
      %s814 = ssub.s32 %s813, 1
      %s815 = scvt.s32.f32 %s814
      %v816 = vstv %s815
      %v817 = vadd.f32 %v582, %v816
      %v818 = vadd.f32 %v583, %v816
      %v819 = vadd.f32 %v584, %v816
      %v820 = vadd.f32 %v585, %v816
      %v821 = vadd.f32 %v586, %v816
      %v822 = vadd.f32 %v587, %v816
      %v823 = vadd.f32 %v588, %v816
      %v824 = vadd.f32 %v589, %v816
      %v825 = vadd.f32 %v590, %v816
      %v826 = vadd.f32 %v591, %v816
      %v827 = vadd.f32 %v592, %v816
      %v828 = vadd.f32 %v593, %v816
      %v829 = vadd.f32 %v594, %v816
      %v830 = vadd.f32 %v595, %v816
      %v831 = vadd.f32 %v596, %v816
      %v832 = vadd.f32 %v597, %v816
      %v833 = vadd.f32 %v598, %v816
      %v834 = vadd.f32 %v599, %v816
      %v835 = vadd.f32 %v600, %v816
      %v836 = vadd.f32 %v601, %v816
      %v837 = vadd.f32 %v602, %v816
      %v838 = vadd.f32 %v603, %v816
      %v839 = vadd.f32 %v604, %v816
      %v840 = vadd.f32 %v605, %v816
      %v841 = vadd.f32 %v606, %v816
      %v842 = vadd.f32 %v607, %v816
      %v843 = vadd.f32 %v608, %v816
      %v844 = vadd.f32 %v609, %v816
      %v845 = vadd.f32 %v610, %v816
      %v846 = vadd.f32 %v611, %v816
      %v847 = vadd.f32 %v612, %v816
      %v848 = vadd.f32 %v613, %v816
      %v849 = vadd.f32 %v614, %v816
      %v850 = vadd.f32 %v615, %v816
      %v851 = vadd.f32 %v616, %v816
      %v852 = vadd.f32 %v617, %v816
      %v853 = vadd.f32 %v618, %v816
      %v854 = vadd.f32 %v619, %v816
      %v855 = vadd.f32 %v620, %v816
      %v856 = vadd.f32 %v621, %v816
      %v857 = vadd.f32 %v622, %v816
      %v858 = vadd.f32 %v623, %v816
      %v859 = vadd.f32 %v624, %v816
      %v860 = vadd.f32 %v625, %v816
      %v861 = vadd.f32 %v626, %v816
      %v862 = vadd.f32 %v627, %v816
      %v863 = vadd.f32 %v628, %v816
      %v864 = vadd.f32 %v629, %v816
      %v865 = vadd.f32 %v630, %v816
      %v866 = vadd.f32 %v631, %v816
      %v867 = vadd.f32 %v632, %v816
      %v868 = vadd.f32 %v633, %v816
      %v869 = vadd.f32 %v634, %v816
      %v870 = vadd.f32 %v635, %v816
      %v871 = vadd.f32 %v636, %v816
      %v872 = vadd.f32 %v637, %v816
      %v873 = vadd.f32 %v638, %v816
      %v874 = vadd.f32 %v639, %v816
      %v875 = vadd.f32 %v640, %v816
      %v876 = vadd.f32 %v641, %v816
      %v877 = vadd.f32 %v642, %v816
      %v878 = vadd.f32 %v643, %v816
      %v879 = vadd.f32 %v644, %v816
      %v880 = vadd.f32 %v645, %v816
      %v881 = vadd.f32 %v646, %v816
      %v882 = vadd.f32 %v647, %v816
      %v883 = vadd.f32 %v648, %v816
      %v884 = vadd.f32 %v649, %v816
      %v885 = vadd.f32 %v650, %v816
      %v886 = vadd.f32 %v651, %v816
      %v887 = vadd.f32 %v652, %v816
      %v888 = vadd.f32 %v653, %v816
      %v889 = vadd.f32 %v654, %v816
      %v890 = vadd.f32 %v655, %v816
      %v891 = vadd.f32 %v656, %v816
      %v892 = vadd.f32 %v657, %v816
      %v893 = vadd.f32 %v658, %v816
      %v894 = vsub.f32 %v736, 1.0
      %v895 = vsub.f32 %v737, 1.0
      %v896 = vsub.f32 %v738, 1.0
      %v897 = vsub.f32 %v739, 1.0
      %v898 = vsub.f32 %v740, 1.0
      %v899 = vsub.f32 %v741, 1.0
      %v900 = vsub.f32 %v742, 1.0
      %v901 = vsub.f32 %v743, 1.0
      %v902 = vsub.f32 %v744, 1.0
      %v903 = vsub.f32 %v745, 1.0
      %v904 = vsub.f32 %v746, 1.0
      %v905 = vsub.f32 %v747, 1.0
      %v906 = vsub.f32 %v748, 1.0
      %v907 = vsub.f32 %v749, 1.0
      %v908 = vsub.f32 %v750, 1.0
      %v909 = vsub.f32 %v751, 1.0
      %v910 = vsub.f32 %v752, 1.0
      %v911 = vsub.f32 %v753, 1.0
      %v912 = vsub.f32 %v754, 1.0
      %v913 = vsub.f32 %v755, 1.0
      %v914 = vsub.f32 %v756, 1.0
      %v915 = vsub.f32 %v757, 1.0
      %v916 = vsub.f32 %v758, 1.0
      %v917 = vsub.f32 %v759, 1.0
      %v918 = vsub.f32 %v760, 1.0
      %v919 = vsub.f32 %v761, 1.0
      %v920 = vsub.f32 %v762, 1.0
      %v921 = vsub.f32 %v763, 1.0
      %v922 = vsub.f32 %v764, 1.0
      %v923 = vsub.f32 %v765, 1.0
      %v924 = vsub.f32 %v766, 1.0
      %v925 = vsub.f32 %v767, 1.0
      %v926 = vsub.f32 %v768, 1.0
      %v927 = vsub.f32 %v769, 1.0
      %v928 = vsub.f32 %v770, 1.0
      %v929 = vsub.f32 %v771, 1.0
      %v930 = vsub.f32 %v772, 1.0
      %v931 = vsub.f32 %v773, 1.0
      %v932 = vsub.f32 %v774, 1.0
      %v933 = vsub.f32 %v775, 1.0
      %v934 = vsub.f32 %v776, 1.0
      %v935 = vsub.f32 %v777, 1.0
      %v936 = vsub.f32 %v778, 1.0
      %v937 = vsub.f32 %v779, 1.0
      %v938 = vsub.f32 %v780, 1.0
      %v939 = vsub.f32 %v781, 1.0
      %v940 = vsub.f32 %v782, 1.0
      %v941 = vsub.f32 %v783, 1.0
      %v942 = vsub.f32 %v784, 1.0
      %v943 = vsub.f32 %v785, 1.0
      %v944 = vsub.f32 %v786, 1.0
      %v945 = vsub.f32 %v787, 1.0
      %v946 = vsub.f32 %v788, 1.0
      %v947 = vsub.f32 %v789, 1.0
      %v948 = vsub.f32 %v790, 1.0
      %v949 = vsub.f32 %v791, 1.0
      %v950 = vsub.f32 %v792, 1.0
      %v951 = vsub.f32 %v793, 1.0
      %v952 = vsub.f32 %v794, 1.0
      %v953 = vsub.f32 %v795, 1.0
      %v954 = vsub.f32 %v796, 1.0
      %v955 = vsub.f32 %v797, 1.0
      %v956 = vsub.f32 %v798, 1.0
      %v957 = vsub.f32 %v799, 1.0
      %v958 = vsub.f32 %v800, 1.0
      %v959 = vsub.f32 %v801, 1.0
      %v960 = vsub.f32 %v802, 1.0
      %v961 = vsub.f32 %v803, 1.0
      %v962 = vsub.f32 %v804, 1.0
      %v963 = vsub.f32 %v805, 1.0
      %v964 = vsub.f32 %v806, 1.0
      %v965 = vsub.f32 %v807, 1.0
      %v966 = vsub.f32 %v808, 1.0
      %v967 = vsub.f32 %v809, 1.0
      %v968 = vsub.f32 %v810, 1.0
      %v969 = vsub.f32 %v811, 1.0
      %v970 = vsub.f32 %v812, 1.0
      %v971 = vadd.f32 %v817, 0.5
      %v972 = vadd.f32 %v818, 0.5
      %v973 = vadd.f32 %v819, 0.5
      %v974 = vadd.f32 %v820, 0.5
      %v975 = vadd.f32 %v821, 0.5
      %v976 = vadd.f32 %v822, 0.5
      %v977 = vadd.f32 %v823, 0.5
      %v978 = vadd.f32 %v824, 0.5
      %v979 = vadd.f32 %v825, 0.5
      %v980 = vadd.f32 %v826, 0.5
      %v981 = vadd.f32 %v827, 0.5
      %v982 = vadd.f32 %v828, 0.5
      %v983 = vadd.f32 %v829, 0.5
      %v984 = vadd.f32 %v830, 0.5
      %v985 = vadd.f32 %v831, 0.5
      %v986 = vadd.f32 %v832, 0.5
      %v987 = vadd.f32 %v833, 0.5
      %v988 = vadd.f32 %v834, 0.5
      %v989 = vadd.f32 %v835, 0.5
      %v990 = vadd.f32 %v836, 0.5
      %v991 = vadd.f32 %v837, 0.5
      %v992 = vadd.f32 %v838, 0.5
      %v993 = vadd.f32 %v839, 0.5
      %v994 = vadd.f32 %v840, 0.5
      %v995 = vadd.f32 %v841, 0.5
      %v996 = vadd.f32 %v842, 0.5
      %v997 = vadd.f32 %v843, 0.5
      %v998 = vadd.f32 %v844, 0.5
      %v999 = vadd.f32 %v845, 0.5
      %v1000 = vadd.f32 %v846, 0.5
      %v1001 = vadd.f32 %v847, 0.5
      %v1002 = vadd.f32 %v848, 0.5
      %v1003 = vadd.f32 %v849, 0.5
      %v1004 = vadd.f32 %v850, 0.5
      %v1005 = vadd.f32 %v851, 0.5
      %v1006 = vadd.f32 %v852, 0.5
      %v1007 = vadd.f32 %v853, 0.5
      %v1008 = vadd.f32 %v854, 0.5
      %v1009 = vadd.f32 %v855, 0.5
      %v1010 = vadd.f32 %v856, 0.5
      %v1011 = vadd.f32 %v857, 0.5
      %v1012 = vadd.f32 %v858, 0.5
      %v1013 = vadd.f32 %v859, 0.5
      %v1014 = vadd.f32 %v860, 0.5
      %v1015 = vadd.f32 %v861, 0.5
      %v1016 = vadd.f32 %v862, 0.5
      %v1017 = vadd.f32 %v863, 0.5
      %v1018 = vadd.f32 %v864, 0.5
      %v1019 = vadd.f32 %v865, 0.5
      %v1020 = vadd.f32 %v866, 0.5
      %v1021 = vadd.f32 %v867, 0.5
      %v1022 = vadd.f32 %v868, 0.5
      %v1023 = vadd.f32 %v869, 0.5
      %v1024 = vadd.f32 %v870, 0.5
      %v1025 = vadd.f32 %v871, 0.5
      %v1026 = vadd.f32 %v872, 0.5
      %v1027 = vadd.f32 %v873, 0.5
      %v1028 = vadd.f32 %v874, 0.5
      %v1029 = vadd.f32 %v875, 0.5
      %v1030 = vadd.f32 %v876, 0.5
      %v1031 = vadd.f32 %v877, 0.5
      %v1032 = vadd.f32 %v878, 0.5
      %v1033 = vadd.f32 %v879, 0.5
      %v1034 = vadd.f32 %v880, 0.5
      %v1035 = vadd.f32 %v881, 0.5
      %v1036 = vadd.f32 %v882, 0.5
      %v1037 = vadd.f32 %v883, 0.5
      %v1038 = vadd.f32 %v884, 0.5
      %v1039 = vadd.f32 %v885, 0.5
      %v1040 = vadd.f32 %v886, 0.5
      %v1041 = vadd.f32 %v887, 0.5
      %v1042 = vadd.f32 %v888, 0.5
      %v1043 = vadd.f32 %v889, 0.5
      %v1044 = vadd.f32 %v890, 0.5
      %v1045 = vadd.f32 %v891, 0.5
      %v1046 = vadd.f32 %v892, 0.5
      %v1047 = vadd.f32 %v893, 0.5
      %v1048 = vmul.f32 %v971, 0.5
      %v1049 = vmul.f32 %v972, 0.5
      %v1050 = vmul.f32 %v973, 0.5
      %v1051 = vmul.f32 %v974, 0.5
      %v1052 = vmul.f32 %v975, 0.5
      %v1053 = vmul.f32 %v976, 0.5
      %v1054 = vmul.f32 %v977, 0.5
      %v1055 = vmul.f32 %v978, 0.5
      %v1056 = vmul.f32 %v979, 0.5
      %v1057 = vmul.f32 %v980, 0.5
      %v1058 = vmul.f32 %v981, 0.5
      %v1059 = vmul.f32 %v982, 0.5
      %v1060 = vmul.f32 %v983, 0.5
      %v1061 = vmul.f32 %v984, 0.5
      %v1062 = vmul.f32 %v985, 0.5
      %v1063 = vmul.f32 %v986, 0.5
      %v1064 = vmul.f32 %v987, 0.5
      %v1065 = vmul.f32 %v988, 0.5
      %v1066 = vmul.f32 %v989, 0.5
      %v1067 = vmul.f32 %v990, 0.5
      %v1068 = vmul.f32 %v991, 0.5
      %v1069 = vmul.f32 %v992, 0.5
      %v1070 = vmul.f32 %v993, 0.5
      %v1071 = vmul.f32 %v994, 0.5
      %v1072 = vmul.f32 %v995, 0.5
      %v1073 = vmul.f32 %v996, 0.5
      %v1074 = vmul.f32 %v997, 0.5
      %v1075 = vmul.f32 %v998, 0.5
      %v1076 = vmul.f32 %v999, 0.5
      %v1077 = vmul.f32 %v1000, 0.5
      %v1078 = vmul.f32 %v1001, 0.5
      %v1079 = vmul.f32 %v1002, 0.5
      %v1080 = vmul.f32 %v1003, 0.5
      %v1081 = vmul.f32 %v1004, 0.5
      %v1082 = vmul.f32 %v1005, 0.5
      %v1083 = vmul.f32 %v1006, 0.5
      %v1084 = vmul.f32 %v1007, 0.5
      %v1085 = vmul.f32 %v1008, 0.5
      %v1086 = vmul.f32 %v1009, 0.5
      %v1087 = vmul.f32 %v1010, 0.5
      %v1088 = vmul.f32 %v1011, 0.5
      %v1089 = vmul.f32 %v1012, 0.5
      %v1090 = vmul.f32 %v1013, 0.5
      %v1091 = vmul.f32 %v1014, 0.5
      %v1092 = vmul.f32 %v1015, 0.5
      %v1093 = vmul.f32 %v1016, 0.5
      %v1094 = vmul.f32 %v1017, 0.5
      %v1095 = vmul.f32 %v1018, 0.5
      %v1096 = vmul.f32 %v1019, 0.5
      %v1097 = vmul.f32 %v1020, 0.5
      %v1098 = vmul.f32 %v1021, 0.5
      %v1099 = vmul.f32 %v1022, 0.5
      %v1100 = vmul.f32 %v1023, 0.5
      %v1101 = vmul.f32 %v1024, 0.5
      %v1102 = vmul.f32 %v1025, 0.5
      %v1103 = vmul.f32 %v1026, 0.5
      %v1104 = vmul.f32 %v1027, 0.5
      %v1105 = vmul.f32 %v1028, 0.5
      %v1106 = vmul.f32 %v1029, 0.5
      %v1107 = vmul.f32 %v1030, 0.5
      %v1108 = vmul.f32 %v1031, 0.5
      %v1109 = vmul.f32 %v1032, 0.5
      %v1110 = vmul.f32 %v1033, 0.5
      %v1111 = vmul.f32 %v1034, 0.5
      %v1112 = vmul.f32 %v1035, 0.5
      %v1113 = vmul.f32 %v1036, 0.5
      %v1114 = vmul.f32 %v1037, 0.5
      %v1115 = vmul.f32 %v1038, 0.5
      %v1116 = vmul.f32 %v1039, 0.5
      %v1117 = vmul.f32 %v1040, 0.5
      %v1118 = vmul.f32 %v1041, 0.5
      %v1119 = vmul.f32 %v1042, 0.5
      %v1120 = vmul.f32 %v1043, 0.5
      %v1121 = vmul.f32 %v1044, 0.5
      %v1122 = vmul.f32 %v1045, 0.5
      %v1123 = vmul.f32 %v1046, 0.5
      %v1124 = vmul.f32 %v1047, 0.5
      %v1125 = vadd.f32 %v1048, 0.001
      %v1126 = vadd.f32 %v1049, 0.001
      %v1127 = vadd.f32 %v1050, 0.001
      %v1128 = vadd.f32 %v1051, 0.001
      %v1129 = vadd.f32 %v1052, 0.001
      %v1130 = vadd.f32 %v1053, 0.001
      %v1131 = vadd.f32 %v1054, 0.001
      %v1132 = vadd.f32 %v1055, 0.001
      %v1133 = vadd.f32 %v1056, 0.001
      %v1134 = vadd.f32 %v1057, 0.001
      %v1135 = vadd.f32 %v1058, 0.001
      %v1136 = vadd.f32 %v1059, 0.001
      %v1137 = vadd.f32 %v1060, 0.001
      %v1138 = vadd.f32 %v1061, 0.001
      %v1139 = vadd.f32 %v1062, 0.001
      %v1140 = vadd.f32 %v1063, 0.001
      %v1141 = vadd.f32 %v1064, 0.001
      %v1142 = vadd.f32 %v1065, 0.001
      %v1143 = vadd.f32 %v1066, 0.001
      %v1144 = vadd.f32 %v1067, 0.001
      %v1145 = vadd.f32 %v1068, 0.001
      %v1146 = vadd.f32 %v1069, 0.001
      %v1147 = vadd.f32 %v1070, 0.001
      %v1148 = vadd.f32 %v1071, 0.001
      %v1149 = vadd.f32 %v1072, 0.001
      %v1150 = vadd.f32 %v1073, 0.001
      %v1151 = vadd.f32 %v1074, 0.001
      %v1152 = vadd.f32 %v1075, 0.001
      %v1153 = vadd.f32 %v1076, 0.001
      %v1154 = vadd.f32 %v1077, 0.001
      %v1155 = vadd.f32 %v1078, 0.001
      %v1156 = vadd.f32 %v1079, 0.001
      %v1157 = vadd.f32 %v1080, 0.001
      %v1158 = vadd.f32 %v1081, 0.001
      %v1159 = vadd.f32 %v1082, 0.001
      %v1160 = vadd.f32 %v1083, 0.001
      %v1161 = vadd.f32 %v1084, 0.001
      %v1162 = vadd.f32 %v1085, 0.001
      %v1163 = vadd.f32 %v1086, 0.001
      %v1164 = vadd.f32 %v1087, 0.001
      %v1165 = vadd.f32 %v1088, 0.001
      %v1166 = vadd.f32 %v1089, 0.001
      %v1167 = vadd.f32 %v1090, 0.001
      %v1168 = vadd.f32 %v1091, 0.001
      %v1169 = vadd.f32 %v1092, 0.001
      %v1170 = vadd.f32 %v1093, 0.001
      %v1171 = vadd.f32 %v1094, 0.001
      %v1172 = vadd.f32 %v1095, 0.001
      %v1173 = vadd.f32 %v1096, 0.001
      %v1174 = vadd.f32 %v1097, 0.001
      %v1175 = vadd.f32 %v1098, 0.001
      %v1176 = vadd.f32 %v1099, 0.001
      %v1177 = vadd.f32 %v1100, 0.001
      %v1178 = vadd.f32 %v1101, 0.001
      %v1179 = vadd.f32 %v1102, 0.001
      %v1180 = vadd.f32 %v1103, 0.001
      %v1181 = vadd.f32 %v1104, 0.001
      %v1182 = vadd.f32 %v1105, 0.001
      %v1183 = vadd.f32 %v1106, 0.001
      %v1184 = vadd.f32 %v1107, 0.001
      %v1185 = vadd.f32 %v1108, 0.001
      %v1186 = vadd.f32 %v1109, 0.001
      %v1187 = vadd.f32 %v1110, 0.001
      %v1188 = vadd.f32 %v1111, 0.001
      %v1189 = vadd.f32 %v1112, 0.001
      %v1190 = vadd.f32 %v1113, 0.001
      %v1191 = vadd.f32 %v1114, 0.001
      %v1192 = vadd.f32 %v1115, 0.001
      %v1193 = vadd.f32 %v1116, 0.001
      %v1194 = vadd.f32 %v1117, 0.001
      %v1195 = vadd.f32 %v1118, 0.001
      %v1196 = vadd.f32 %v1119, 0.001
      %v1197 = vadd.f32 %v1120, 0.001
      %v1198 = vadd.f32 %v1121, 0.001
      %v1199 = vadd.f32 %v1122, 0.001
      %v1200 = vadd.f32 %v1123, 0.001
      %v1201 = vadd.f32 %v1124, 0.001
      %v1202 = vfloor.f32 %v1125
      %v1203 = vfloor.f32 %v1126
      %v1204 = vfloor.f32 %v1127
      %v1205 = vfloor.f32 %v1128
      %v1206 = vfloor.f32 %v1129
      %v1207 = vfloor.f32 %v1130
      %v1208 = vfloor.f32 %v1131
      %v1209 = vfloor.f32 %v1132
      %v1210 = vfloor.f32 %v1133
      %v1211 = vfloor.f32 %v1134
      %v1212 = vfloor.f32 %v1135
      %v1213 = vfloor.f32 %v1136
      %v1214 = vfloor.f32 %v1137
      %v1215 = vfloor.f32 %v1138
      %v1216 = vfloor.f32 %v1139
      %v1217 = vfloor.f32 %v1140
      %v1218 = vfloor.f32 %v1141
      %v1219 = vfloor.f32 %v1142
      %v1220 = vfloor.f32 %v1143
      %v1221 = vfloor.f32 %v1144
      %v1222 = vfloor.f32 %v1145
      %v1223 = vfloor.f32 %v1146
      %v1224 = vfloor.f32 %v1147
      %v1225 = vfloor.f32 %v1148
      %v1226 = vfloor.f32 %v1149
      %v1227 = vfloor.f32 %v1150
      %v1228 = vfloor.f32 %v1151
      %v1229 = vfloor.f32 %v1152
      %v1230 = vfloor.f32 %v1153
      %v1231 = vfloor.f32 %v1154
      %v1232 = vfloor.f32 %v1155
      %v1233 = vfloor.f32 %v1156
      %v1234 = vfloor.f32 %v1157
      %v1235 = vfloor.f32 %v1158
      %v1236 = vfloor.f32 %v1159
      %v1237 = vfloor.f32 %v1160
      %v1238 = vfloor.f32 %v1161
      %v1239 = vfloor.f32 %v1162
      %v1240 = vfloor.f32 %v1163
      %v1241 = vfloor.f32 %v1164
      %v1242 = vfloor.f32 %v1165
      %v1243 = vfloor.f32 %v1166
      %v1244 = vfloor.f32 %v1167
      %v1245 = vfloor.f32 %v1168
      %v1246 = vfloor.f32 %v1169
      %v1247 = vfloor.f32 %v1170
      %v1248 = vfloor.f32 %v1171
      %v1249 = vfloor.f32 %v1172
      %v1250 = vfloor.f32 %v1173
      %v1251 = vfloor.f32 %v1174
      %v1252 = vfloor.f32 %v1175
      %v1253 = vfloor.f32 %v1176
      %v1254 = vfloor.f32 %v1177
      %v1255 = vfloor.f32 %v1178
      %v1256 = vfloor.f32 %v1179
      %v1257 = vfloor.f32 %v1180
      %v1258 = vfloor.f32 %v1181
      %v1259 = vfloor.f32 %v1182
      %v1260 = vfloor.f32 %v1183
      %v1261 = vfloor.f32 %v1184
      %v1262 = vfloor.f32 %v1185
      %v1263 = vfloor.f32 %v1186
      %v1264 = vfloor.f32 %v1187
      %v1265 = vfloor.f32 %v1188
      %v1266 = vfloor.f32 %v1189
      %v1267 = vfloor.f32 %v1190
      %v1268 = vfloor.f32 %v1191
      %v1269 = vfloor.f32 %v1192
      %v1270 = vfloor.f32 %v1193
      %v1271 = vfloor.f32 %v1194
      %v1272 = vfloor.f32 %v1195
      %v1273 = vfloor.f32 %v1196
      %v1274 = vfloor.f32 %v1197
      %v1275 = vfloor.f32 %v1198
      %v1276 = vfloor.f32 %v1199
      %v1277 = vfloor.f32 %v1200
      %v1278 = vfloor.f32 %v1201
      %v1279 = vsub.f32 %v1048, %v1202
      %v1280 = vsub.f32 %v1049, %v1203
      %v1281 = vsub.f32 %v1050, %v1204
      %v1282 = vsub.f32 %v1051, %v1205
      %v1283 = vsub.f32 %v1052, %v1206
      %v1284 = vsub.f32 %v1053, %v1207
      %v1285 = vsub.f32 %v1054, %v1208
      %v1286 = vsub.f32 %v1055, %v1209
      %v1287 = vsub.f32 %v1056, %v1210
      %v1288 = vsub.f32 %v1057, %v1211
      %v1289 = vsub.f32 %v1058, %v1212
      %v1290 = vsub.f32 %v1059, %v1213
      %v1291 = vsub.f32 %v1060, %v1214
      %v1292 = vsub.f32 %v1061, %v1215
      %v1293 = vsub.f32 %v1062, %v1216
      %v1294 = vsub.f32 %v1063, %v1217
      %v1295 = vsub.f32 %v1064, %v1218
      %v1296 = vsub.f32 %v1065, %v1219
      %v1297 = vsub.f32 %v1066, %v1220
      %v1298 = vsub.f32 %v1067, %v1221
      %v1299 = vsub.f32 %v1068, %v1222
      %v1300 = vsub.f32 %v1069, %v1223
      %v1301 = vsub.f32 %v1070, %v1224
      %v1302 = vsub.f32 %v1071, %v1225
      %v1303 = vsub.f32 %v1072, %v1226
      %v1304 = vsub.f32 %v1073, %v1227
      %v1305 = vsub.f32 %v1074, %v1228
      %v1306 = vsub.f32 %v1075, %v1229
      %v1307 = vsub.f32 %v1076, %v1230
      %v1308 = vsub.f32 %v1077, %v1231
      %v1309 = vsub.f32 %v1078, %v1232
      %v1310 = vsub.f32 %v1079, %v1233
      %v1311 = vsub.f32 %v1080, %v1234
      %v1312 = vsub.f32 %v1081, %v1235
      %v1313 = vsub.f32 %v1082, %v1236
      %v1314 = vsub.f32 %v1083, %v1237
      %v1315 = vsub.f32 %v1084, %v1238
      %v1316 = vsub.f32 %v1085, %v1239
      %v1317 = vsub.f32 %v1086, %v1240
      %v1318 = vsub.f32 %v1087, %v1241
      %v1319 = vsub.f32 %v1088, %v1242
      %v1320 = vsub.f32 %v1089, %v1243
      %v1321 = vsub.f32 %v1090, %v1244
      %v1322 = vsub.f32 %v1091, %v1245
      %v1323 = vsub.f32 %v1092, %v1246
      %v1324 = vsub.f32 %v1093, %v1247
      %v1325 = vsub.f32 %v1094, %v1248
      %v1326 = vsub.f32 %v1095, %v1249
      %v1327 = vsub.f32 %v1096, %v1250
      %v1328 = vsub.f32 %v1097, %v1251
      %v1329 = vsub.f32 %v1098, %v1252
      %v1330 = vsub.f32 %v1099, %v1253
      %v1331 = vsub.f32 %v1100, %v1254
      %v1332 = vsub.f32 %v1101, %v1255
      %v1333 = vsub.f32 %v1102, %v1256
      %v1334 = vsub.f32 %v1103, %v1257
      %v1335 = vsub.f32 %v1104, %v1258
      %v1336 = vsub.f32 %v1105, %v1259
      %v1337 = vsub.f32 %v1106, %v1260
      %v1338 = vsub.f32 %v1107, %v1261
      %v1339 = vsub.f32 %v1108, %v1262
      %v1340 = vsub.f32 %v1109, %v1263
      %v1341 = vsub.f32 %v1110, %v1264
      %v1342 = vsub.f32 %v1111, %v1265
      %v1343 = vsub.f32 %v1112, %v1266
      %v1344 = vsub.f32 %v1113, %v1267
      %v1345 = vsub.f32 %v1114, %v1268
      %v1346 = vsub.f32 %v1115, %v1269
      %v1347 = vsub.f32 %v1116, %v1270
      %v1348 = vsub.f32 %v1117, %v1271
      %v1349 = vsub.f32 %v1118, %v1272
      %v1350 = vsub.f32 %v1119, %v1273
      %v1351 = vsub.f32 %v1120, %v1274
      %v1352 = vsub.f32 %v1121, %v1275
      %v1353 = vsub.f32 %v1122, %v1276
      %v1354 = vsub.f32 %v1123, %v1277
      %v1355 = vsub.f32 %v1124, %v1278
      %v1356 = vsub.f32 %v1279, 0.5
      %v1357 = vsub.f32 %v1280, 0.5
      %v1358 = vsub.f32 %v1281, 0.5
      %v1359 = vsub.f32 %v1282, 0.5
      %v1360 = vsub.f32 %v1283, 0.5
      %v1361 = vsub.f32 %v1284, 0.5
      %v1362 = vsub.f32 %v1285, 0.5
      %v1363 = vsub.f32 %v1286, 0.5
      %v1364 = vsub.f32 %v1287, 0.5
      %v1365 = vsub.f32 %v1288, 0.5
      %v1366 = vsub.f32 %v1289, 0.5
      %v1367 = vsub.f32 %v1290, 0.5
      %v1368 = vsub.f32 %v1291, 0.5
      %v1369 = vsub.f32 %v1292, 0.5
      %v1370 = vsub.f32 %v1293, 0.5
      %v1371 = vsub.f32 %v1294, 0.5
      %v1372 = vsub.f32 %v1295, 0.5
      %v1373 = vsub.f32 %v1296, 0.5
      %v1374 = vsub.f32 %v1297, 0.5
      %v1375 = vsub.f32 %v1298, 0.5
      %v1376 = vsub.f32 %v1299, 0.5
      %v1377 = vsub.f32 %v1300, 0.5
      %v1378 = vsub.f32 %v1301, 0.5
      %v1379 = vsub.f32 %v1302, 0.5
      %v1380 = vsub.f32 %v1303, 0.5
      %v1381 = vsub.f32 %v1304, 0.5
      %v1382 = vsub.f32 %v1305, 0.5
      %v1383 = vsub.f32 %v1306, 0.5
      %v1384 = vsub.f32 %v1307, 0.5
      %v1385 = vsub.f32 %v1308, 0.5
      %v1386 = vsub.f32 %v1309, 0.5
      %v1387 = vsub.f32 %v1310, 0.5
      %v1388 = vsub.f32 %v1311, 0.5
      %v1389 = vsub.f32 %v1312, 0.5
      %v1390 = vsub.f32 %v1313, 0.5
      %v1391 = vsub.f32 %v1314, 0.5
      %v1392 = vsub.f32 %v1315, 0.5
      %v1393 = vsub.f32 %v1316, 0.5
      %v1394 = vsub.f32 %v1317, 0.5
      %v1395 = vsub.f32 %v1318, 0.5
      %v1396 = vsub.f32 %v1319, 0.5
      %v1397 = vsub.f32 %v1320, 0.5
      %v1398 = vsub.f32 %v1321, 0.5
      %v1399 = vsub.f32 %v1322, 0.5
      %v1400 = vsub.f32 %v1323, 0.5
      %v1401 = vsub.f32 %v1324, 0.5
      %v1402 = vsub.f32 %v1325, 0.5
      %v1403 = vsub.f32 %v1326, 0.5
      %v1404 = vsub.f32 %v1327, 0.5
      %v1405 = vsub.f32 %v1328, 0.5
      %v1406 = vsub.f32 %v1329, 0.5
      %v1407 = vsub.f32 %v1330, 0.5
      %v1408 = vsub.f32 %v1331, 0.5
      %v1409 = vsub.f32 %v1332, 0.5
      %v1410 = vsub.f32 %v1333, 0.5
      %v1411 = vsub.f32 %v1334, 0.5
      %v1412 = vsub.f32 %v1335, 0.5
      %v1413 = vsub.f32 %v1336, 0.5
      %v1414 = vsub.f32 %v1337, 0.5
      %v1415 = vsub.f32 %v1338, 0.5
      %v1416 = vsub.f32 %v1339, 0.5
      %v1417 = vsub.f32 %v1340, 0.5
      %v1418 = vsub.f32 %v1341, 0.5
      %v1419 = vsub.f32 %v1342, 0.5
      %v1420 = vsub.f32 %v1343, 0.5
      %v1421 = vsub.f32 %v1344, 0.5
      %v1422 = vsub.f32 %v1345, 0.5
      %v1423 = vsub.f32 %v1346, 0.5
      %v1424 = vsub.f32 %v1347, 0.5
      %v1425 = vsub.f32 %v1348, 0.5
      %v1426 = vsub.f32 %v1349, 0.5
      %v1427 = vsub.f32 %v1350, 0.5
      %v1428 = vsub.f32 %v1351, 0.5
      %v1429 = vsub.f32 %v1352, 0.5
      %v1430 = vsub.f32 %v1353, 0.5
      %v1431 = vsub.f32 %v1354, 0.5
      %v1432 = vsub.f32 %v1355, 0.5
      %v1433 = vadd.f32 %v894, 0.5
      %v1434 = vadd.f32 %v895, 0.5
      %v1435 = vadd.f32 %v896, 0.5
      %v1436 = vadd.f32 %v897, 0.5
      %v1437 = vadd.f32 %v898, 0.5
      %v1438 = vadd.f32 %v899, 0.5
      %v1439 = vadd.f32 %v900, 0.5
      %v1440 = vadd.f32 %v901, 0.5
      %v1441 = vadd.f32 %v902, 0.5
      %v1442 = vadd.f32 %v903, 0.5
      %v1443 = vadd.f32 %v904, 0.5
      %v1444 = vadd.f32 %v905, 0.5
      %v1445 = vadd.f32 %v906, 0.5
      %v1446 = vadd.f32 %v907, 0.5
      %v1447 = vadd.f32 %v908, 0.5
      %v1448 = vadd.f32 %v909, 0.5
      %v1449 = vadd.f32 %v910, 0.5
      %v1450 = vadd.f32 %v911, 0.5
      %v1451 = vadd.f32 %v912, 0.5
      %v1452 = vadd.f32 %v913, 0.5
      %v1453 = vadd.f32 %v914, 0.5
      %v1454 = vadd.f32 %v915, 0.5
      %v1455 = vadd.f32 %v916, 0.5
      %v1456 = vadd.f32 %v917, 0.5
      %v1457 = vadd.f32 %v918, 0.5
      %v1458 = vadd.f32 %v919, 0.5
      %v1459 = vadd.f32 %v920, 0.5
      %v1460 = vadd.f32 %v921, 0.5
      %v1461 = vadd.f32 %v922, 0.5
      %v1462 = vadd.f32 %v923, 0.5
      %v1463 = vadd.f32 %v924, 0.5
      %v1464 = vadd.f32 %v925, 0.5
      %v1465 = vadd.f32 %v926, 0.5
      %v1466 = vadd.f32 %v927, 0.5
      %v1467 = vadd.f32 %v928, 0.5
      %v1468 = vadd.f32 %v929, 0.5
      %v1469 = vadd.f32 %v930, 0.5
      %v1470 = vadd.f32 %v931, 0.5
      %v1471 = vadd.f32 %v932, 0.5
      %v1472 = vadd.f32 %v933, 0.5
      %v1473 = vadd.f32 %v934, 0.5
      %v1474 = vadd.f32 %v935, 0.5
      %v1475 = vadd.f32 %v936, 0.5
      %v1476 = vadd.f32 %v937, 0.5
      %v1477 = vadd.f32 %v938, 0.5
      %v1478 = vadd.f32 %v939, 0.5
      %v1479 = vadd.f32 %v940, 0.5
      %v1480 = vadd.f32 %v941, 0.5
      %v1481 = vadd.f32 %v942, 0.5
      %v1482 = vadd.f32 %v943, 0.5
      %v1483 = vadd.f32 %v944, 0.5
      %v1484 = vadd.f32 %v945, 0.5
      %v1485 = vadd.f32 %v946, 0.5
      %v1486 = vadd.f32 %v947, 0.5
      %v1487 = vadd.f32 %v948, 0.5
      %v1488 = vadd.f32 %v949, 0.5
      %v1489 = vadd.f32 %v950, 0.5
      %v1490 = vadd.f32 %v951, 0.5
      %v1491 = vadd.f32 %v952, 0.5
      %v1492 = vadd.f32 %v953, 0.5
      %v1493 = vadd.f32 %v954, 0.5
      %v1494 = vadd.f32 %v955, 0.5
      %v1495 = vadd.f32 %v956, 0.5
      %v1496 = vadd.f32 %v957, 0.5
      %v1497 = vadd.f32 %v958, 0.5
      %v1498 = vadd.f32 %v959, 0.5
      %v1499 = vadd.f32 %v960, 0.5
      %v1500 = vadd.f32 %v961, 0.5
      %v1501 = vadd.f32 %v962, 0.5
      %v1502 = vadd.f32 %v963, 0.5
      %v1503 = vadd.f32 %v964, 0.5
      %v1504 = vadd.f32 %v965, 0.5
      %v1505 = vadd.f32 %v966, 0.5
      %v1506 = vadd.f32 %v967, 0.5
      %v1507 = vadd.f32 %v968, 0.5
      %v1508 = vadd.f32 %v969, 0.5
      %v1509 = vadd.f32 %v970, 0.5
      %v1510 = vmul.f32 %v1433, 0.5
      %v1511 = vmul.f32 %v1434, 0.5
      %v1512 = vmul.f32 %v1435, 0.5
      %v1513 = vmul.f32 %v1436, 0.5
      %v1514 = vmul.f32 %v1437, 0.5
      %v1515 = vmul.f32 %v1438, 0.5
      %v1516 = vmul.f32 %v1439, 0.5
      %v1517 = vmul.f32 %v1440, 0.5
      %v1518 = vmul.f32 %v1441, 0.5
      %v1519 = vmul.f32 %v1442, 0.5
      %v1520 = vmul.f32 %v1443, 0.5
      %v1521 = vmul.f32 %v1444, 0.5
      %v1522 = vmul.f32 %v1445, 0.5
      %v1523 = vmul.f32 %v1446, 0.5
      %v1524 = vmul.f32 %v1447, 0.5
      %v1525 = vmul.f32 %v1448, 0.5
      %v1526 = vmul.f32 %v1449, 0.5
      %v1527 = vmul.f32 %v1450, 0.5
      %v1528 = vmul.f32 %v1451, 0.5
      %v1529 = vmul.f32 %v1452, 0.5
      %v1530 = vmul.f32 %v1453, 0.5
      %v1531 = vmul.f32 %v1454, 0.5
      %v1532 = vmul.f32 %v1455, 0.5
      %v1533 = vmul.f32 %v1456, 0.5
      %v1534 = vmul.f32 %v1457, 0.5
      %v1535 = vmul.f32 %v1458, 0.5
      %v1536 = vmul.f32 %v1459, 0.5
      %v1537 = vmul.f32 %v1460, 0.5
      %v1538 = vmul.f32 %v1461, 0.5
      %v1539 = vmul.f32 %v1462, 0.5
      %v1540 = vmul.f32 %v1463, 0.5
      %v1541 = vmul.f32 %v1464, 0.5
      %v1542 = vmul.f32 %v1465, 0.5
      %v1543 = vmul.f32 %v1466, 0.5
      %v1544 = vmul.f32 %v1467, 0.5
      %v1545 = vmul.f32 %v1468, 0.5
      %v1546 = vmul.f32 %v1469, 0.5
      %v1547 = vmul.f32 %v1470, 0.5
      %v1548 = vmul.f32 %v1471, 0.5
      %v1549 = vmul.f32 %v1472, 0.5
      %v1550 = vmul.f32 %v1473, 0.5
      %v1551 = vmul.f32 %v1474, 0.5
      %v1552 = vmul.f32 %v1475, 0.5
      %v1553 = vmul.f32 %v1476, 0.5
      %v1554 = vmul.f32 %v1477, 0.5
      %v1555 = vmul.f32 %v1478, 0.5
      %v1556 = vmul.f32 %v1479, 0.5
      %v1557 = vmul.f32 %v1480, 0.5
      %v1558 = vmul.f32 %v1481, 0.5
      %v1559 = vmul.f32 %v1482, 0.5
      %v1560 = vmul.f32 %v1483, 0.5
      %v1561 = vmul.f32 %v1484, 0.5
      %v1562 = vmul.f32 %v1485, 0.5
      %v1563 = vmul.f32 %v1486, 0.5
      %v1564 = vmul.f32 %v1487, 0.5
      %v1565 = vmul.f32 %v1488, 0.5
      %v1566 = vmul.f32 %v1489, 0.5
      %v1567 = vmul.f32 %v1490, 0.5
      %v1568 = vmul.f32 %v1491, 0.5
      %v1569 = vmul.f32 %v1492, 0.5
      %v1570 = vmul.f32 %v1493, 0.5
      %v1571 = vmul.f32 %v1494, 0.5
      %v1572 = vmul.f32 %v1495, 0.5
      %v1573 = vmul.f32 %v1496, 0.5
      %v1574 = vmul.f32 %v1497, 0.5
      %v1575 = vmul.f32 %v1498, 0.5
      %v1576 = vmul.f32 %v1499, 0.5
      %v1577 = vmul.f32 %v1500, 0.5
      %v1578 = vmul.f32 %v1501, 0.5
      %v1579 = vmul.f32 %v1502, 0.5
      %v1580 = vmul.f32 %v1503, 0.5
      %v1581 = vmul.f32 %v1504, 0.5
      %v1582 = vmul.f32 %v1505, 0.5
      %v1583 = vmul.f32 %v1506, 0.5
      %v1584 = vmul.f32 %v1507, 0.5
      %v1585 = vmul.f32 %v1508, 0.5
      %v1586 = vmul.f32 %v1509, 0.5
      %v1587 = vadd.f32 %v1510, 0.001
      %v1588 = vadd.f32 %v1511, 0.001
      %v1589 = vadd.f32 %v1512, 0.001
      %v1590 = vadd.f32 %v1513, 0.001
      %v1591 = vadd.f32 %v1514, 0.001
      %v1592 = vadd.f32 %v1515, 0.001
      %v1593 = vadd.f32 %v1516, 0.001
      %v1594 = vadd.f32 %v1517, 0.001
      %v1595 = vadd.f32 %v1518, 0.001
      %v1596 = vadd.f32 %v1519, 0.001
      %v1597 = vadd.f32 %v1520, 0.001
      %v1598 = vadd.f32 %v1521, 0.001
      %v1599 = vadd.f32 %v1522, 0.001
      %v1600 = vadd.f32 %v1523, 0.001
      %v1601 = vadd.f32 %v1524, 0.001
      %v1602 = vadd.f32 %v1525, 0.001
      %v1603 = vadd.f32 %v1526, 0.001
      %v1604 = vadd.f32 %v1527, 0.001
      %v1605 = vadd.f32 %v1528, 0.001
      %v1606 = vadd.f32 %v1529, 0.001
      %v1607 = vadd.f32 %v1530, 0.001
      %v1608 = vadd.f32 %v1531, 0.001
      %v1609 = vadd.f32 %v1532, 0.001
      %v1610 = vadd.f32 %v1533, 0.001
      %v1611 = vadd.f32 %v1534, 0.001
      %v1612 = vadd.f32 %v1535, 0.001
      %v1613 = vadd.f32 %v1536, 0.001
      %v1614 = vadd.f32 %v1537, 0.001
      %v1615 = vadd.f32 %v1538, 0.001
      %v1616 = vadd.f32 %v1539, 0.001
      %v1617 = vadd.f32 %v1540, 0.001
      %v1618 = vadd.f32 %v1541, 0.001
      %v1619 = vadd.f32 %v1542, 0.001
      %v1620 = vadd.f32 %v1543, 0.001
      %v1621 = vadd.f32 %v1544, 0.001
      %v1622 = vadd.f32 %v1545, 0.001
      %v1623 = vadd.f32 %v1546, 0.001
      %v1624 = vadd.f32 %v1547, 0.001
      %v1625 = vadd.f32 %v1548, 0.001
      %v1626 = vadd.f32 %v1549, 0.001
      %v1627 = vadd.f32 %v1550, 0.001
      %v1628 = vadd.f32 %v1551, 0.001
      %v1629 = vadd.f32 %v1552, 0.001
      %v1630 = vadd.f32 %v1553, 0.001
      %v1631 = vadd.f32 %v1554, 0.001
      %v1632 = vadd.f32 %v1555, 0.001
      %v1633 = vadd.f32 %v1556, 0.001
      %v1634 = vadd.f32 %v1557, 0.001
      %v1635 = vadd.f32 %v1558, 0.001
      %v1636 = vadd.f32 %v1559, 0.001
      %v1637 = vadd.f32 %v1560, 0.001
      %v1638 = vadd.f32 %v1561, 0.001
      %v1639 = vadd.f32 %v1562, 0.001
      %v1640 = vadd.f32 %v1563, 0.001
      %v1641 = vadd.f32 %v1564, 0.001
      %v1642 = vadd.f32 %v1565, 0.001
      %v1643 = vadd.f32 %v1566, 0.001
      %v1644 = vadd.f32 %v1567, 0.001
      %v1645 = vadd.f32 %v1568, 0.001
      %v1646 = vadd.f32 %v1569, 0.001
      %v1647 = vadd.f32 %v1570, 0.001
      %v1648 = vadd.f32 %v1571, 0.001
      %v1649 = vadd.f32 %v1572, 0.001
      %v1650 = vadd.f32 %v1573, 0.001
      %v1651 = vadd.f32 %v1574, 0.001
      %v1652 = vadd.f32 %v1575, 0.001
      %v1653 = vadd.f32 %v1576, 0.001
      %v1654 = vadd.f32 %v1577, 0.001
      %v1655 = vadd.f32 %v1578, 0.001
      %v1656 = vadd.f32 %v1579, 0.001
      %v1657 = vadd.f32 %v1580, 0.001
      %v1658 = vadd.f32 %v1581, 0.001
      %v1659 = vadd.f32 %v1582, 0.001
      %v1660 = vadd.f32 %v1583, 0.001
      %v1661 = vadd.f32 %v1584, 0.001
      %v1662 = vadd.f32 %v1585, 0.001
      %v1663 = vadd.f32 %v1586, 0.001
      %v1664 = vfloor.f32 %v1587
      %v1665 = vfloor.f32 %v1588
      %v1666 = vfloor.f32 %v1589
      %v1667 = vfloor.f32 %v1590
      %v1668 = vfloor.f32 %v1591
      %v1669 = vfloor.f32 %v1592
      %v1670 = vfloor.f32 %v1593
      %v1671 = vfloor.f32 %v1594
      %v1672 = vfloor.f32 %v1595
      %v1673 = vfloor.f32 %v1596
      %v1674 = vfloor.f32 %v1597
      %v1675 = vfloor.f32 %v1598
      %v1676 = vfloor.f32 %v1599
      %v1677 = vfloor.f32 %v1600
      %v1678 = vfloor.f32 %v1601
      %v1679 = vfloor.f32 %v1602
      %v1680 = vfloor.f32 %v1603
      %v1681 = vfloor.f32 %v1604
      %v1682 = vfloor.f32 %v1605
      %v1683 = vfloor.f32 %v1606
      %v1684 = vfloor.f32 %v1607
      %v1685 = vfloor.f32 %v1608
      %v1686 = vfloor.f32 %v1609
      %v1687 = vfloor.f32 %v1610
      %v1688 = vfloor.f32 %v1611
      %v1689 = vfloor.f32 %v1612
      %v1690 = vfloor.f32 %v1613
      %v1691 = vfloor.f32 %v1614
      %v1692 = vfloor.f32 %v1615
      %v1693 = vfloor.f32 %v1616
      %v1694 = vfloor.f32 %v1617
      %v1695 = vfloor.f32 %v1618
      %v1696 = vfloor.f32 %v1619
      %v1697 = vfloor.f32 %v1620
      %v1698 = vfloor.f32 %v1621
      %v1699 = vfloor.f32 %v1622
      %v1700 = vfloor.f32 %v1623
      %v1701 = vfloor.f32 %v1624
      %v1702 = vfloor.f32 %v1625
      %v1703 = vfloor.f32 %v1626
      %v1704 = vfloor.f32 %v1627
      %v1705 = vfloor.f32 %v1628
      %v1706 = vfloor.f32 %v1629
      %v1707 = vfloor.f32 %v1630
      %v1708 = vfloor.f32 %v1631
      %v1709 = vfloor.f32 %v1632
      %v1710 = vfloor.f32 %v1633
      %v1711 = vfloor.f32 %v1634
      %v1712 = vfloor.f32 %v1635
      %v1713 = vfloor.f32 %v1636
      %v1714 = vfloor.f32 %v1637
      %v1715 = vfloor.f32 %v1638
      %v1716 = vfloor.f32 %v1639
      %v1717 = vfloor.f32 %v1640
      %v1718 = vfloor.f32 %v1641
      %v1719 = vfloor.f32 %v1642
      %v1720 = vfloor.f32 %v1643
      %v1721 = vfloor.f32 %v1644
      %v1722 = vfloor.f32 %v1645
      %v1723 = vfloor.f32 %v1646
      %v1724 = vfloor.f32 %v1647
      %v1725 = vfloor.f32 %v1648
      %v1726 = vfloor.f32 %v1649
      %v1727 = vfloor.f32 %v1650
      %v1728 = vfloor.f32 %v1651
      %v1729 = vfloor.f32 %v1652
      %v1730 = vfloor.f32 %v1653
      %v1731 = vfloor.f32 %v1654
      %v1732 = vfloor.f32 %v1655
      %v1733 = vfloor.f32 %v1656
      %v1734 = vfloor.f32 %v1657
      %v1735 = vfloor.f32 %v1658
      %v1736 = vfloor.f32 %v1659
      %v1737 = vfloor.f32 %v1660
      %v1738 = vfloor.f32 %v1661
      %v1739 = vfloor.f32 %v1662
      %v1740 = vfloor.f32 %v1663
      %v1741 = vsub.f32 %v1510, %v1664
      %v1742 = vsub.f32 %v1511, %v1665
      %v1743 = vsub.f32 %v1512, %v1666
      %v1744 = vsub.f32 %v1513, %v1667
      %v1745 = vsub.f32 %v1514, %v1668
      %v1746 = vsub.f32 %v1515, %v1669
      %v1747 = vsub.f32 %v1516, %v1670
      %v1748 = vsub.f32 %v1517, %v1671
      %v1749 = vsub.f32 %v1518, %v1672
      %v1750 = vsub.f32 %v1519, %v1673
      %v1751 = vsub.f32 %v1520, %v1674
      %v1752 = vsub.f32 %v1521, %v1675
      %v1753 = vsub.f32 %v1522, %v1676
      %v1754 = vsub.f32 %v1523, %v1677
      %v1755 = vsub.f32 %v1524, %v1678
      %v1756 = vsub.f32 %v1525, %v1679
      %v1757 = vsub.f32 %v1526, %v1680
      %v1758 = vsub.f32 %v1527, %v1681
      %v1759 = vsub.f32 %v1528, %v1682
      %v1760 = vsub.f32 %v1529, %v1683
      %v1761 = vsub.f32 %v1530, %v1684
      %v1762 = vsub.f32 %v1531, %v1685
      %v1763 = vsub.f32 %v1532, %v1686
      %v1764 = vsub.f32 %v1533, %v1687
      %v1765 = vsub.f32 %v1534, %v1688
      %v1766 = vsub.f32 %v1535, %v1689
      %v1767 = vsub.f32 %v1536, %v1690
      %v1768 = vsub.f32 %v1537, %v1691
      %v1769 = vsub.f32 %v1538, %v1692
      %v1770 = vsub.f32 %v1539, %v1693
      %v1771 = vsub.f32 %v1540, %v1694
      %v1772 = vsub.f32 %v1541, %v1695
      %v1773 = vsub.f32 %v1542, %v1696
      %v1774 = vsub.f32 %v1543, %v1697
      %v1775 = vsub.f32 %v1544, %v1698
      %v1776 = vsub.f32 %v1545, %v1699
      %v1777 = vsub.f32 %v1546, %v1700
      %v1778 = vsub.f32 %v1547, %v1701
      %v1779 = vsub.f32 %v1548, %v1702
      %v1780 = vsub.f32 %v1549, %v1703
      %v1781 = vsub.f32 %v1550, %v1704
      %v1782 = vsub.f32 %v1551, %v1705
      %v1783 = vsub.f32 %v1552, %v1706
      %v1784 = vsub.f32 %v1553, %v1707
      %v1785 = vsub.f32 %v1554, %v1708
      %v1786 = vsub.f32 %v1555, %v1709
      %v1787 = vsub.f32 %v1556, %v1710
      %v1788 = vsub.f32 %v1557, %v1711
      %v1789 = vsub.f32 %v1558, %v1712
      %v1790 = vsub.f32 %v1559, %v1713
      %v1791 = vsub.f32 %v1560, %v1714
      %v1792 = vsub.f32 %v1561, %v1715
      %v1793 = vsub.f32 %v1562, %v1716
      %v1794 = vsub.f32 %v1563, %v1717
      %v1795 = vsub.f32 %v1564, %v1718
      %v1796 = vsub.f32 %v1565, %v1719
      %v1797 = vsub.f32 %v1566, %v1720
      %v1798 = vsub.f32 %v1567, %v1721
      %v1799 = vsub.f32 %v1568, %v1722
      %v1800 = vsub.f32 %v1569, %v1723
      %v1801 = vsub.f32 %v1570, %v1724
      %v1802 = vsub.f32 %v1571, %v1725
      %v1803 = vsub.f32 %v1572, %v1726
      %v1804 = vsub.f32 %v1573, %v1727
      %v1805 = vsub.f32 %v1574, %v1728
      %v1806 = vsub.f32 %v1575, %v1729
      %v1807 = vsub.f32 %v1576, %v1730
      %v1808 = vsub.f32 %v1577, %v1731
      %v1809 = vsub.f32 %v1578, %v1732
      %v1810 = vsub.f32 %v1579, %v1733
      %v1811 = vsub.f32 %v1580, %v1734
      %v1812 = vsub.f32 %v1581, %v1735
      %v1813 = vsub.f32 %v1582, %v1736
      %v1814 = vsub.f32 %v1583, %v1737
      %v1815 = vsub.f32 %v1584, %v1738
      %v1816 = vsub.f32 %v1585, %v1739
      %v1817 = vsub.f32 %v1586, %v1740
      %v1818 = vsub.f32 %v1741, 0.5
      %v1819 = vsub.f32 %v1742, 0.5
      %v1820 = vsub.f32 %v1743, 0.5
      %v1821 = vsub.f32 %v1744, 0.5
      %v1822 = vsub.f32 %v1745, 0.5
      %v1823 = vsub.f32 %v1746, 0.5
      %v1824 = vsub.f32 %v1747, 0.5
      %v1825 = vsub.f32 %v1748, 0.5
      %v1826 = vsub.f32 %v1749, 0.5
      %v1827 = vsub.f32 %v1750, 0.5
      %v1828 = vsub.f32 %v1751, 0.5
      %v1829 = vsub.f32 %v1752, 0.5
      %v1830 = vsub.f32 %v1753, 0.5
      %v1831 = vsub.f32 %v1754, 0.5
      %v1832 = vsub.f32 %v1755, 0.5
      %v1833 = vsub.f32 %v1756, 0.5
      %v1834 = vsub.f32 %v1757, 0.5
      %v1835 = vsub.f32 %v1758, 0.5
      %v1836 = vsub.f32 %v1759, 0.5
      %v1837 = vsub.f32 %v1760, 0.5
      %v1838 = vsub.f32 %v1761, 0.5
      %v1839 = vsub.f32 %v1762, 0.5
      %v1840 = vsub.f32 %v1763, 0.5
      %v1841 = vsub.f32 %v1764, 0.5
      %v1842 = vsub.f32 %v1765, 0.5
      %v1843 = vsub.f32 %v1766, 0.5
      %v1844 = vsub.f32 %v1767, 0.5
      %v1845 = vsub.f32 %v1768, 0.5
      %v1846 = vsub.f32 %v1769, 0.5
      %v1847 = vsub.f32 %v1770, 0.5
      %v1848 = vsub.f32 %v1771, 0.5
      %v1849 = vsub.f32 %v1772, 0.5
      %v1850 = vsub.f32 %v1773, 0.5
      %v1851 = vsub.f32 %v1774, 0.5
      %v1852 = vsub.f32 %v1775, 0.5
      %v1853 = vsub.f32 %v1776, 0.5
      %v1854 = vsub.f32 %v1777, 0.5
      %v1855 = vsub.f32 %v1778, 0.5
      %v1856 = vsub.f32 %v1779, 0.5
      %v1857 = vsub.f32 %v1780, 0.5
      %v1858 = vsub.f32 %v1781, 0.5
      %v1859 = vsub.f32 %v1782, 0.5
      %v1860 = vsub.f32 %v1783, 0.5
      %v1861 = vsub.f32 %v1784, 0.5
      %v1862 = vsub.f32 %v1785, 0.5
      %v1863 = vsub.f32 %v1786, 0.5
      %v1864 = vsub.f32 %v1787, 0.5
      %v1865 = vsub.f32 %v1788, 0.5
      %v1866 = vsub.f32 %v1789, 0.5
      %v1867 = vsub.f32 %v1790, 0.5
      %v1868 = vsub.f32 %v1791, 0.5
      %v1869 = vsub.f32 %v1792, 0.5
      %v1870 = vsub.f32 %v1793, 0.5
      %v1871 = vsub.f32 %v1794, 0.5
      %v1872 = vsub.f32 %v1795, 0.5
      %v1873 = vsub.f32 %v1796, 0.5
      %v1874 = vsub.f32 %v1797, 0.5
      %v1875 = vsub.f32 %v1798, 0.5
      %v1876 = vsub.f32 %v1799, 0.5
      %v1877 = vsub.f32 %v1800, 0.5
      %v1878 = vsub.f32 %v1801, 0.5
      %v1879 = vsub.f32 %v1802, 0.5
      %v1880 = vsub.f32 %v1803, 0.5
      %v1881 = vsub.f32 %v1804, 0.5
      %v1882 = vsub.f32 %v1805, 0.5
      %v1883 = vsub.f32 %v1806, 0.5
      %v1884 = vsub.f32 %v1807, 0.5
      %v1885 = vsub.f32 %v1808, 0.5
      %v1886 = vsub.f32 %v1809, 0.5
      %v1887 = vsub.f32 %v1810, 0.5
      %v1888 = vsub.f32 %v1811, 0.5
      %v1889 = vsub.f32 %v1812, 0.5
      %v1890 = vsub.f32 %v1813, 0.5
      %v1891 = vsub.f32 %v1814, 0.5
      %v1892 = vsub.f32 %v1815, 0.5
      %v1893 = vsub.f32 %v1816, 0.5
      %v1894 = vsub.f32 %v1817, 0.5
      %vm1895 = vcmask 15360
      %v1896 = vsel %vm1895, 0.5, %v1356
      %v1897 = vsel %vm1895, 0.5, %v1357
      %v1898 = vsel %vm1895, 0.5, %v1358
      %v1899 = vsel %vm1895, 0.5, %v1359
      %v1900 = vsel %vm1895, 0.5, %v1360
      %v1901 = vsel %vm1895, 0.5, %v1361
      %v1902 = vsel %vm1895, 0.5, %v1362
      %v1903 = vsel %vm1895, 0.5, %v1363
      %v1904 = vsel %vm1895, 0.5, %v1364
      %v1905 = vsel %vm1895, 0.5, %v1365
      %v1906 = vsel %vm1895, 0.5, %v1366
      %v1907 = vsel %vm1895, 0.5, %v1367
      %v1908 = vsel %vm1895, 0.5, %v1368
      %v1909 = vsel %vm1895, 0.5, %v1369
      %v1910 = vsel %vm1895, 0.5, %v1370
      %v1911 = vsel %vm1895, 0.5, %v1371
      %v1912 = vsel %vm1895, 0.5, %v1372
      %v1913 = vsel %vm1895, 0.5, %v1373
      %v1914 = vsel %vm1895, 0.5, %v1374
      %v1915 = vsel %vm1895, 0.5, %v1375
      %v1916 = vsel %vm1895, 0.5, %v1376
      %v1917 = vsel %vm1895, 0.5, %v1377
      %v1918 = vsel %vm1895, 0.5, %v1378
      %v1919 = vsel %vm1895, 0.5, %v1379
      %v1920 = vsel %vm1895, 0.5, %v1380
      %v1921 = vsel %vm1895, 0.5, %v1381
      %v1922 = vsel %vm1895, 0.5, %v1382
      %v1923 = vsel %vm1895, 0.5, %v1383
      %v1924 = vsel %vm1895, 0.5, %v1384
      %v1925 = vsel %vm1895, 0.5, %v1385
      %v1926 = vsel %vm1895, 0.5, %v1386
      %v1927 = vsel %vm1895, 0.5, %v1387
      %v1928 = vsel %vm1895, 0.5, %v1388
      %v1929 = vsel %vm1895, 0.5, %v1389
      %v1930 = vsel %vm1895, 0.5, %v1390
      %v1931 = vsel %vm1895, 0.5, %v1391
      %v1932 = vsel %vm1895, 0.5, %v1392
      %v1933 = vsel %vm1895, 0.5, %v1393
      %v1934 = vsel %vm1895, 0.5, %v1394
      %v1935 = vsel %vm1895, 0.5, %v1395
      %v1936 = vsel %vm1895, 0.5, %v1396
      %v1937 = vsel %vm1895, 0.5, %v1397
      %v1938 = vsel %vm1895, 0.5, %v1398
      %v1939 = vsel %vm1895, 0.5, %v1399
      %v1940 = vsel %vm1895, 0.5, %v1400
      %v1941 = vsel %vm1895, 0.5, %v1401
      %v1942 = vsel %vm1895, 0.5, %v1402
      %v1943 = vsel %vm1895, 0.5, %v1403
      %v1944 = vsel %vm1895, 0.5, %v1404
      %v1945 = vsel %vm1895, 0.5, %v1405
      %v1946 = vsel %vm1895, 0.5, %v1406
      %v1947 = vsel %vm1895, 0.5, %v1407
      %v1948 = vsel %vm1895, 0.5, %v1408
      %v1949 = vsel %vm1895, 0.5, %v1409
      %v1950 = vsel %vm1895, 0.5, %v1410
      %v1951 = vsel %vm1895, 0.5, %v1411
      %v1952 = vsel %vm1895, 0.5, %v1412
      %v1953 = vsel %vm1895, 0.5, %v1413
      %v1954 = vsel %vm1895, 0.5, %v1414
      %v1955 = vsel %vm1895, 0.5, %v1415
      %v1956 = vsel %vm1895, 0.5, %v1416
      %v1957 = vsel %vm1895, 0.5, %v1417
      %v1958 = vsel %vm1895, 0.5, %v1418
      %v1959 = vsel %vm1895, 0.5, %v1419
      %v1960 = vsel %vm1895, 0.5, %v1420
      %v1961 = vsel %vm1895, 0.5, %v1421
      %v1962 = vsel %vm1895, 0.5, %v1422
      %v1963 = vsel %vm1895, 0.5, %v1423
      %v1964 = vsel %vm1895, 0.5, %v1424
      %v1965 = vsel %vm1895, 0.5, %v1425
      %v1966 = vsel %vm1895, 0.5, %v1426
      %v1967 = vsel %vm1895, 0.5, %v1427
      %v1968 = vsel %vm1895, 0.5, %v1428
      %v1969 = vsel %vm1895, 0.5, %v1429
      %v1970 = vsel %vm1895, 0.5, %v1430
      %v1971 = vsel %vm1895, 0.5, %v1431
      %v1972 = vsel %vm1895, 0.5, %v1432
      %vm1973 = vcmask 23552
      %v1974 = vsel %vm1973, %v1896, %v1818
      %v1975 = vsel %vm1973, %v1897, %v1819
      %v1976 = vsel %vm1973, %v1898, %v1820
      %v1977 = vsel %vm1973, %v1899, %v1821
      %v1978 = vsel %vm1973, %v1900, %v1822
      %v1979 = vsel %vm1973, %v1901, %v1823
      %v1980 = vsel %vm1973, %v1902, %v1824
      %v1981 = vsel %vm1973, %v1903, %v1825
      %v1982 = vsel %vm1973, %v1904, %v1826
      %v1983 = vsel %vm1973, %v1905, %v1827
      %v1984 = vsel %vm1973, %v1906, %v1828
      %v1985 = vsel %vm1973, %v1907, %v1829
      %v1986 = vsel %vm1973, %v1908, %v1830
      %v1987 = vsel %vm1973, %v1909, %v1831
      %v1988 = vsel %vm1973, %v1910, %v1832
      %v1989 = vsel %vm1973, %v1911, %v1833
      %v1990 = vsel %vm1973, %v1912, %v1834
      %v1991 = vsel %vm1973, %v1913, %v1835
      %v1992 = vsel %vm1973, %v1914, %v1836
      %v1993 = vsel %vm1973, %v1915, %v1837
      %v1994 = vsel %vm1973, %v1916, %v1838
      %v1995 = vsel %vm1973, %v1917, %v1839
      %v1996 = vsel %vm1973, %v1918, %v1840
      %v1997 = vsel %vm1973, %v1919, %v1841
      %v1998 = vsel %vm1973, %v1920, %v1842
      %v1999 = vsel %vm1973, %v1921, %v1843
      %v2000 = vsel %vm1973, %v1922, %v1844
      %v2001 = vsel %vm1973, %v1923, %v1845
      %v2002 = vsel %vm1973, %v1924, %v1846
      %v2003 = vsel %vm1973, %v1925, %v1847
      %v2004 = vsel %vm1973, %v1926, %v1848
      %v2005 = vsel %vm1973, %v1927, %v1849
      %v2006 = vsel %vm1973, %v1928, %v1850
      %v2007 = vsel %vm1973, %v1929, %v1851
      %v2008 = vsel %vm1973, %v1930, %v1852
      %v2009 = vsel %vm1973, %v1931, %v1853
      %v2010 = vsel %vm1973, %v1932, %v1854
      %v2011 = vsel %vm1973, %v1933, %v1855
      %v2012 = vsel %vm1973, %v1934, %v1856
      %v2013 = vsel %vm1973, %v1935, %v1857
      %v2014 = vsel %vm1973, %v1936, %v1858
      %v2015 = vsel %vm1973, %v1937, %v1859
      %v2016 = vsel %vm1973, %v1938, %v1860
      %v2017 = vsel %vm1973, %v1939, %v1861
      %v2018 = vsel %vm1973, %v1940, %v1862
      %v2019 = vsel %vm1973, %v1941, %v1863
      %v2020 = vsel %vm1973, %v1942, %v1864
      %v2021 = vsel %vm1973, %v1943, %v1865
      %v2022 = vsel %vm1973, %v1944, %v1866
      %v2023 = vsel %vm1973, %v1945, %v1867
      %v2024 = vsel %vm1973, %v1946, %v1868
      %v2025 = vsel %vm1973, %v1947, %v1869
      %v2026 = vsel %vm1973, %v1948, %v1870
      %v2027 = vsel %vm1973, %v1949, %v1871
      %v2028 = vsel %vm1973, %v1950, %v1872
      %v2029 = vsel %vm1973, %v1951, %v1873
      %v2030 = vsel %vm1973, %v1952, %v1874
      %v2031 = vsel %vm1973, %v1953, %v1875
      %v2032 = vsel %vm1973, %v1954, %v1876
      %v2033 = vsel %vm1973, %v1955, %v1877
      %v2034 = vsel %vm1973, %v1956, %v1878
      %v2035 = vsel %vm1973, %v1957, %v1879
      %v2036 = vsel %vm1973, %v1958, %v1880
      %v2037 = vsel %vm1973, %v1959, %v1881
      %v2038 = vsel %vm1973, %v1960, %v1882
      %v2039 = vsel %vm1973, %v1961, %v1883
      %v2040 = vsel %vm1973, %v1962, %v1884
      %v2041 = vsel %vm1973, %v1963, %v1885
      %v2042 = vsel %vm1973, %v1964, %v1886
      %v2043 = vsel %vm1973, %v1965, %v1887
      %v2044 = vsel %vm1973, %v1966, %v1888
      %v2045 = vsel %vm1973, %v1967, %v1889
      %v2046 = vsel %vm1973, %v1968, %v1890
      %v2047 = vsel %vm1973, %v1969, %v1891
      %v2048 = vsel %vm1973, %v1970, %v1892
      %v2049 = vsel %vm1973, %v1971, %v1893
      %v2050 = vsel %vm1973, %v1972, %v1894
      %v2051 = vpack.c.bf16 %v1975, %v1974
      %v2052 = vpack.c.bf16 %v1977, %v1976
      %v2053 = vpack.c.bf16 %v1979, %v1978
      %v2054 = vpack.c.bf16 %v1981, %v1980
      %v2055 = vpack.c.bf16 %v1983, %v1982
      %v2056 = vpack.c.bf16 %v1985, %v1984
      %v2057 = vpack.c.bf16 %v1987, %v1986
      %v2058 = vpack.c.bf16 %v1989, %v1988
      %v2059 = vpack.c.bf16 %v1991, %v1990
      %v2060 = vpack.c.bf16 %v1993, %v1992
      %v2061 = vpack.c.bf16 %v1995, %v1994
      %v2062 = vpack.c.bf16 %v1997, %v1996
      %v2063 = vpack.c.bf16 %v1999, %v1998
      %v2064 = vpack.c.bf16 %v2001, %v2000
      %v2065 = vpack.c.bf16 %v2003, %v2002
      %v2066 = vpack.c.bf16 %v2005, %v2004
      %v2067 = vpack.c.bf16 %v2007, %v2006
      %v2068 = vpack.c.bf16 %v2009, %v2008
      %v2069 = vpack.c.bf16 %v2011, %v2010
      %v2070 = vpack.c.bf16 %v2013, %v2012
      %v2071 = vpack.c.bf16 %v2015, %v2014
      %v2072 = vpack.c.bf16 %v2017, %v2016
      %v2073 = vpack.c.bf16 %v2019, %v2018
      %v2074 = vpack.c.bf16 %v2021, %v2020
      %v2075 = vpack.c.bf16 %v2023, %v2022
      %v2076 = vpack.c.bf16 %v2025, %v2024
      %v2077 = vpack.c.bf16 %v2027, %v2026
      %v2078 = vpack.c.bf16 %v2029, %v2028
      %v2079 = vpack.c.bf16 %v2031, %v2030
      %v2080 = vpack.c.bf16 %v2033, %v2032
      %v2081 = vpack.c.bf16 %v2035, %v2034
      %v2082 = vpack.c.bf16 %v2037, %v2036
      %v2083 = vpack.c.bf16 %v2039, %v2038
      %v2084 = vpack.c.bf16 %v2041, %v2040
      %v2085 = vpack.c.bf16 %v2043, %v2042
      %v2086 = vpack.c.bf16 %v2045, %v2044
      %v2087 = vpack.c.bf16 %v2047, %v2046
      %v2088 = vpack.c.bf16 %v2049, %v2048
      %v2089 = vpack.c.bf16 %v2050, %v2050
      %v2090 = vld [vmem:[%s0] sm:$0x3]
      %v2091 = vld [vmem:[%s1] sm:$0x1]
      %v2093 = vlaneseq
      %v2094 = vshrl.u32 %v2093, 7
      %v2095 = vsub.s32 0, %v2094
      %v2096 = vrot.slane %v2091, %v2095
      %vm2098 = vcmask 31744
      %v2100 = vsel %vm2098, %v2051, 0
      %v2103 = vsel %vm2098, %v2052, 0
      %v2106 = vsel %vm2098, %v2053, 0
      %v2109 = vsel %vm2098, %v2054, 0
      %v2112 = vsel %vm2098, %v2055, 0
      %v2115 = vsel %vm2098, %v2056, 0
      %v2118 = vsel %vm2098, %v2057, 0
      %v2121 = vsel %vm2098, %v2058, 0
      %v2124 = vsel %vm2098, %v2059, 0
      %v2127 = vsel %vm2098, %v2060, 0
      %v2130 = vsel %vm2098, %v2061, 0
      %v2133 = vsel %vm2098, %v2062, 0
      %v2136 = vsel %vm2098, %v2063, 0
      %v2139 = vsel %vm2098, %v2064, 0
      %v2142 = vsel %vm2098, %v2065, 0
      %v2145 = vsel %vm2098, %v2066, 0
      %v2148 = vsel %vm2098, %v2067, 0
      %v2151 = vsel %vm2098, %v2068, 0
      %v2154 = vsel %vm2098, %v2069, 0
      %v2157 = vsel %vm2098, %v2070, 0
      %v2160 = vsel %vm2098, %v2071, 0
      %v2163 = vsel %vm2098, %v2072, 0
      %v2166 = vsel %vm2098, %v2073, 0
      %v2169 = vsel %vm2098, %v2074, 0
      %v2172 = vsel %vm2098, %v2075, 0
      %v2175 = vsel %vm2098, %v2076, 0
      %v2178 = vsel %vm2098, %v2077, 0
      %v2181 = vsel %vm2098, %v2078, 0
      %v2184 = vsel %vm2098, %v2079, 0
      %v2187 = vsel %vm2098, %v2080, 0
      %v2190 = vsel %vm2098, %v2081, 0
      %v2193 = vsel %vm2098, %v2082, 0
      %v2196 = vsel %vm2098, %v2083, 0
      %v2199 = vsel %vm2098, %v2084, 0
      %v2202 = vsel %vm2098, %v2085, 0
      %v2205 = vsel %vm2098, %v2086, 0
      %v2208 = vsel %vm2098, %v2087, 0
      %v2211 = vsel %vm2098, %v2088, 0
      %v2214 = vsel %vm2098, %v2089, 0
      %vm2216 = vcmask 1041408
      %v2218 = vsel %vm2216, %v2090, 0
      %2220 = vmatprep.subr.bf16.mxu0 0
      %2221 = vmatpush1.bf16.msra.mxu0 %v2218
      %2222 = vmatprep.subr.bf16.mxu0 0
      %2223 = vmatpush1.bf16.msra.mxu0 0
      %2224 = vmatprep.subr.bf16.mxu0 0
      %2225 = vmatpush1.bf16.msra.mxu0 0
      %2226 = vmatprep.subr.bf16.mxu0 0
      %2227 = vmatpush1.bf16.msra.mxu0 0
      %2228 = vmatprep.subr.bf16.mxu0 0
      %2229 = vmatpush1.bf16.msra.mxu0 0
      %2230 = vmatprep.subr.bf16.mxu0 0
      %2231 = vmatpush1.bf16.msra.mxu0 0
      %2232 = vmatprep.subr.bf16.mxu0 0
      %2233 = vmatpush1.bf16.msra.mxu0 0
      %2234 = vmatprep.subr.bf16.mxu0 0
      %2235 = vmatpush1.bf16.msra.mxu0 0
      %2236 = vmatprep.subr.bf16.mxu0 0
      %2237 = vmatpush1.bf16.msra.mxu0 0
      %2238 = vmatprep.subr.bf16.mxu0 0
      %2239 = vmatpush1.bf16.msra.mxu0 0
      %2240 = vmatprep.subr.bf16.mxu0 0
      %2241 = vmatpush1.bf16.msra.mxu0 0
      %2242 = vmatprep.subr.bf16.mxu0 0
      %2243 = vmatpush1.bf16.msra.mxu0 0
      %2244 = vmatprep.subr.bf16.mxu0 0
      %2245 = vmatpush1.bf16.msra.mxu0 0
      %2246 = vmatprep.subr.bf16.mxu0 0
      %2247 = vmatpush1.bf16.msra.mxu0 0
      %2248 = vmatprep.subr.bf16.mxu0 0
      %2249 = vmatpush1.bf16.msra.mxu0 0
      %2250 = vmatprep.subr.bf16.mxu0 0
      %2251 = vmatpush1.bf16.msra.mxu0 0
      %2252 = vmatprep.mubr.bf16.mxu0 0
      %2253 = vmatmul.mubr.bf16.gmra.mrb[0].mxu0 %v2100
      %v2254 = vpop.f32.mrb[0].mxu0
      %v2255 = vadd.f32 %v2096, %v2254
      %v2256 = vpop.f32.mrb[0].mxu0
      %v2257 = vpop.f32.mrb[0].mxu0
      %v2258 = vadd.f32 %v2096, %v2257
      %v2259 = vpop.f32.mrb[0].mxu0
      %2260 = vmatprep.mubr.bf16.mxu0 0
      %2261 = vmatmul.mubr.bf16.gmra.mrb[0].mxu0 %v2103
      %v2262 = vpop.f32.mrb[0].mxu0
      %v2263 = vadd.f32 %v2096, %v2262
      %v2264 = vpop.f32.mrb[0].mxu0
      %v2265 = vpop.f32.mrb[0].mxu0
      %v2266 = vadd.f32 %v2096, %v2265
      %v2267 = vpop.f32.mrb[0].mxu0
      %2268 = vmatprep.mubr.bf16.mxu0 0
      %2269 = vmatmul.mubr.bf16.gmra.mrb[0].mxu0 %v2106
      %v2270 = vpop.f32.mrb[0].mxu0
      %v2271 = vadd.f32 %v2096, %v2270
      %v2272 = vpop.f32.mrb[0].mxu0
      %v2273 = vpop.f32.mrb[0].mxu0
      %v2274 = vadd.f32 %v2096, %v2273
      %v2275 = vpop.f32.mrb[0].mxu0
      %2276 = vmatprep.mubr.bf16.mxu0 0
      %2277 = vmatmul.mubr.bf16.gmra.mrb[0].mxu0 %v2109
      %v2278 = vpop.f32.mrb[0].mxu0
      %v2279 = vadd.f32 %v2096, %v2278
      %v2280 = vpop.f32.mrb[0].mxu0
      %v2281 = vpop.f32.mrb[0].mxu0
      %v2282 = vadd.f32 %v2096, %v2281
      %v2283 = vpop.f32.mrb[0].mxu0
      %2284 = vmatprep.mubr.bf16.mxu0 0
      %2285 = vmatmul.mubr.bf16.gmra.mrb[0].mxu0 %v2112
      %v2286 = vpop.f32.mrb[0].mxu0
      %v2287 = vadd.f32 %v2096, %v2286
      %v2288 = vpop.f32.mrb[0].mxu0
      %v2289 = vpop.f32.mrb[0].mxu0
      %v2290 = vadd.f32 %v2096, %v2289
      %v2291 = vpop.f32.mrb[0].mxu0
      %2292 = vmatprep.mubr.bf16.mxu0 0
      %2293 = vmatmul.mubr.bf16.gmra.mrb[0].mxu0 %v2115
      %v2294 = vpop.f32.mrb[0].mxu0
      %v2295 = vadd.f32 %v2096, %v2294
      %v2296 = vpop.f32.mrb[0].mxu0
      %v2297 = vpop.f32.mrb[0].mxu0
      %v2298 = vadd.f32 %v2096, %v2297
      %v2299 = vpop.f32.mrb[0].mxu0
      %2300 = vmatprep.mubr.bf16.mxu0 0
      %2301 = vmatmul.mubr.bf16.gmra.mrb[0].mxu0 %v2118
      %v2302 = vpop.f32.mrb[0].mxu0
      %v2303 = vadd.f32 %v2096, %v2302
      %v2304 = vpop.f32.mrb[0].mxu0
      %v2305 = vpop.f32.mrb[0].mxu0
      %v2306 = vadd.f32 %v2096, %v2305
      %v2307 = vpop.f32.mrb[0].mxu0
      %2308 = vmatprep.mubr.bf16.mxu0 0
      %2309 = vmatmul.mubr.bf16.gmra.mrb[0].mxu0 %v2121
      %v2310 = vpop.f32.mrb[0].mxu0
      %v2311 = vadd.f32 %v2096, %v2310
      %v2312 = vpop.f32.mrb[0].mxu0
      %v2313 = vpop.f32.mrb[0].mxu0
      %v2314 = vadd.f32 %v2096, %v2313
      %v2315 = vpop.f32.mrb[0].mxu0
      %2316 = vmatprep.mubr.bf16.mxu0 0
      %2317 = vmatmul.mubr.bf16.gmra.mrb[0].mxu0 %v2124
      %v2318 = vpop.f32.mrb[0].mxu0
      %v2319 = vadd.f32 %v2096, %v2318
      %v2320 = vpop.f32.mrb[0].mxu0
      %v2321 = vpop.f32.mrb[0].mxu0
      %v2322 = vadd.f32 %v2096, %v2321
      %v2323 = vpop.f32.mrb[0].mxu0
      %2324 = vmatprep.mubr.bf16.mxu0 0
      %2325 = vmatmul.mubr.bf16.gmra.mrb[0].mxu0 %v2127
      %v2326 = vpop.f32.mrb[0].mxu0
      %v2327 = vadd.f32 %v2096, %v2326
      %v2328 = vpop.f32.mrb[0].mxu0
      %v2329 = vpop.f32.mrb[0].mxu0
      %v2330 = vadd.f32 %v2096, %v2329
      %v2331 = vpop.f32.mrb[0].mxu0
      %2332 = vmatprep.mubr.bf16.mxu0 0
      %2333 = vmatmul.mubr.bf16.gmra.mrb[0].mxu0 %v2130
      %v2334 = vpop.f32.mrb[0].mxu0
      %v2335 = vadd.f32 %v2096, %v2334
      %v2336 = vpop.f32.mrb[0].mxu0
      %v2337 = vpop.f32.mrb[0].mxu0
      %v2338 = vadd.f32 %v2096, %v2337
      %v2339 = vpop.f32.mrb[0].mxu0
      %2340 = vmatprep.mubr.bf16.mxu0 0
      %2341 = vmatmul.mubr.bf16.gmra.mrb[0].mxu0 %v2133
      %v2342 = vpop.f32.mrb[0].mxu0
      %v2343 = vadd.f32 %v2096, %v2342
      %v2344 = vpop.f32.mrb[0].mxu0
      %v2345 = vpop.f32.mrb[0].mxu0
      %v2346 = vadd.f32 %v2096, %v2345
      %v2347 = vpop.f32.mrb[0].mxu0
      %2348 = vmatprep.mubr.bf16.mxu0 0
      %2349 = vmatmul.mubr.bf16.gmra.mrb[0].mxu0 %v2136
      %v2350 = vpop.f32.mrb[0].mxu0
      %v2351 = vadd.f32 %v2096, %v2350
      %v2352 = vpop.f32.mrb[0].mxu0
      %v2353 = vpop.f32.mrb[0].mxu0
      %v2354 = vadd.f32 %v2096, %v2353
      %v2355 = vpop.f32.mrb[0].mxu0
      %2356 = vmatprep.mubr.bf16.mxu0 0
      %2357 = vmatmul.mubr.bf16.gmra.mrb[0].mxu0 %v2139
      %v2358 = vpop.f32.mrb[0].mxu0
      %v2359 = vadd.f32 %v2096, %v2358
      %v2360 = vpop.f32.mrb[0].mxu0
      %v2361 = vpop.f32.mrb[0].mxu0
      %v2362 = vadd.f32 %v2096, %v2361
      %v2363 = vpop.f32.mrb[0].mxu0
      %2364 = vmatprep.mubr.bf16.mxu0 0
      %2365 = vmatmul.mubr.bf16.gmra.mrb[0].mxu0 %v2142
      %v2366 = vpop.f32.mrb[0].mxu0
      %v2367 = vadd.f32 %v2096, %v2366
      %v2368 = vpop.f32.mrb[0].mxu0
      %v2369 = vpop.f32.mrb[0].mxu0
      %v2370 = vadd.f32 %v2096, %v2369
      %v2371 = vpop.f32.mrb[0].mxu0
      %2372 = vmatprep.mubr.bf16.mxu0 0
      %2373 = vmatmul.mubr.bf16.gmra.mrb[0].mxu0 %v2145
      %v2374 = vpop.f32.mrb[0].mxu0
      %v2375 = vadd.f32 %v2096, %v2374
      %v2376 = vpop.f32.mrb[0].mxu0
      %v2377 = vpop.f32.mrb[0].mxu0
      %v2378 = vadd.f32 %v2096, %v2377
      %v2379 = vpop.f32.mrb[0].mxu0
      %2380 = vmatprep.mubr.bf16.mxu0 0
      %2381 = vmatmul.mubr.bf16.gmra.mrb[0].mxu0 %v2148
      %v2382 = vpop.f32.mrb[0].mxu0
      %v2383 = vadd.f32 %v2096, %v2382
      %v2384 = vpop.f32.mrb[0].mxu0
      %v2385 = vpop.f32.mrb[0].mxu0
      %v2386 = vadd.f32 %v2096, %v2385
      %v2387 = vpop.f32.mrb[0].mxu0
      %2388 = vmatprep.mubr.bf16.mxu0 0
      %2389 = vmatmul.mubr.bf16.gmra.mrb[0].mxu0 %v2151
      %v2390 = vpop.f32.mrb[0].mxu0
      %v2391 = vadd.f32 %v2096, %v2390
      %v2392 = vpop.f32.mrb[0].mxu0
      %v2393 = vpop.f32.mrb[0].mxu0
      %v2394 = vadd.f32 %v2096, %v2393
      %v2395 = vpop.f32.mrb[0].mxu0
      %2396 = vmatprep.mubr.bf16.mxu0 0
      %2397 = vmatmul.mubr.bf16.gmra.mrb[0].mxu0 %v2154
      %v2398 = vpop.f32.mrb[0].mxu0
      %v2399 = vadd.f32 %v2096, %v2398
      %v2400 = vpop.f32.mrb[0].mxu0
      %v2401 = vpop.f32.mrb[0].mxu0
      %v2402 = vadd.f32 %v2096, %v2401
      %v2403 = vpop.f32.mrb[0].mxu0
      %2404 = vmatprep.mubr.bf16.mxu0 0
      %2405 = vmatmul.mubr.bf16.gmra.mrb[0].mxu0 %v2157
      %v2406 = vpop.f32.mrb[0].mxu0
      %v2407 = vadd.f32 %v2096, %v2406
      %v2408 = vpop.f32.mrb[0].mxu0
      %v2409 = vpop.f32.mrb[0].mxu0
      %v2410 = vadd.f32 %v2096, %v2409
      %v2411 = vpop.f32.mrb[0].mxu0
      %2412 = vmatprep.mubr.bf16.mxu0 0
      %2413 = vmatmul.mubr.bf16.gmra.mrb[0].mxu0 %v2160
      %v2414 = vpop.f32.mrb[0].mxu0
      %v2415 = vadd.f32 %v2096, %v2414
      %v2416 = vpop.f32.mrb[0].mxu0
      %v2417 = vpop.f32.mrb[0].mxu0
      %v2418 = vadd.f32 %v2096, %v2417
      %v2419 = vpop.f32.mrb[0].mxu0
      %2420 = vmatprep.mubr.bf16.mxu0 0
      %2421 = vmatmul.mubr.bf16.gmra.mrb[0].mxu0 %v2163
      %v2422 = vpop.f32.mrb[0].mxu0
      %v2423 = vadd.f32 %v2096, %v2422
      %v2424 = vpop.f32.mrb[0].mxu0
      %v2425 = vpop.f32.mrb[0].mxu0
      %v2426 = vadd.f32 %v2096, %v2425
      %v2427 = vpop.f32.mrb[0].mxu0
      %2428 = vmatprep.mubr.bf16.mxu0 0
      %2429 = vmatmul.mubr.bf16.gmra.mrb[0].mxu0 %v2166
      %v2430 = vpop.f32.mrb[0].mxu0
      %v2431 = vadd.f32 %v2096, %v2430
      %v2432 = vpop.f32.mrb[0].mxu0
      %v2433 = vpop.f32.mrb[0].mxu0
      %v2434 = vadd.f32 %v2096, %v2433
      %v2435 = vpop.f32.mrb[0].mxu0
      %2436 = vmatprep.mubr.bf16.mxu0 0
      %2437 = vmatmul.mubr.bf16.gmra.mrb[0].mxu0 %v2169
      %v2438 = vpop.f32.mrb[0].mxu0
      %v2439 = vadd.f32 %v2096, %v2438
      %v2440 = vpop.f32.mrb[0].mxu0
      %v2441 = vpop.f32.mrb[0].mxu0
      %v2442 = vadd.f32 %v2096, %v2441
      %v2443 = vpop.f32.mrb[0].mxu0
      %2444 = vmatprep.mubr.bf16.mxu0 0
      %2445 = vmatmul.mubr.bf16.gmra.mrb[0].mxu0 %v2172
      %v2446 = vpop.f32.mrb[0].mxu0
      %v2447 = vadd.f32 %v2096, %v2446
      %v2448 = vpop.f32.mrb[0].mxu0
      %v2449 = vpop.f32.mrb[0].mxu0
      %v2450 = vadd.f32 %v2096, %v2449
      %v2451 = vpop.f32.mrb[0].mxu0
      %2452 = vmatprep.mubr.bf16.mxu0 0
      %2453 = vmatmul.mubr.bf16.gmra.mrb[0].mxu0 %v2175
      %v2454 = vpop.f32.mrb[0].mxu0
      %v2455 = vadd.f32 %v2096, %v2454
      %v2456 = vpop.f32.mrb[0].mxu0
      %v2457 = vpop.f32.mrb[0].mxu0
      %v2458 = vadd.f32 %v2096, %v2457
      %v2459 = vpop.f32.mrb[0].mxu0
      %2460 = vmatprep.mubr.bf16.mxu0 0
      %2461 = vmatmul.mubr.bf16.gmra.mrb[0].mxu0 %v2178
      %v2462 = vpop.f32.mrb[0].mxu0
      %v2463 = vadd.f32 %v2096, %v2462
      %v2464 = vpop.f32.mrb[0].mxu0
      %v2465 = vpop.f32.mrb[0].mxu0
      %v2466 = vadd.f32 %v2096, %v2465
      %v2467 = vpop.f32.mrb[0].mxu0
      %2468 = vmatprep.mubr.bf16.mxu0 0
      %2469 = vmatmul.mubr.bf16.gmra.mrb[0].mxu0 %v2181
      %v2470 = vpop.f32.mrb[0].mxu0
      %v2471 = vadd.f32 %v2096, %v2470
      %v2472 = vpop.f32.mrb[0].mxu0
      %v2473 = vpop.f32.mrb[0].mxu0
      %v2474 = vadd.f32 %v2096, %v2473
      %v2475 = vpop.f32.mrb[0].mxu0
      %2476 = vmatprep.mubr.bf16.mxu0 0
      %2477 = vmatmul.mubr.bf16.gmra.mrb[0].mxu0 %v2184
      %v2478 = vpop.f32.mrb[0].mxu0
      %v2479 = vadd.f32 %v2096, %v2478
      %v2480 = vpop.f32.mrb[0].mxu0
      %v2481 = vpop.f32.mrb[0].mxu0
      %v2482 = vadd.f32 %v2096, %v2481
      %v2483 = vpop.f32.mrb[0].mxu0
      %2484 = vmatprep.mubr.bf16.mxu0 0
      %2485 = vmatmul.mubr.bf16.gmra.mrb[0].mxu0 %v2187
      %v2486 = vpop.f32.mrb[0].mxu0
      %v2487 = vadd.f32 %v2096, %v2486
      %v2488 = vpop.f32.mrb[0].mxu0
      %v2489 = vpop.f32.mrb[0].mxu0
      %v2490 = vadd.f32 %v2096, %v2489
      %v2491 = vpop.f32.mrb[0].mxu0
      %2492 = vmatprep.mubr.bf16.mxu0 0
      %2493 = vmatmul.mubr.bf16.gmra.mrb[0].mxu0 %v2190
      %v2494 = vpop.f32.mrb[0].mxu0
      %v2495 = vadd.f32 %v2096, %v2494
      %v2496 = vpop.f32.mrb[0].mxu0
      %v2497 = vpop.f32.mrb[0].mxu0
      %v2498 = vadd.f32 %v2096, %v2497
      %v2499 = vpop.f32.mrb[0].mxu0
      %2500 = vmatprep.mubr.bf16.mxu0 0
      %2501 = vmatmul.mubr.bf16.gmra.mrb[0].mxu0 %v2193
      %v2502 = vpop.f32.mrb[0].mxu0
      %v2503 = vadd.f32 %v2096, %v2502
      %v2504 = vpop.f32.mrb[0].mxu0
      %v2505 = vpop.f32.mrb[0].mxu0
      %v2506 = vadd.f32 %v2096, %v2505
      %v2507 = vpop.f32.mrb[0].mxu0
      %2508 = vmatprep.mubr.bf16.mxu0 0
      %2509 = vmatmul.mubr.bf16.gmra.mrb[0].mxu0 %v2196
      %v2510 = vpop.f32.mrb[0].mxu0
      %v2511 = vadd.f32 %v2096, %v2510
      %v2512 = vpop.f32.mrb[0].mxu0
      %v2513 = vpop.f32.mrb[0].mxu0
      %v2514 = vadd.f32 %v2096, %v2513
      %v2515 = vpop.f32.mrb[0].mxu0
      %2516 = vmatprep.mubr.bf16.mxu0 0
      %2517 = vmatmul.mubr.bf16.gmra.mrb[0].mxu0 %v2199
      %v2518 = vpop.f32.mrb[0].mxu0
      %v2519 = vadd.f32 %v2096, %v2518
      %v2520 = vpop.f32.mrb[0].mxu0
      %v2521 = vpop.f32.mrb[0].mxu0
      %v2522 = vadd.f32 %v2096, %v2521
      %v2523 = vpop.f32.mrb[0].mxu0
      %2524 = vmatprep.mubr.bf16.mxu0 0
      %2525 = vmatmul.mubr.bf16.gmra.mrb[0].mxu0 %v2202
      %v2526 = vpop.f32.mrb[0].mxu0
      %v2527 = vadd.f32 %v2096, %v2526
      %v2528 = vpop.f32.mrb[0].mxu0
      %v2529 = vpop.f32.mrb[0].mxu0
      %v2530 = vadd.f32 %v2096, %v2529
      %v2531 = vpop.f32.mrb[0].mxu0
      %2532 = vmatprep.mubr.bf16.mxu0 0
      %2533 = vmatmul.mubr.bf16.gmra.mrb[0].mxu0 %v2205
      %v2534 = vpop.f32.mrb[0].mxu0
      %v2535 = vadd.f32 %v2096, %v2534
      %v2536 = vpop.f32.mrb[0].mxu0
      %v2537 = vpop.f32.mrb[0].mxu0
      %v2538 = vadd.f32 %v2096, %v2537
      %v2539 = vpop.f32.mrb[0].mxu0
      %2540 = vmatprep.mubr.bf16.mxu0 0
      %2541 = vmatmul.mubr.bf16.gmra.mrb[0].mxu0 %v2208
      %v2542 = vpop.f32.mrb[0].mxu0
      %v2543 = vadd.f32 %v2096, %v2542
      %v2544 = vpop.f32.mrb[0].mxu0
      %v2545 = vpop.f32.mrb[0].mxu0
      %v2546 = vadd.f32 %v2096, %v2545
      %v2547 = vpop.f32.mrb[0].mxu0
      %2548 = vmatprep.mubr.bf16.mxu0 0
      %2549 = vmatmul.mubr.bf16.gmra.mrb[0].mxu0 %v2211
      %v2550 = vpop.f32.mrb[0].mxu0
      %v2551 = vadd.f32 %v2096, %v2550
      %v2552 = vpop.f32.mrb[0].mxu0
      %v2553 = vpop.f32.mrb[0].mxu0
      %v2554 = vadd.f32 %v2096, %v2553
      %v2555 = vpop.f32.mrb[0].mxu0
      %2556 = vmatprep.mubr.bf16.mxu0 0
      %2557 = vmatmul.mubr.bf16.gmra.mrb[0].mxu0 %v2214
      %v2558 = vpop.f32.mrb[0].mxu0
      %v2559 = vadd.f32 %v2096, %v2558
      %v2560 = vpop.f32.mrb[0].mxu0
      %v2561 = vpop.f32.mrb[0].mxu0
      %v2562 = vpop.f32.mrb[0].mxu0
      %2563 = vdwg.mxu0
      %v2564 = vmax.f32 %v2255, 0.0
      %v2565 = vmax.f32 %v2258, 0.0
      %v2566 = vmax.f32 %v2263, 0.0
      %v2567 = vmax.f32 %v2266, 0.0
      %v2568 = vmax.f32 %v2271, 0.0
      %v2569 = vmax.f32 %v2274, 0.0
      %v2570 = vmax.f32 %v2279, 0.0
      %v2571 = vmax.f32 %v2282, 0.0
      %v2572 = vmax.f32 %v2287, 0.0
      %v2573 = vmax.f32 %v2290, 0.0
      %v2574 = vmax.f32 %v2295, 0.0
      %v2575 = vmax.f32 %v2298, 0.0
      %v2576 = vmax.f32 %v2303, 0.0
      %v2577 = vmax.f32 %v2306, 0.0
      %v2578 = vmax.f32 %v2311, 0.0
      %v2579 = vmax.f32 %v2314, 0.0
      %v2580 = vmax.f32 %v2319, 0.0
      %v2581 = vmax.f32 %v2322, 0.0
      %v2582 = vmax.f32 %v2327, 0.0
      %v2583 = vmax.f32 %v2330, 0.0
      %v2584 = vmax.f32 %v2335, 0.0
      %v2585 = vmax.f32 %v2338, 0.0
      %v2586 = vmax.f32 %v2343, 0.0
      %v2587 = vmax.f32 %v2346, 0.0
      %v2588 = vmax.f32 %v2351, 0.0
      %v2589 = vmax.f32 %v2354, 0.0
      %v2590 = vmax.f32 %v2359, 0.0
      %v2591 = vmax.f32 %v2362, 0.0
      %v2592 = vmax.f32 %v2367, 0.0
      %v2593 = vmax.f32 %v2370, 0.0
      %v2594 = vmax.f32 %v2375, 0.0
      %v2595 = vmax.f32 %v2378, 0.0
      %v2596 = vmax.f32 %v2383, 0.0
      %v2597 = vmax.f32 %v2386, 0.0
      %v2598 = vmax.f32 %v2391, 0.0
      %v2599 = vmax.f32 %v2394, 0.0
      %v2600 = vmax.f32 %v2399, 0.0
      %v2601 = vmax.f32 %v2402, 0.0
      %v2602 = vmax.f32 %v2407, 0.0
      %v2603 = vmax.f32 %v2410, 0.0
      %v2604 = vmax.f32 %v2415, 0.0
      %v2605 = vmax.f32 %v2418, 0.0
      %v2606 = vmax.f32 %v2423, 0.0
      %v2607 = vmax.f32 %v2426, 0.0
      %v2608 = vmax.f32 %v2431, 0.0
      %v2609 = vmax.f32 %v2434, 0.0
      %v2610 = vmax.f32 %v2439, 0.0
      %v2611 = vmax.f32 %v2442, 0.0
      %v2612 = vmax.f32 %v2447, 0.0
      %v2613 = vmax.f32 %v2450, 0.0
      %v2614 = vmax.f32 %v2455, 0.0
      %v2615 = vmax.f32 %v2458, 0.0
      %v2616 = vmax.f32 %v2463, 0.0
      %v2617 = vmax.f32 %v2466, 0.0
      %v2618 = vmax.f32 %v2471, 0.0
      %v2619 = vmax.f32 %v2474, 0.0
      %v2620 = vmax.f32 %v2479, 0.0
      %v2621 = vmax.f32 %v2482, 0.0
      %v2622 = vmax.f32 %v2487, 0.0
      %v2623 = vmax.f32 %v2490, 0.0
      %v2624 = vmax.f32 %v2495, 0.0
      %v2625 = vmax.f32 %v2498, 0.0
      %v2626 = vmax.f32 %v2503, 0.0
      %v2627 = vmax.f32 %v2506, 0.0
      %v2628 = vmax.f32 %v2511, 0.0
      %v2629 = vmax.f32 %v2514, 0.0
      %v2630 = vmax.f32 %v2519, 0.0
      %v2631 = vmax.f32 %v2522, 0.0
      %v2632 = vmax.f32 %v2527, 0.0
      %v2633 = vmax.f32 %v2530, 0.0
      %v2634 = vmax.f32 %v2535, 0.0
      %v2635 = vmax.f32 %v2538, 0.0
      %v2636 = vmax.f32 %v2543, 0.0
      %v2637 = vmax.f32 %v2546, 0.0
      %v2638 = vmax.f32 %v2551, 0.0
      %v2639 = vmax.f32 %v2554, 0.0
      %v2640 = vmax.f32 %v2559, 0.0
      %v2641 = vpack.c.bf16 %v2565, %v2564
      %v2642 = vpack.c.bf16 %v2567, %v2566
      %v2643 = vpack.c.bf16 %v2569, %v2568
      %v2644 = vpack.c.bf16 %v2571, %v2570
      %v2645 = vpack.c.bf16 %v2573, %v2572
      %v2646 = vpack.c.bf16 %v2575, %v2574
      %v2647 = vpack.c.bf16 %v2577, %v2576
      %v2648 = vpack.c.bf16 %v2579, %v2578
      %v2649 = vpack.c.bf16 %v2581, %v2580
      %v2650 = vpack.c.bf16 %v2583, %v2582
      %v2651 = vpack.c.bf16 %v2585, %v2584
      %v2652 = vpack.c.bf16 %v2587, %v2586
      %v2653 = vpack.c.bf16 %v2589, %v2588
      %v2654 = vpack.c.bf16 %v2591, %v2590
      %v2655 = vpack.c.bf16 %v2593, %v2592
      %v2656 = vpack.c.bf16 %v2595, %v2594
      %v2657 = vpack.c.bf16 %v2597, %v2596
      %v2658 = vpack.c.bf16 %v2599, %v2598
      %v2659 = vpack.c.bf16 %v2601, %v2600
      %v2660 = vpack.c.bf16 %v2603, %v2602
      %v2661 = vpack.c.bf16 %v2605, %v2604
      %v2662 = vpack.c.bf16 %v2607, %v2606
      %v2663 = vpack.c.bf16 %v2609, %v2608
      %v2664 = vpack.c.bf16 %v2611, %v2610
      %v2665 = vpack.c.bf16 %v2613, %v2612
      %v2666 = vpack.c.bf16 %v2615, %v2614
      %v2667 = vpack.c.bf16 %v2617, %v2616
      %v2668 = vpack.c.bf16 %v2619, %v2618
      %v2669 = vpack.c.bf16 %v2621, %v2620
      %v2670 = vpack.c.bf16 %v2623, %v2622
      %v2671 = vpack.c.bf16 %v2625, %v2624
      %v2672 = vpack.c.bf16 %v2627, %v2626
      %v2673 = vpack.c.bf16 %v2629, %v2628
      %v2674 = vpack.c.bf16 %v2631, %v2630
      %v2675 = vpack.c.bf16 %v2633, %v2632
      %v2676 = vpack.c.bf16 %v2635, %v2634
      %v2677 = vpack.c.bf16 %v2637, %v2636
      %v2678 = vpack.c.bf16 %v2639, %v2638
      %v2679 = vpack.c.bf16 %v2640, %v2640
      %v2680 = vld [vmem:[%s2] sm:$0xf]
      %v2681 = vld [vmem:[%s2 + $0x4] sm:$0xf]
      %v2682 = vld [vmem:[%s2 + $0x8] sm:$0xf]
      %v2683 = vld [vmem:[%s2 + $0xc] sm:$0xf]
      %v2684 = vld [vmem:[%s2 + $0x10] sm:$0xf]
      %v2685 = vld [vmem:[%s2 + $0x14] sm:$0xf]
      %v2686 = vld [vmem:[%s2 + $0x18] sm:$0xf]
      %v2687 = vld [vmem:[%s2 + $0x1c] sm:$0xf]
      %v2688 = vld [vmem:[%s3] sm:$0x1]
      %v2690 = vlaneseq
      %v2691 = vshrl.u32 %v2690, 7
      %v2692 = vsub.s32 0, %v2691
      %v2693 = vrot.slane %v2688, %v2692
      %v2703 = vunpack.c.l.b16 %v2680
      %v2704 = vunpack.c.l.b16 %v2681
      %v2705 = vunpack.c.l.b16 %v2682
      %v2706 = vunpack.c.l.b16 %v2683
      %v2707 = vunpack.c.l.b16 %v2684
      %v2708 = vunpack.c.l.b16 %v2685
      %v2709 = vunpack.c.l.b16 %v2686
      %v2710 = vunpack.c.l.b16 %v2687
      %v2711 = vpack.c.b16 %v2704, %v2703
      %v2712 = vpack.c.b16 %v2706, %v2705
      %v2713 = vpack.c.b16 %v2708, %v2707
      %v2714 = vpack.c.b16 %v2710, %v2709
      %vm2719 = vcmask 523264
      %v2721 = vsel %vm2719, %v2641, 0
      %v2724 = vsel %vm2719, %v2642, 0
      %v2727 = vsel %vm2719, %v2643, 0
      %v2730 = vsel %vm2719, %v2644, 0
      %v2733 = vsel %vm2719, %v2645, 0
      %v2736 = vsel %vm2719, %v2646, 0
      %v2739 = vsel %vm2719, %v2647, 0
      %v2742 = vsel %vm2719, %v2648, 0
      %v2745 = vsel %vm2719, %v2649, 0
      %v2748 = vsel %vm2719, %v2650, 0
      %v2751 = vsel %vm2719, %v2651, 0
      %v2754 = vsel %vm2719, %v2652, 0
      %v2757 = vsel %vm2719, %v2653, 0
      %v2760 = vsel %vm2719, %v2654, 0
      %v2763 = vsel %vm2719, %v2655, 0
      %v2766 = vsel %vm2719, %v2656, 0
      %v2769 = vsel %vm2719, %v2657, 0
      %v2772 = vsel %vm2719, %v2658, 0
      %v2775 = vsel %vm2719, %v2659, 0
      %v2778 = vsel %vm2719, %v2660, 0
      %v2781 = vsel %vm2719, %v2661, 0
      %v2784 = vsel %vm2719, %v2662, 0
      %v2787 = vsel %vm2719, %v2663, 0
      %v2790 = vsel %vm2719, %v2664, 0
      %v2793 = vsel %vm2719, %v2665, 0
      %v2796 = vsel %vm2719, %v2666, 0
      %v2799 = vsel %vm2719, %v2667, 0
      %v2802 = vsel %vm2719, %v2668, 0
      %v2805 = vsel %vm2719, %v2669, 0
      %v2808 = vsel %vm2719, %v2670, 0
      %v2811 = vsel %vm2719, %v2671, 0
      %v2814 = vsel %vm2719, %v2672, 0
      %v2817 = vsel %vm2719, %v2673, 0
      %v2820 = vsel %vm2719, %v2674, 0
      %v2823 = vsel %vm2719, %v2675, 0
      %v2826 = vsel %vm2719, %v2676, 0
      %v2829 = vsel %vm2719, %v2677, 0
      %v2832 = vsel %vm2719, %v2678, 0
      %v2835 = vsel %vm2719, %v2679, 0
      %2837 = vmatprep.subr.bf16.mxu0 0
      %2838 = vmatpush1.bf16.msra.mxu0 %v2711
      %2839 = vmatprep.subr.bf16.mxu0 0
      %2840 = vmatpush1.bf16.msra.mxu0 %v2712
      %2841 = vmatprep.subr.bf16.mxu0 0
      %2842 = vmatpush1.bf16.msra.mxu0 %v2713
      %2843 = vmatprep.subr.bf16.mxu0 0
      %2844 = vmatpush1.bf16.msra.mxu0 %v2714
      %2845 = vmatprep.subr.bf16.mxu0 0
      %2846 = vmatpush1.bf16.msra.mxu0 0
      %2847 = vmatprep.subr.bf16.mxu0 0
      %2848 = vmatpush1.bf16.msra.mxu0 0
      %2849 = vmatprep.subr.bf16.mxu0 0
      %2850 = vmatpush1.bf16.msra.mxu0 0
      %2851 = vmatprep.subr.bf16.mxu0 0
      %2852 = vmatpush1.bf16.msra.mxu0 0
      %2853 = vmatprep.subr.bf16.mxu0 0
      %2854 = vmatpush1.bf16.msra.mxu0 0
      %2855 = vmatprep.subr.bf16.mxu0 0
      %2856 = vmatpush1.bf16.msra.mxu0 0
      %2857 = vmatprep.subr.bf16.mxu0 0
      %2858 = vmatpush1.bf16.msra.mxu0 0
      %2859 = vmatprep.subr.bf16.mxu0 0
      %2860 = vmatpush1.bf16.msra.mxu0 0
      %2861 = vmatprep.subr.bf16.mxu0 0
      %2862 = vmatpush1.bf16.msra.mxu0 0
      %2863 = vmatprep.subr.bf16.mxu0 0
      %2864 = vmatpush1.bf16.msra.mxu0 0
      %2865 = vmatprep.subr.bf16.mxu0 0
      %2866 = vmatpush1.bf16.msra.mxu0 0
      %2867 = vmatprep.subr.bf16.mxu0 0
      %2868 = vmatpush1.bf16.msra.mxu0 0
      %2869 = vmatprep.mubr.bf16.mxu0 0
      %2870 = vmatmul.mubr.bf16.gmra.mrb[0].mxu0 %v2721
      %v2871 = vpop.f32.mrb[0].mxu0
      %v2872 = vadd.f32 %v2693, %v2871
      %v2873 = vpop.f32.mrb[0].mxu0
      %v2874 = vpop.f32.mrb[0].mxu0
      %v2875 = vadd.f32 %v2693, %v2874
      %v2876 = vpop.f32.mrb[0].mxu0
      %2877 = vmatprep.mubr.bf16.mxu0 0
      %2878 = vmatmul.mubr.bf16.gmra.mrb[0].mxu0 %v2724
      %v2879 = vpop.f32.mrb[0].mxu0
      %v2880 = vadd.f32 %v2693, %v2879
      %v2881 = vpop.f32.mrb[0].mxu0
      %v2882 = vpop.f32.mrb[0].mxu0
      %v2883 = vadd.f32 %v2693, %v2882
      %v2884 = vpop.f32.mrb[0].mxu0
      %2885 = vmatprep.mubr.bf16.mxu0 0
      %2886 = vmatmul.mubr.bf16.gmra.mrb[0].mxu0 %v2727
      %v2887 = vpop.f32.mrb[0].mxu0
      %v2888 = vadd.f32 %v2693, %v2887
      %v2889 = vpop.f32.mrb[0].mxu0
      %v2890 = vpop.f32.mrb[0].mxu0
      %v2891 = vadd.f32 %v2693, %v2890
      %v2892 = vpop.f32.mrb[0].mxu0
      %2893 = vmatprep.mubr.bf16.mxu0 0
      %2894 = vmatmul.mubr.bf16.gmra.mrb[0].mxu0 %v2730
      %v2895 = vpop.f32.mrb[0].mxu0
      %v2896 = vadd.f32 %v2693, %v2895
      %v2897 = vpop.f32.mrb[0].mxu0
      %v2898 = vpop.f32.mrb[0].mxu0
      %v2899 = vadd.f32 %v2693, %v2898
      %v2900 = vpop.f32.mrb[0].mxu0
      %2901 = vmatprep.mubr.bf16.mxu0 0
      %2902 = vmatmul.mubr.bf16.gmra.mrb[0].mxu0 %v2733
      %v2903 = vpop.f32.mrb[0].mxu0
      %v2904 = vadd.f32 %v2693, %v2903
      %v2905 = vpop.f32.mrb[0].mxu0
      %v2906 = vpop.f32.mrb[0].mxu0
      %v2907 = vadd.f32 %v2693, %v2906
      %v2908 = vpop.f32.mrb[0].mxu0
      %2909 = vmatprep.mubr.bf16.mxu0 0
      %2910 = vmatmul.mubr.bf16.gmra.mrb[0].mxu0 %v2736
      %v2911 = vpop.f32.mrb[0].mxu0
      %v2912 = vadd.f32 %v2693, %v2911
      %v2913 = vpop.f32.mrb[0].mxu0
      %v2914 = vpop.f32.mrb[0].mxu0
      %v2915 = vadd.f32 %v2693, %v2914
      %v2916 = vpop.f32.mrb[0].mxu0
      %2917 = vmatprep.mubr.bf16.mxu0 0
      %2918 = vmatmul.mubr.bf16.gmra.mrb[0].mxu0 %v2739
      %v2919 = vpop.f32.mrb[0].mxu0
      %v2920 = vadd.f32 %v2693, %v2919
      %v2921 = vpop.f32.mrb[0].mxu0
      %v2922 = vpop.f32.mrb[0].mxu0
      %v2923 = vadd.f32 %v2693, %v2922
      %v2924 = vpop.f32.mrb[0].mxu0
      %2925 = vmatprep.mubr.bf16.mxu0 0
      %2926 = vmatmul.mubr.bf16.gmra.mrb[0].mxu0 %v2742
      %v2927 = vpop.f32.mrb[0].mxu0
      %v2928 = vadd.f32 %v2693, %v2927
      %v2929 = vpop.f32.mrb[0].mxu0
      %v2930 = vpop.f32.mrb[0].mxu0
      %v2931 = vadd.f32 %v2693, %v2930
      %v2932 = vpop.f32.mrb[0].mxu0
      %2933 = vmatprep.mubr.bf16.mxu0 0
      %2934 = vmatmul.mubr.bf16.gmra.mrb[0].mxu0 %v2745
      %v2935 = vpop.f32.mrb[0].mxu0
      %v2936 = vadd.f32 %v2693, %v2935
      %v2937 = vpop.f32.mrb[0].mxu0
      %v2938 = vpop.f32.mrb[0].mxu0
      %v2939 = vadd.f32 %v2693, %v2938
      %v2940 = vpop.f32.mrb[0].mxu0
      %2941 = vmatprep.mubr.bf16.mxu0 0
      %2942 = vmatmul.mubr.bf16.gmra.mrb[0].mxu0 %v2748
      %v2943 = vpop.f32.mrb[0].mxu0
      %v2944 = vadd.f32 %v2693, %v2943
      %v2945 = vpop.f32.mrb[0].mxu0
      %v2946 = vpop.f32.mrb[0].mxu0
      %v2947 = vadd.f32 %v2693, %v2946
      %v2948 = vpop.f32.mrb[0].mxu0
      %2949 = vmatprep.mubr.bf16.mxu0 0
      %2950 = vmatmul.mubr.bf16.gmra.mrb[0].mxu0 %v2751
      %v2951 = vpop.f32.mrb[0].mxu0
      %v2952 = vadd.f32 %v2693, %v2951
      %v2953 = vpop.f32.mrb[0].mxu0
      %v2954 = vpop.f32.mrb[0].mxu0
      %v2955 = vadd.f32 %v2693, %v2954
      %v2956 = vpop.f32.mrb[0].mxu0
      %2957 = vmatprep.mubr.bf16.mxu0 0
      %2958 = vmatmul.mubr.bf16.gmra.mrb[0].mxu0 %v2754
      %v2959 = vpop.f32.mrb[0].mxu0
      %v2960 = vadd.f32 %v2693, %v2959
      %v2961 = vpop.f32.mrb[0].mxu0
      %v2962 = vpop.f32.mrb[0].mxu0
      %v2963 = vadd.f32 %v2693, %v2962
      %v2964 = vpop.f32.mrb[0].mxu0
      %2965 = vmatprep.mubr.bf16.mxu0 0
      %2966 = vmatmul.mubr.bf16.gmra.mrb[0].mxu0 %v2757
      %v2967 = vpop.f32.mrb[0].mxu0
      %v2968 = vadd.f32 %v2693, %v2967
      %v2969 = vpop.f32.mrb[0].mxu0
      %v2970 = vpop.f32.mrb[0].mxu0
      %v2971 = vadd.f32 %v2693, %v2970
      %v2972 = vpop.f32.mrb[0].mxu0
      %2973 = vmatprep.mubr.bf16.mxu0 0
      %2974 = vmatmul.mubr.bf16.gmra.mrb[0].mxu0 %v2760
      %v2975 = vpop.f32.mrb[0].mxu0
      %v2976 = vadd.f32 %v2693, %v2975
      %v2977 = vpop.f32.mrb[0].mxu0
      %v2978 = vpop.f32.mrb[0].mxu0
      %v2979 = vadd.f32 %v2693, %v2978
      %v2980 = vpop.f32.mrb[0].mxu0
      %2981 = vmatprep.mubr.bf16.mxu0 0
      %2982 = vmatmul.mubr.bf16.gmra.mrb[0].mxu0 %v2763
      %v2983 = vpop.f32.mrb[0].mxu0
      %v2984 = vadd.f32 %v2693, %v2983
      %v2985 = vpop.f32.mrb[0].mxu0
      %v2986 = vpop.f32.mrb[0].mxu0
      %v2987 = vadd.f32 %v2693, %v2986
      %v2988 = vpop.f32.mrb[0].mxu0
      %2989 = vmatprep.mubr.bf16.mxu0 0
      %2990 = vmatmul.mubr.bf16.gmra.mrb[0].mxu0 %v2766
      %v2991 = vpop.f32.mrb[0].mxu0
      %v2992 = vadd.f32 %v2693, %v2991
      %v2993 = vpop.f32.mrb[0].mxu0
      %v2994 = vpop.f32.mrb[0].mxu0
      %v2995 = vadd.f32 %v2693, %v2994
      %v2996 = vpop.f32.mrb[0].mxu0
      %2997 = vmatprep.mubr.bf16.mxu0 0
      %2998 = vmatmul.mubr.bf16.gmra.mrb[0].mxu0 %v2769
      %v2999 = vpop.f32.mrb[0].mxu0
      %v3000 = vadd.f32 %v2693, %v2999
      %v3001 = vpop.f32.mrb[0].mxu0
      %v3002 = vpop.f32.mrb[0].mxu0
      %v3003 = vadd.f32 %v2693, %v3002
      %v3004 = vpop.f32.mrb[0].mxu0
      %3005 = vmatprep.mubr.bf16.mxu0 0
      %3006 = vmatmul.mubr.bf16.gmra.mrb[0].mxu0 %v2772
      %v3007 = vpop.f32.mrb[0].mxu0
      %v3008 = vadd.f32 %v2693, %v3007
      %v3009 = vpop.f32.mrb[0].mxu0
      %v3010 = vpop.f32.mrb[0].mxu0
      %v3011 = vadd.f32 %v2693, %v3010
      %v3012 = vpop.f32.mrb[0].mxu0
      %3013 = vmatprep.mubr.bf16.mxu0 0
      %3014 = vmatmul.mubr.bf16.gmra.mrb[0].mxu0 %v2775
      %v3015 = vpop.f32.mrb[0].mxu0
      %v3016 = vadd.f32 %v2693, %v3015
      %v3017 = vpop.f32.mrb[0].mxu0
      %v3018 = vpop.f32.mrb[0].mxu0
      %v3019 = vadd.f32 %v2693, %v3018
      %v3020 = vpop.f32.mrb[0].mxu0
      %3021 = vmatprep.mubr.bf16.mxu0 0
      %3022 = vmatmul.mubr.bf16.gmra.mrb[0].mxu0 %v2778
      %v3023 = vpop.f32.mrb[0].mxu0
      %v3024 = vadd.f32 %v2693, %v3023
      %v3025 = vpop.f32.mrb[0].mxu0
      %v3026 = vpop.f32.mrb[0].mxu0
      %v3027 = vadd.f32 %v2693, %v3026
      %v3028 = vpop.f32.mrb[0].mxu0
      %3029 = vmatprep.mubr.bf16.mxu0 0
      %3030 = vmatmul.mubr.bf16.gmra.mrb[0].mxu0 %v2781
      %v3031 = vpop.f32.mrb[0].mxu0
      %v3032 = vadd.f32 %v2693, %v3031
      %v3033 = vpop.f32.mrb[0].mxu0
      %v3034 = vpop.f32.mrb[0].mxu0
      %v3035 = vadd.f32 %v2693, %v3034
      %v3036 = vpop.f32.mrb[0].mxu0
      %3037 = vmatprep.mubr.bf16.mxu0 0
      %3038 = vmatmul.mubr.bf16.gmra.mrb[0].mxu0 %v2784
      %v3039 = vpop.f32.mrb[0].mxu0
      %v3040 = vadd.f32 %v2693, %v3039
      %v3041 = vpop.f32.mrb[0].mxu0
      %v3042 = vpop.f32.mrb[0].mxu0
      %v3043 = vadd.f32 %v2693, %v3042
      %v3044 = vpop.f32.mrb[0].mxu0
      %3045 = vmatprep.mubr.bf16.mxu0 0
      %3046 = vmatmul.mubr.bf16.gmra.mrb[0].mxu0 %v2787
      %v3047 = vpop.f32.mrb[0].mxu0
      %v3048 = vadd.f32 %v2693, %v3047
      %v3049 = vpop.f32.mrb[0].mxu0
      %v3050 = vpop.f32.mrb[0].mxu0
      %v3051 = vadd.f32 %v2693, %v3050
      %v3052 = vpop.f32.mrb[0].mxu0
      %3053 = vmatprep.mubr.bf16.mxu0 0
      %3054 = vmatmul.mubr.bf16.gmra.mrb[0].mxu0 %v2790
      %v3055 = vpop.f32.mrb[0].mxu0
      %v3056 = vadd.f32 %v2693, %v3055
      %v3057 = vpop.f32.mrb[0].mxu0
      %v3058 = vpop.f32.mrb[0].mxu0
      %v3059 = vadd.f32 %v2693, %v3058
      %v3060 = vpop.f32.mrb[0].mxu0
      %3061 = vmatprep.mubr.bf16.mxu0 0
      %3062 = vmatmul.mubr.bf16.gmra.mrb[0].mxu0 %v2793
      %v3063 = vpop.f32.mrb[0].mxu0
      %v3064 = vadd.f32 %v2693, %v3063
      %v3065 = vpop.f32.mrb[0].mxu0
      %v3066 = vpop.f32.mrb[0].mxu0
      %v3067 = vadd.f32 %v2693, %v3066
      %v3068 = vpop.f32.mrb[0].mxu0
      %3069 = vmatprep.mubr.bf16.mxu0 0
      %3070 = vmatmul.mubr.bf16.gmra.mrb[0].mxu0 %v2796
      %v3071 = vpop.f32.mrb[0].mxu0
      %v3072 = vadd.f32 %v2693, %v3071
      %v3073 = vpop.f32.mrb[0].mxu0
      %v3074 = vpop.f32.mrb[0].mxu0
      %v3075 = vadd.f32 %v2693, %v3074
      %v3076 = vpop.f32.mrb[0].mxu0
      %3077 = vmatprep.mubr.bf16.mxu0 0
      %3078 = vmatmul.mubr.bf16.gmra.mrb[0].mxu0 %v2799
      %v3079 = vpop.f32.mrb[0].mxu0
      %v3080 = vadd.f32 %v2693, %v3079
      %v3081 = vpop.f32.mrb[0].mxu0
      %v3082 = vpop.f32.mrb[0].mxu0
      %v3083 = vadd.f32 %v2693, %v3082
      %v3084 = vpop.f32.mrb[0].mxu0
      %3085 = vmatprep.mubr.bf16.mxu0 0
      %3086 = vmatmul.mubr.bf16.gmra.mrb[0].mxu0 %v2802
      %v3087 = vpop.f32.mrb[0].mxu0
      %v3088 = vadd.f32 %v2693, %v3087
      %v3089 = vpop.f32.mrb[0].mxu0
      %v3090 = vpop.f32.mrb[0].mxu0
      %v3091 = vadd.f32 %v2693, %v3090
      %v3092 = vpop.f32.mrb[0].mxu0
      %3093 = vmatprep.mubr.bf16.mxu0 0
      %3094 = vmatmul.mubr.bf16.gmra.mrb[0].mxu0 %v2805
      %v3095 = vpop.f32.mrb[0].mxu0
      %v3096 = vadd.f32 %v2693, %v3095
      %v3097 = vpop.f32.mrb[0].mxu0
      %v3098 = vpop.f32.mrb[0].mxu0
      %v3099 = vadd.f32 %v2693, %v3098
      %v3100 = vpop.f32.mrb[0].mxu0
      %3101 = vmatprep.mubr.bf16.mxu0 0
      %3102 = vmatmul.mubr.bf16.gmra.mrb[0].mxu0 %v2808
      %v3103 = vpop.f32.mrb[0].mxu0
      %v3104 = vadd.f32 %v2693, %v3103
      %v3105 = vpop.f32.mrb[0].mxu0
      %v3106 = vpop.f32.mrb[0].mxu0
      %v3107 = vadd.f32 %v2693, %v3106
      %v3108 = vpop.f32.mrb[0].mxu0
      %3109 = vmatprep.mubr.bf16.mxu0 0
      %3110 = vmatmul.mubr.bf16.gmra.mrb[0].mxu0 %v2811
      %v3111 = vpop.f32.mrb[0].mxu0
      %v3112 = vadd.f32 %v2693, %v3111
      %v3113 = vpop.f32.mrb[0].mxu0
      %v3114 = vpop.f32.mrb[0].mxu0
      %v3115 = vadd.f32 %v2693, %v3114
      %v3116 = vpop.f32.mrb[0].mxu0
      %3117 = vmatprep.mubr.bf16.mxu0 0
      %3118 = vmatmul.mubr.bf16.gmra.mrb[0].mxu0 %v2814
      %v3119 = vpop.f32.mrb[0].mxu0
      %v3120 = vadd.f32 %v2693, %v3119
      %v3121 = vpop.f32.mrb[0].mxu0
      %v3122 = vpop.f32.mrb[0].mxu0
      %v3123 = vadd.f32 %v2693, %v3122
      %v3124 = vpop.f32.mrb[0].mxu0
      %3125 = vmatprep.mubr.bf16.mxu0 0
      %3126 = vmatmul.mubr.bf16.gmra.mrb[0].mxu0 %v2817
      %v3127 = vpop.f32.mrb[0].mxu0
      %v3128 = vadd.f32 %v2693, %v3127
      %v3129 = vpop.f32.mrb[0].mxu0
      %v3130 = vpop.f32.mrb[0].mxu0
      %v3131 = vadd.f32 %v2693, %v3130
      %v3132 = vpop.f32.mrb[0].mxu0
      %3133 = vmatprep.mubr.bf16.mxu0 0
      %3134 = vmatmul.mubr.bf16.gmra.mrb[0].mxu0 %v2820
      %v3135 = vpop.f32.mrb[0].mxu0
      %v3136 = vadd.f32 %v2693, %v3135
      %v3137 = vpop.f32.mrb[0].mxu0
      %v3138 = vpop.f32.mrb[0].mxu0
      %v3139 = vadd.f32 %v2693, %v3138
      %v3140 = vpop.f32.mrb[0].mxu0
      %3141 = vmatprep.mubr.bf16.mxu0 0
      %3142 = vmatmul.mubr.bf16.gmra.mrb[0].mxu0 %v2823
      %v3143 = vpop.f32.mrb[0].mxu0
      %v3144 = vadd.f32 %v2693, %v3143
      %v3145 = vpop.f32.mrb[0].mxu0
      %v3146 = vpop.f32.mrb[0].mxu0
      %v3147 = vadd.f32 %v2693, %v3146
      %v3148 = vpop.f32.mrb[0].mxu0
      %3149 = vmatprep.mubr.bf16.mxu0 0
      %3150 = vmatmul.mubr.bf16.gmra.mrb[0].mxu0 %v2826
      %v3151 = vpop.f32.mrb[0].mxu0
      %v3152 = vadd.f32 %v2693, %v3151
      %v3153 = vpop.f32.mrb[0].mxu0
      %v3154 = vpop.f32.mrb[0].mxu0
      %v3155 = vadd.f32 %v2693, %v3154
      %v3156 = vpop.f32.mrb[0].mxu0
      %3157 = vmatprep.mubr.bf16.mxu0 0
      %3158 = vmatmul.mubr.bf16.gmra.mrb[0].mxu0 %v2829
      %v3159 = vpop.f32.mrb[0].mxu0
      %v3160 = vadd.f32 %v2693, %v3159
      %v3161 = vpop.f32.mrb[0].mxu0
      %v3162 = vpop.f32.mrb[0].mxu0
      %v3163 = vadd.f32 %v2693, %v3162
      %v3164 = vpop.f32.mrb[0].mxu0
      %3165 = vmatprep.mubr.bf16.mxu0 0
      %3166 = vmatmul.mubr.bf16.gmra.mrb[0].mxu0 %v2832
      %v3167 = vpop.f32.mrb[0].mxu0
      %v3168 = vadd.f32 %v2693, %v3167
      %v3169 = vpop.f32.mrb[0].mxu0
      %v3170 = vpop.f32.mrb[0].mxu0
      %v3171 = vadd.f32 %v2693, %v3170
      %v3172 = vpop.f32.mrb[0].mxu0
      %3173 = vmatprep.mubr.bf16.mxu0 0
      %3174 = vmatmul.mubr.bf16.gmra.mrb[0].mxu0 %v2835
      %v3175 = vpop.f32.mrb[0].mxu0
      %v3176 = vadd.f32 %v2693, %v3175
      %v3177 = vpop.f32.mrb[0].mxu0
      %v3178 = vpop.f32.mrb[0].mxu0
      %v3179 = vpop.f32.mrb[0].mxu0
      %3180 = vdwg.mxu0
      %v3181 = vmax.f32 %v2872, 0.0
      %v3182 = vmax.f32 %v2875, 0.0
      %v3183 = vmax.f32 %v2880, 0.0
      %v3184 = vmax.f32 %v2883, 0.0
      %v3185 = vmax.f32 %v2888, 0.0
      %v3186 = vmax.f32 %v2891, 0.0
      %v3187 = vmax.f32 %v2896, 0.0
      %v3188 = vmax.f32 %v2899, 0.0
      %v3189 = vmax.f32 %v2904, 0.0
      %v3190 = vmax.f32 %v2907, 0.0
      %v3191 = vmax.f32 %v2912, 0.0
      %v3192 = vmax.f32 %v2915, 0.0
      %v3193 = vmax.f32 %v2920, 0.0
      %v3194 = vmax.f32 %v2923, 0.0
      %v3195 = vmax.f32 %v2928, 0.0
      %v3196 = vmax.f32 %v2931, 0.0
      %v3197 = vmax.f32 %v2936, 0.0
      %v3198 = vmax.f32 %v2939, 0.0
      %v3199 = vmax.f32 %v2944, 0.0
      %v3200 = vmax.f32 %v2947, 0.0
      %v3201 = vmax.f32 %v2952, 0.0
      %v3202 = vmax.f32 %v2955, 0.0
      %v3203 = vmax.f32 %v2960, 0.0
      %v3204 = vmax.f32 %v2963, 0.0
      %v3205 = vmax.f32 %v2968, 0.0
      %v3206 = vmax.f32 %v2971, 0.0
      %v3207 = vmax.f32 %v2976, 0.0
      %v3208 = vmax.f32 %v2979, 0.0
      %v3209 = vmax.f32 %v2984, 0.0
      %v3210 = vmax.f32 %v2987, 0.0
      %v3211 = vmax.f32 %v2992, 0.0
      %v3212 = vmax.f32 %v2995, 0.0
      %v3213 = vmax.f32 %v3000, 0.0
      %v3214 = vmax.f32 %v3003, 0.0
      %v3215 = vmax.f32 %v3008, 0.0
      %v3216 = vmax.f32 %v3011, 0.0
      %v3217 = vmax.f32 %v3016, 0.0
      %v3218 = vmax.f32 %v3019, 0.0
      %v3219 = vmax.f32 %v3024, 0.0
      %v3220 = vmax.f32 %v3027, 0.0
      %v3221 = vmax.f32 %v3032, 0.0
      %v3222 = vmax.f32 %v3035, 0.0
      %v3223 = vmax.f32 %v3040, 0.0
      %v3224 = vmax.f32 %v3043, 0.0
      %v3225 = vmax.f32 %v3048, 0.0
      %v3226 = vmax.f32 %v3051, 0.0
      %v3227 = vmax.f32 %v3056, 0.0
      %v3228 = vmax.f32 %v3059, 0.0
      %v3229 = vmax.f32 %v3064, 0.0
      %v3230 = vmax.f32 %v3067, 0.0
      %v3231 = vmax.f32 %v3072, 0.0
      %v3232 = vmax.f32 %v3075, 0.0
      %v3233 = vmax.f32 %v3080, 0.0
      %v3234 = vmax.f32 %v3083, 0.0
      %v3235 = vmax.f32 %v3088, 0.0
      %v3236 = vmax.f32 %v3091, 0.0
      %v3237 = vmax.f32 %v3096, 0.0
      %v3238 = vmax.f32 %v3099, 0.0
      %v3239 = vmax.f32 %v3104, 0.0
      %v3240 = vmax.f32 %v3107, 0.0
      %v3241 = vmax.f32 %v3112, 0.0
      %v3242 = vmax.f32 %v3115, 0.0
      %v3243 = vmax.f32 %v3120, 0.0
      %v3244 = vmax.f32 %v3123, 0.0
      %v3245 = vmax.f32 %v3128, 0.0
      %v3246 = vmax.f32 %v3131, 0.0
      %v3247 = vmax.f32 %v3136, 0.0
      %v3248 = vmax.f32 %v3139, 0.0
      %v3249 = vmax.f32 %v3144, 0.0
      %v3250 = vmax.f32 %v3147, 0.0
      %v3251 = vmax.f32 %v3152, 0.0
      %v3252 = vmax.f32 %v3155, 0.0
      %v3253 = vmax.f32 %v3160, 0.0
      %v3254 = vmax.f32 %v3163, 0.0
      %v3255 = vmax.f32 %v3168, 0.0
      %v3256 = vmax.f32 %v3171, 0.0
      %v3257 = vmax.f32 %v3176, 0.0
      %v3258 = vpack.c.bf16 %v3182, %v3181
      %v3259 = vpack.c.bf16 %v3184, %v3183
      %v3260 = vpack.c.bf16 %v3186, %v3185
      %v3261 = vpack.c.bf16 %v3188, %v3187
      %v3262 = vpack.c.bf16 %v3190, %v3189
      %v3263 = vpack.c.bf16 %v3192, %v3191
      %v3264 = vpack.c.bf16 %v3194, %v3193
      %v3265 = vpack.c.bf16 %v3196, %v3195
      %v3266 = vpack.c.bf16 %v3198, %v3197
      %v3267 = vpack.c.bf16 %v3200, %v3199
      %v3268 = vpack.c.bf16 %v3202, %v3201
      %v3269 = vpack.c.bf16 %v3204, %v3203
      %v3270 = vpack.c.bf16 %v3206, %v3205
      %v3271 = vpack.c.bf16 %v3208, %v3207
      %v3272 = vpack.c.bf16 %v3210, %v3209
      %v3273 = vpack.c.bf16 %v3212, %v3211
      %v3274 = vpack.c.bf16 %v3214, %v3213
      %v3275 = vpack.c.bf16 %v3216, %v3215
      %v3276 = vpack.c.bf16 %v3218, %v3217
      %v3277 = vpack.c.bf16 %v3220, %v3219
      %v3278 = vpack.c.bf16 %v3222, %v3221
      %v3279 = vpack.c.bf16 %v3224, %v3223
      %v3280 = vpack.c.bf16 %v3226, %v3225
      %v3281 = vpack.c.bf16 %v3228, %v3227
      %v3282 = vpack.c.bf16 %v3230, %v3229
      %v3283 = vpack.c.bf16 %v3232, %v3231
      %v3284 = vpack.c.bf16 %v3234, %v3233
      %v3285 = vpack.c.bf16 %v3236, %v3235
      %v3286 = vpack.c.bf16 %v3238, %v3237
      %v3287 = vpack.c.bf16 %v3240, %v3239
      %v3288 = vpack.c.bf16 %v3242, %v3241
      %v3289 = vpack.c.bf16 %v3244, %v3243
      %v3290 = vpack.c.bf16 %v3246, %v3245
      %v3291 = vpack.c.bf16 %v3248, %v3247
      %v3292 = vpack.c.bf16 %v3250, %v3249
      %v3293 = vpack.c.bf16 %v3252, %v3251
      %v3294 = vpack.c.bf16 %v3254, %v3253
      %v3295 = vpack.c.bf16 %v3256, %v3255
      %v3296 = vpack.c.bf16 %v3257, %v3257
      %v3297 = vld [vmem:[%s4] sm:$0xf]
      %v3298 = vld [vmem:[%s4 + $0x4] sm:$0xf]
      %v3299 = vld [vmem:[%s4 + $0x8] sm:$0xf]
      %v3300 = vld [vmem:[%s4 + $0xc] sm:$0xf]
      %v3301 = vld [vmem:[%s4 + $0x10] sm:$0xf]
      %v3302 = vld [vmem:[%s4 + $0x14] sm:$0xf]
      %v3303 = vld [vmem:[%s4 + $0x18] sm:$0xf]
      %v3304 = vld [vmem:[%s4 + $0x1c] sm:$0xf]
      %v3305 = vld [vmem:[%s5] sm:$0x1]
      %v3307 = vlaneseq
      %v3308 = vshrl.u32 %v3307, 7
      %v3309 = vsub.s32 0, %v3308
      %v3310 = vrot.slane %v3305, %v3309
      %v3320 = vunpack.c.l.b16 %v3297
      %v3321 = vunpack.c.l.b16 %v3298
      %v3322 = vunpack.c.l.b16 %v3299
      %v3323 = vunpack.c.l.b16 %v3300
      %v3324 = vunpack.c.l.b16 %v3301
      %v3325 = vunpack.c.l.b16 %v3302
      %v3326 = vunpack.c.l.b16 %v3303
      %v3327 = vunpack.c.l.b16 %v3304
      %v3328 = vpack.c.b16 %v3321, %v3320
      %v3329 = vpack.c.b16 %v3323, %v3322
      %v3330 = vpack.c.b16 %v3325, %v3324
      %v3331 = vpack.c.b16 %v3327, %v3326
      %v3337 = vsel %vm2719, %v3258, 0
      %v3340 = vsel %vm2719, %v3259, 0
      %v3343 = vsel %vm2719, %v3260, 0
      %v3346 = vsel %vm2719, %v3261, 0
      %v3349 = vsel %vm2719, %v3262, 0
      %v3352 = vsel %vm2719, %v3263, 0
      %v3355 = vsel %vm2719, %v3264, 0
      %v3358 = vsel %vm2719, %v3265, 0
      %v3361 = vsel %vm2719, %v3266, 0
      %v3364 = vsel %vm2719, %v3267, 0
      %v3367 = vsel %vm2719, %v3268, 0
      %v3370 = vsel %vm2719, %v3269, 0
      %v3373 = vsel %vm2719, %v3270, 0
      %v3376 = vsel %vm2719, %v3271, 0
      %v3379 = vsel %vm2719, %v3272, 0
      %v3382 = vsel %vm2719, %v3273, 0
      %v3385 = vsel %vm2719, %v3274, 0
      %v3388 = vsel %vm2719, %v3275, 0
      %v3391 = vsel %vm2719, %v3276, 0
      %v3394 = vsel %vm2719, %v3277, 0
      %v3397 = vsel %vm2719, %v3278, 0
      %v3400 = vsel %vm2719, %v3279, 0
      %v3403 = vsel %vm2719, %v3280, 0
      %v3406 = vsel %vm2719, %v3281, 0
      %v3409 = vsel %vm2719, %v3282, 0
      %v3412 = vsel %vm2719, %v3283, 0
      %v3415 = vsel %vm2719, %v3284, 0
      %v3418 = vsel %vm2719, %v3285, 0
      %v3421 = vsel %vm2719, %v3286, 0
      %v3424 = vsel %vm2719, %v3287, 0
      %v3427 = vsel %vm2719, %v3288, 0
      %v3430 = vsel %vm2719, %v3289, 0
      %v3433 = vsel %vm2719, %v3290, 0
      %v3436 = vsel %vm2719, %v3291, 0
      %v3439 = vsel %vm2719, %v3292, 0
      %v3442 = vsel %vm2719, %v3293, 0
      %v3445 = vsel %vm2719, %v3294, 0
      %v3448 = vsel %vm2719, %v3295, 0
      %v3451 = vsel %vm2719, %v3296, 0
      %3453 = vmatprep.subr.bf16.mxu0 0
      %3454 = vmatpush1.bf16.msra.mxu0 %v3328
      %3455 = vmatprep.subr.bf16.mxu0 0
      %3456 = vmatpush1.bf16.msra.mxu0 %v3329
      %3457 = vmatprep.subr.bf16.mxu0 0
      %3458 = vmatpush1.bf16.msra.mxu0 %v3330
      %3459 = vmatprep.subr.bf16.mxu0 0
      %3460 = vmatpush1.bf16.msra.mxu0 %v3331
      %3461 = vmatprep.subr.bf16.mxu0 0
      %3462 = vmatpush1.bf16.msra.mxu0 0
      %3463 = vmatprep.subr.bf16.mxu0 0
      %3464 = vmatpush1.bf16.msra.mxu0 0
      %3465 = vmatprep.subr.bf16.mxu0 0
      %3466 = vmatpush1.bf16.msra.mxu0 0
      %3467 = vmatprep.subr.bf16.mxu0 0
      %3468 = vmatpush1.bf16.msra.mxu0 0
      %3469 = vmatprep.subr.bf16.mxu0 0
      %3470 = vmatpush1.bf16.msra.mxu0 0
      %3471 = vmatprep.subr.bf16.mxu0 0
      %3472 = vmatpush1.bf16.msra.mxu0 0
      %3473 = vmatprep.subr.bf16.mxu0 0
      %3474 = vmatpush1.bf16.msra.mxu0 0
      %3475 = vmatprep.subr.bf16.mxu0 0
      %3476 = vmatpush1.bf16.msra.mxu0 0
      %3477 = vmatprep.subr.bf16.mxu0 0
      %3478 = vmatpush1.bf16.msra.mxu0 0
      %3479 = vmatprep.subr.bf16.mxu0 0
      %3480 = vmatpush1.bf16.msra.mxu0 0
      %3481 = vmatprep.subr.bf16.mxu0 0
      %3482 = vmatpush1.bf16.msra.mxu0 0
      %3483 = vmatprep.subr.bf16.mxu0 0
      %3484 = vmatpush1.bf16.msra.mxu0 0
      %3485 = vmatprep.mubr.bf16.mxu0 0
      %3486 = vmatmul.mubr.bf16.gmra.mrb[0].mxu0 %v3337
      %v3487 = vpop.f32.mrb[0].mxu0
      %v3488 = vadd.f32 %v3310, %v3487
      %v3489 = vpop.f32.mrb[0].mxu0
      %v3490 = vpop.f32.mrb[0].mxu0
      %v3491 = vadd.f32 %v3310, %v3490
      %v3492 = vpop.f32.mrb[0].mxu0
      %3493 = vmatprep.mubr.bf16.mxu0 0
      %3494 = vmatmul.mubr.bf16.gmra.mrb[0].mxu0 %v3340
      %v3495 = vpop.f32.mrb[0].mxu0
      %v3496 = vadd.f32 %v3310, %v3495
      %v3497 = vpop.f32.mrb[0].mxu0
      %v3498 = vpop.f32.mrb[0].mxu0
      %v3499 = vadd.f32 %v3310, %v3498
      %v3500 = vpop.f32.mrb[0].mxu0
      %3501 = vmatprep.mubr.bf16.mxu0 0
      %3502 = vmatmul.mubr.bf16.gmra.mrb[0].mxu0 %v3343
      %v3503 = vpop.f32.mrb[0].mxu0
      %v3504 = vadd.f32 %v3310, %v3503
      %v3505 = vpop.f32.mrb[0].mxu0
      %v3506 = vpop.f32.mrb[0].mxu0
      %v3507 = vadd.f32 %v3310, %v3506
      %v3508 = vpop.f32.mrb[0].mxu0
      %3509 = vmatprep.mubr.bf16.mxu0 0
      %3510 = vmatmul.mubr.bf16.gmra.mrb[0].mxu0 %v3346
      %v3511 = vpop.f32.mrb[0].mxu0
      %v3512 = vadd.f32 %v3310, %v3511
      %v3513 = vpop.f32.mrb[0].mxu0
      %v3514 = vpop.f32.mrb[0].mxu0
      %v3515 = vadd.f32 %v3310, %v3514
      %v3516 = vpop.f32.mrb[0].mxu0
      %3517 = vmatprep.mubr.bf16.mxu0 0
      %3518 = vmatmul.mubr.bf16.gmra.mrb[0].mxu0 %v3349
      %v3519 = vpop.f32.mrb[0].mxu0
      %v3520 = vadd.f32 %v3310, %v3519
      %v3521 = vpop.f32.mrb[0].mxu0
      %v3522 = vpop.f32.mrb[0].mxu0
      %v3523 = vadd.f32 %v3310, %v3522
      %v3524 = vpop.f32.mrb[0].mxu0
      %3525 = vmatprep.mubr.bf16.mxu0 0
      %3526 = vmatmul.mubr.bf16.gmra.mrb[0].mxu0 %v3352
      %v3527 = vpop.f32.mrb[0].mxu0
      %v3528 = vadd.f32 %v3310, %v3527
      %v3529 = vpop.f32.mrb[0].mxu0
      %v3530 = vpop.f32.mrb[0].mxu0
      %v3531 = vadd.f32 %v3310, %v3530
      %v3532 = vpop.f32.mrb[0].mxu0
      %3533 = vmatprep.mubr.bf16.mxu0 0
      %3534 = vmatmul.mubr.bf16.gmra.mrb[0].mxu0 %v3355
      %v3535 = vpop.f32.mrb[0].mxu0
      %v3536 = vadd.f32 %v3310, %v3535
      %v3537 = vpop.f32.mrb[0].mxu0
      %v3538 = vpop.f32.mrb[0].mxu0
      %v3539 = vadd.f32 %v3310, %v3538
      %v3540 = vpop.f32.mrb[0].mxu0
      %3541 = vmatprep.mubr.bf16.mxu0 0
      %3542 = vmatmul.mubr.bf16.gmra.mrb[0].mxu0 %v3358
      %v3543 = vpop.f32.mrb[0].mxu0
      %v3544 = vadd.f32 %v3310, %v3543
      %v3545 = vpop.f32.mrb[0].mxu0
      %v3546 = vpop.f32.mrb[0].mxu0
      %v3547 = vadd.f32 %v3310, %v3546
      %v3548 = vpop.f32.mrb[0].mxu0
      %3549 = vmatprep.mubr.bf16.mxu0 0
      %3550 = vmatmul.mubr.bf16.gmra.mrb[0].mxu0 %v3361
      %v3551 = vpop.f32.mrb[0].mxu0
      %v3552 = vadd.f32 %v3310, %v3551
      %v3553 = vpop.f32.mrb[0].mxu0
      %v3554 = vpop.f32.mrb[0].mxu0
      %v3555 = vadd.f32 %v3310, %v3554
      %v3556 = vpop.f32.mrb[0].mxu0
      %3557 = vmatprep.mubr.bf16.mxu0 0
      %3558 = vmatmul.mubr.bf16.gmra.mrb[0].mxu0 %v3364
      %v3559 = vpop.f32.mrb[0].mxu0
      %v3560 = vadd.f32 %v3310, %v3559
      %v3561 = vpop.f32.mrb[0].mxu0
      %v3562 = vpop.f32.mrb[0].mxu0
      %v3563 = vadd.f32 %v3310, %v3562
      %v3564 = vpop.f32.mrb[0].mxu0
      %3565 = vmatprep.mubr.bf16.mxu0 0
      %3566 = vmatmul.mubr.bf16.gmra.mrb[0].mxu0 %v3367
      %v3567 = vpop.f32.mrb[0].mxu0
      %v3568 = vadd.f32 %v3310, %v3567
      %v3569 = vpop.f32.mrb[0].mxu0
      %v3570 = vpop.f32.mrb[0].mxu0
      %v3571 = vadd.f32 %v3310, %v3570
      %v3572 = vpop.f32.mrb[0].mxu0
      %3573 = vmatprep.mubr.bf16.mxu0 0
      %3574 = vmatmul.mubr.bf16.gmra.mrb[0].mxu0 %v3370
      %v3575 = vpop.f32.mrb[0].mxu0
      %v3576 = vadd.f32 %v3310, %v3575
      %v3577 = vpop.f32.mrb[0].mxu0
      %v3578 = vpop.f32.mrb[0].mxu0
      %v3579 = vadd.f32 %v3310, %v3578
      %v3580 = vpop.f32.mrb[0].mxu0
      %3581 = vmatprep.mubr.bf16.mxu0 0
      %3582 = vmatmul.mubr.bf16.gmra.mrb[0].mxu0 %v3373
      %v3583 = vpop.f32.mrb[0].mxu0
      %v3584 = vadd.f32 %v3310, %v3583
      %v3585 = vpop.f32.mrb[0].mxu0
      %v3586 = vpop.f32.mrb[0].mxu0
      %v3587 = vadd.f32 %v3310, %v3586
      %v3588 = vpop.f32.mrb[0].mxu0
      %3589 = vmatprep.mubr.bf16.mxu0 0
      %3590 = vmatmul.mubr.bf16.gmra.mrb[0].mxu0 %v3376
      %v3591 = vpop.f32.mrb[0].mxu0
      %v3592 = vadd.f32 %v3310, %v3591
      %v3593 = vpop.f32.mrb[0].mxu0
      %v3594 = vpop.f32.mrb[0].mxu0
      %v3595 = vadd.f32 %v3310, %v3594
      %v3596 = vpop.f32.mrb[0].mxu0
      %3597 = vmatprep.mubr.bf16.mxu0 0
      %3598 = vmatmul.mubr.bf16.gmra.mrb[0].mxu0 %v3379
      %v3599 = vpop.f32.mrb[0].mxu0
      %v3600 = vadd.f32 %v3310, %v3599
      %v3601 = vpop.f32.mrb[0].mxu0
      %v3602 = vpop.f32.mrb[0].mxu0
      %v3603 = vadd.f32 %v3310, %v3602
      %v3604 = vpop.f32.mrb[0].mxu0
      %3605 = vmatprep.mubr.bf16.mxu0 0
      %3606 = vmatmul.mubr.bf16.gmra.mrb[0].mxu0 %v3382
      %v3607 = vpop.f32.mrb[0].mxu0
      %v3608 = vadd.f32 %v3310, %v3607
      %v3609 = vpop.f32.mrb[0].mxu0
      %v3610 = vpop.f32.mrb[0].mxu0
      %v3611 = vadd.f32 %v3310, %v3610
      %v3612 = vpop.f32.mrb[0].mxu0
      %3613 = vmatprep.mubr.bf16.mxu0 0
      %3614 = vmatmul.mubr.bf16.gmra.mrb[0].mxu0 %v3385
      %v3615 = vpop.f32.mrb[0].mxu0
      %v3616 = vadd.f32 %v3310, %v3615
      %v3617 = vpop.f32.mrb[0].mxu0
      %v3618 = vpop.f32.mrb[0].mxu0
      %v3619 = vadd.f32 %v3310, %v3618
      %v3620 = vpop.f32.mrb[0].mxu0
      %3621 = vmatprep.mubr.bf16.mxu0 0
      %3622 = vmatmul.mubr.bf16.gmra.mrb[0].mxu0 %v3388
      %v3623 = vpop.f32.mrb[0].mxu0
      %v3624 = vadd.f32 %v3310, %v3623
      %v3625 = vpop.f32.mrb[0].mxu0
      %v3626 = vpop.f32.mrb[0].mxu0
      %v3627 = vadd.f32 %v3310, %v3626
      %v3628 = vpop.f32.mrb[0].mxu0
      %3629 = vmatprep.mubr.bf16.mxu0 0
      %3630 = vmatmul.mubr.bf16.gmra.mrb[0].mxu0 %v3391
      %v3631 = vpop.f32.mrb[0].mxu0
      %v3632 = vadd.f32 %v3310, %v3631
      %v3633 = vpop.f32.mrb[0].mxu0
      %v3634 = vpop.f32.mrb[0].mxu0
      %v3635 = vadd.f32 %v3310, %v3634
      %v3636 = vpop.f32.mrb[0].mxu0
      %3637 = vmatprep.mubr.bf16.mxu0 0
      %3638 = vmatmul.mubr.bf16.gmra.mrb[0].mxu0 %v3394
      %v3639 = vpop.f32.mrb[0].mxu0
      %v3640 = vadd.f32 %v3310, %v3639
      %v3641 = vpop.f32.mrb[0].mxu0
      %v3642 = vpop.f32.mrb[0].mxu0
      %v3643 = vadd.f32 %v3310, %v3642
      %v3644 = vpop.f32.mrb[0].mxu0
      %3645 = vmatprep.mubr.bf16.mxu0 0
      %3646 = vmatmul.mubr.bf16.gmra.mrb[0].mxu0 %v3397
      %v3647 = vpop.f32.mrb[0].mxu0
      %v3648 = vadd.f32 %v3310, %v3647
      %v3649 = vpop.f32.mrb[0].mxu0
      %v3650 = vpop.f32.mrb[0].mxu0
      %v3651 = vadd.f32 %v3310, %v3650
      %v3652 = vpop.f32.mrb[0].mxu0
      %3653 = vmatprep.mubr.bf16.mxu0 0
      %3654 = vmatmul.mubr.bf16.gmra.mrb[0].mxu0 %v3400
      %v3655 = vpop.f32.mrb[0].mxu0
      %v3656 = vadd.f32 %v3310, %v3655
      %v3657 = vpop.f32.mrb[0].mxu0
      %v3658 = vpop.f32.mrb[0].mxu0
      %v3659 = vadd.f32 %v3310, %v3658
      %v3660 = vpop.f32.mrb[0].mxu0
      %3661 = vmatprep.mubr.bf16.mxu0 0
      %3662 = vmatmul.mubr.bf16.gmra.mrb[0].mxu0 %v3403
      %v3663 = vpop.f32.mrb[0].mxu0
      %v3664 = vadd.f32 %v3310, %v3663
      %v3665 = vpop.f32.mrb[0].mxu0
      %v3666 = vpop.f32.mrb[0].mxu0
      %v3667 = vadd.f32 %v3310, %v3666
      %v3668 = vpop.f32.mrb[0].mxu0
      %3669 = vmatprep.mubr.bf16.mxu0 0
      %3670 = vmatmul.mubr.bf16.gmra.mrb[0].mxu0 %v3406
      %v3671 = vpop.f32.mrb[0].mxu0
      %v3672 = vadd.f32 %v3310, %v3671
      %v3673 = vpop.f32.mrb[0].mxu0
      %v3674 = vpop.f32.mrb[0].mxu0
      %v3675 = vadd.f32 %v3310, %v3674
      %v3676 = vpop.f32.mrb[0].mxu0
      %3677 = vmatprep.mubr.bf16.mxu0 0
      %3678 = vmatmul.mubr.bf16.gmra.mrb[0].mxu0 %v3409
      %v3679 = vpop.f32.mrb[0].mxu0
      %v3680 = vadd.f32 %v3310, %v3679
      %v3681 = vpop.f32.mrb[0].mxu0
      %v3682 = vpop.f32.mrb[0].mxu0
      %v3683 = vadd.f32 %v3310, %v3682
      %v3684 = vpop.f32.mrb[0].mxu0
      %3685 = vmatprep.mubr.bf16.mxu0 0
      %3686 = vmatmul.mubr.bf16.gmra.mrb[0].mxu0 %v3412
      %v3687 = vpop.f32.mrb[0].mxu0
      %v3688 = vadd.f32 %v3310, %v3687
      %v3689 = vpop.f32.mrb[0].mxu0
      %v3690 = vpop.f32.mrb[0].mxu0
      %v3691 = vadd.f32 %v3310, %v3690
      %v3692 = vpop.f32.mrb[0].mxu0
      %3693 = vmatprep.mubr.bf16.mxu0 0
      %3694 = vmatmul.mubr.bf16.gmra.mrb[0].mxu0 %v3415
      %v3695 = vpop.f32.mrb[0].mxu0
      %v3696 = vadd.f32 %v3310, %v3695
      %v3697 = vpop.f32.mrb[0].mxu0
      %v3698 = vpop.f32.mrb[0].mxu0
      %v3699 = vadd.f32 %v3310, %v3698
      %v3700 = vpop.f32.mrb[0].mxu0
      %3701 = vmatprep.mubr.bf16.mxu0 0
      %3702 = vmatmul.mubr.bf16.gmra.mrb[0].mxu0 %v3418
      %v3703 = vpop.f32.mrb[0].mxu0
      %v3704 = vadd.f32 %v3310, %v3703
      %v3705 = vpop.f32.mrb[0].mxu0
      %v3706 = vpop.f32.mrb[0].mxu0
      %v3707 = vadd.f32 %v3310, %v3706
      %v3708 = vpop.f32.mrb[0].mxu0
      %3709 = vmatprep.mubr.bf16.mxu0 0
      %3710 = vmatmul.mubr.bf16.gmra.mrb[0].mxu0 %v3421
      %v3711 = vpop.f32.mrb[0].mxu0
      %v3712 = vadd.f32 %v3310, %v3711
      %v3713 = vpop.f32.mrb[0].mxu0
      %v3714 = vpop.f32.mrb[0].mxu0
      %v3715 = vadd.f32 %v3310, %v3714
      %v3716 = vpop.f32.mrb[0].mxu0
      %3717 = vmatprep.mubr.bf16.mxu0 0
      %3718 = vmatmul.mubr.bf16.gmra.mrb[0].mxu0 %v3424
      %v3719 = vpop.f32.mrb[0].mxu0
      %v3720 = vadd.f32 %v3310, %v3719
      %v3721 = vpop.f32.mrb[0].mxu0
      %v3722 = vpop.f32.mrb[0].mxu0
      %v3723 = vadd.f32 %v3310, %v3722
      %v3724 = vpop.f32.mrb[0].mxu0
      %3725 = vmatprep.mubr.bf16.mxu0 0
      %3726 = vmatmul.mubr.bf16.gmra.mrb[0].mxu0 %v3427
      %v3727 = vpop.f32.mrb[0].mxu0
      %v3728 = vadd.f32 %v3310, %v3727
      %v3729 = vpop.f32.mrb[0].mxu0
      %v3730 = vpop.f32.mrb[0].mxu0
      %v3731 = vadd.f32 %v3310, %v3730
      %v3732 = vpop.f32.mrb[0].mxu0
      %3733 = vmatprep.mubr.bf16.mxu0 0
      %3734 = vmatmul.mubr.bf16.gmra.mrb[0].mxu0 %v3430
      %v3735 = vpop.f32.mrb[0].mxu0
      %v3736 = vadd.f32 %v3310, %v3735
      %v3737 = vpop.f32.mrb[0].mxu0
      %v3738 = vpop.f32.mrb[0].mxu0
      %v3739 = vadd.f32 %v3310, %v3738
      %v3740 = vpop.f32.mrb[0].mxu0
      %3741 = vmatprep.mubr.bf16.mxu0 0
      %3742 = vmatmul.mubr.bf16.gmra.mrb[0].mxu0 %v3433
      %v3743 = vpop.f32.mrb[0].mxu0
      %v3744 = vadd.f32 %v3310, %v3743
      %v3745 = vpop.f32.mrb[0].mxu0
      %v3746 = vpop.f32.mrb[0].mxu0
      %v3747 = vadd.f32 %v3310, %v3746
      %v3748 = vpop.f32.mrb[0].mxu0
      %3749 = vmatprep.mubr.bf16.mxu0 0
      %3750 = vmatmul.mubr.bf16.gmra.mrb[0].mxu0 %v3436
      %v3751 = vpop.f32.mrb[0].mxu0
      %v3752 = vadd.f32 %v3310, %v3751
      %v3753 = vpop.f32.mrb[0].mxu0
      %v3754 = vpop.f32.mrb[0].mxu0
      %v3755 = vadd.f32 %v3310, %v3754
      %v3756 = vpop.f32.mrb[0].mxu0
      %3757 = vmatprep.mubr.bf16.mxu0 0
      %3758 = vmatmul.mubr.bf16.gmra.mrb[0].mxu0 %v3439
      %v3759 = vpop.f32.mrb[0].mxu0
      %v3760 = vadd.f32 %v3310, %v3759
      %v3761 = vpop.f32.mrb[0].mxu0
      %v3762 = vpop.f32.mrb[0].mxu0
      %v3763 = vadd.f32 %v3310, %v3762
      %v3764 = vpop.f32.mrb[0].mxu0
      %3765 = vmatprep.mubr.bf16.mxu0 0
      %3766 = vmatmul.mubr.bf16.gmra.mrb[0].mxu0 %v3442
      %v3767 = vpop.f32.mrb[0].mxu0
      %v3768 = vadd.f32 %v3310, %v3767
      %v3769 = vpop.f32.mrb[0].mxu0
      %v3770 = vpop.f32.mrb[0].mxu0
      %v3771 = vadd.f32 %v3310, %v3770
      %v3772 = vpop.f32.mrb[0].mxu0
      %3773 = vmatprep.mubr.bf16.mxu0 0
      %3774 = vmatmul.mubr.bf16.gmra.mrb[0].mxu0 %v3445
      %v3775 = vpop.f32.mrb[0].mxu0
      %v3776 = vadd.f32 %v3310, %v3775
      %v3777 = vpop.f32.mrb[0].mxu0
      %v3778 = vpop.f32.mrb[0].mxu0
      %v3779 = vadd.f32 %v3310, %v3778
      %v3780 = vpop.f32.mrb[0].mxu0
      %3781 = vmatprep.mubr.bf16.mxu0 0
      %3782 = vmatmul.mubr.bf16.gmra.mrb[0].mxu0 %v3448
      %v3783 = vpop.f32.mrb[0].mxu0
      %v3784 = vadd.f32 %v3310, %v3783
      %v3785 = vpop.f32.mrb[0].mxu0
      %v3786 = vpop.f32.mrb[0].mxu0
      %v3787 = vadd.f32 %v3310, %v3786
      %v3788 = vpop.f32.mrb[0].mxu0
      %3789 = vmatprep.mubr.bf16.mxu0 0
      %3790 = vmatmul.mubr.bf16.gmra.mrb[0].mxu0 %v3451
      %v3791 = vpop.f32.mrb[0].mxu0
      %v3792 = vadd.f32 %v3310, %v3791
      %v3793 = vpop.f32.mrb[0].mxu0
      %v3794 = vpop.f32.mrb[0].mxu0
      %v3795 = vpop.f32.mrb[0].mxu0
      %3796 = vdwg.mxu0
      %v3797 = vsub.f32 0.0, %v3488
      %v3798 = vsub.f32 0.0, %v3491
      %v3799 = vsub.f32 0.0, %v3496
      %v3800 = vsub.f32 0.0, %v3499
      %v3801 = vsub.f32 0.0, %v3504
      %v3802 = vsub.f32 0.0, %v3507
      %v3803 = vsub.f32 0.0, %v3512
      %v3804 = vsub.f32 0.0, %v3515
      %v3805 = vsub.f32 0.0, %v3520
      %v3806 = vsub.f32 0.0, %v3523
      %v3807 = vsub.f32 0.0, %v3528
      %v3808 = vsub.f32 0.0, %v3531
      %v3809 = vsub.f32 0.0, %v3536
      %v3810 = vsub.f32 0.0, %v3539
      %v3811 = vsub.f32 0.0, %v3544
      %v3812 = vsub.f32 0.0, %v3547
      %v3813 = vsub.f32 0.0, %v3552
      %v3814 = vsub.f32 0.0, %v3555
      %v3815 = vsub.f32 0.0, %v3560
      %v3816 = vsub.f32 0.0, %v3563
      %v3817 = vsub.f32 0.0, %v3568
      %v3818 = vsub.f32 0.0, %v3571
      %v3819 = vsub.f32 0.0, %v3576
      %v3820 = vsub.f32 0.0, %v3579
      %v3821 = vsub.f32 0.0, %v3584
      %v3822 = vsub.f32 0.0, %v3587
      %v3823 = vsub.f32 0.0, %v3592
      %v3824 = vsub.f32 0.0, %v3595
      %v3825 = vsub.f32 0.0, %v3600
      %v3826 = vsub.f32 0.0, %v3603
      %v3827 = vsub.f32 0.0, %v3608
      %v3828 = vsub.f32 0.0, %v3611
      %v3829 = vsub.f32 0.0, %v3616
      %v3830 = vsub.f32 0.0, %v3619
      %v3831 = vsub.f32 0.0, %v3624
      %v3832 = vsub.f32 0.0, %v3627
      %v3833 = vsub.f32 0.0, %v3632
      %v3834 = vsub.f32 0.0, %v3635
      %v3835 = vsub.f32 0.0, %v3640
      %v3836 = vsub.f32 0.0, %v3643
      %v3837 = vsub.f32 0.0, %v3648
      %v3838 = vsub.f32 0.0, %v3651
      %v3839 = vsub.f32 0.0, %v3656
      %v3840 = vsub.f32 0.0, %v3659
      %v3841 = vsub.f32 0.0, %v3664
      %v3842 = vsub.f32 0.0, %v3667
      %v3843 = vsub.f32 0.0, %v3672
      %v3844 = vsub.f32 0.0, %v3675
      %v3845 = vsub.f32 0.0, %v3680
      %v3846 = vsub.f32 0.0, %v3683
      %v3847 = vsub.f32 0.0, %v3688
      %v3848 = vsub.f32 0.0, %v3691
      %v3849 = vsub.f32 0.0, %v3696
      %v3850 = vsub.f32 0.0, %v3699
      %v3851 = vsub.f32 0.0, %v3704
      %v3852 = vsub.f32 0.0, %v3707
      %v3853 = vsub.f32 0.0, %v3712
      %v3854 = vsub.f32 0.0, %v3715
      %v3855 = vsub.f32 0.0, %v3720
      %v3856 = vsub.f32 0.0, %v3723
      %v3857 = vsub.f32 0.0, %v3728
      %v3858 = vsub.f32 0.0, %v3731
      %v3859 = vsub.f32 0.0, %v3736
      %v3860 = vsub.f32 0.0, %v3739
      %v3861 = vsub.f32 0.0, %v3744
      %v3862 = vsub.f32 0.0, %v3747
      %v3863 = vsub.f32 0.0, %v3752
      %v3864 = vsub.f32 0.0, %v3755
      %v3865 = vsub.f32 0.0, %v3760
      %v3866 = vsub.f32 0.0, %v3763
      %v3867 = vsub.f32 0.0, %v3768
      %v3868 = vsub.f32 0.0, %v3771
      %v3869 = vsub.f32 0.0, %v3776
      %v3870 = vsub.f32 0.0, %v3779
      %v3871 = vsub.f32 0.0, %v3784
      %v3872 = vsub.f32 0.0, %v3787
      %v3873 = vsub.f32 0.0, %v3792
      %v3874 = vmul.f32 %v3797, 1.442695
      %v3875 = vpow.pop %v3874
      %v3876 = vmul.f32 %v3798, 1.442695
      %v3877 = vpow.pop %v3876
      %v3878 = vmul.f32 %v3799, 1.442695
      %v3879 = vpow.pop %v3878
      %v3880 = vmul.f32 %v3800, 1.442695
      %v3881 = vpow.pop %v3880
      %v3882 = vmul.f32 %v3801, 1.442695
      %v3883 = vpow.pop %v3882
      %v3884 = vmul.f32 %v3802, 1.442695
      %v3885 = vpow.pop %v3884
      %v3886 = vmul.f32 %v3803, 1.442695
      %v3887 = vpow.pop %v3886
      %v3888 = vmul.f32 %v3804, 1.442695
      %v3889 = vpow.pop %v3888
      %v3890 = vmul.f32 %v3805, 1.442695
      %v3891 = vpow.pop %v3890
      %v3892 = vmul.f32 %v3806, 1.442695
      %v3893 = vpow.pop %v3892
      %v3894 = vmul.f32 %v3807, 1.442695
      %v3895 = vpow.pop %v3894
      %v3896 = vmul.f32 %v3808, 1.442695
      %v3897 = vpow.pop %v3896
      %v3898 = vmul.f32 %v3809, 1.442695
      %v3899 = vpow.pop %v3898
      %v3900 = vmul.f32 %v3810, 1.442695
      %v3901 = vpow.pop %v3900
      %v3902 = vmul.f32 %v3811, 1.442695
      %v3903 = vpow.pop %v3902
      %v3904 = vmul.f32 %v3812, 1.442695
      %v3905 = vpow.pop %v3904
      %v3906 = vmul.f32 %v3813, 1.442695
      %v3907 = vpow.pop %v3906
      %v3908 = vmul.f32 %v3814, 1.442695
      %v3909 = vpow.pop %v3908
      %v3910 = vmul.f32 %v3815, 1.442695
      %v3911 = vpow.pop %v3910
      %v3912 = vmul.f32 %v3816, 1.442695
      %v3913 = vpow.pop %v3912
      %v3914 = vmul.f32 %v3817, 1.442695
      %v3915 = vpow.pop %v3914
      %v3916 = vmul.f32 %v3818, 1.442695
      %v3917 = vpow.pop %v3916
      %v3918 = vmul.f32 %v3819, 1.442695
      %v3919 = vpow.pop %v3918
      %v3920 = vmul.f32 %v3820, 1.442695
      %v3921 = vpow.pop %v3920
      %v3922 = vmul.f32 %v3821, 1.442695
      %v3923 = vpow.pop %v3922
      %v3924 = vmul.f32 %v3822, 1.442695
      %v3925 = vpow.pop %v3924
      %v3926 = vmul.f32 %v3823, 1.442695
      %v3927 = vpow.pop %v3926
      %v3928 = vmul.f32 %v3824, 1.442695
      %v3929 = vpow.pop %v3928
      %v3930 = vmul.f32 %v3825, 1.442695
      %v3931 = vpow.pop %v3930
      %v3932 = vmul.f32 %v3826, 1.442695
      %v3933 = vpow.pop %v3932
      %v3934 = vmul.f32 %v3827, 1.442695
      %v3935 = vpow.pop %v3934
      %v3936 = vmul.f32 %v3828, 1.442695
      %v3937 = vpow.pop %v3936
      %v3938 = vmul.f32 %v3829, 1.442695
      %v3939 = vpow.pop %v3938
      %v3940 = vmul.f32 %v3830, 1.442695
      %v3941 = vpow.pop %v3940
      %v3942 = vmul.f32 %v3831, 1.442695
      %v3943 = vpow.pop %v3942
      %v3944 = vmul.f32 %v3832, 1.442695
      %v3945 = vpow.pop %v3944
      %v3946 = vmul.f32 %v3833, 1.442695
      %v3947 = vpow.pop %v3946
      %v3948 = vmul.f32 %v3834, 1.442695
      %v3949 = vpow.pop %v3948
      %v3950 = vmul.f32 %v3835, 1.442695
      %v3951 = vpow.pop %v3950
      %v3952 = vmul.f32 %v3836, 1.442695
      %v3953 = vpow.pop %v3952
      %v3954 = vmul.f32 %v3837, 1.442695
      %v3955 = vpow.pop %v3954
      %v3956 = vmul.f32 %v3838, 1.442695
      %v3957 = vpow.pop %v3956
      %v3958 = vmul.f32 %v3839, 1.442695
      %v3959 = vpow.pop %v3958
      %v3960 = vmul.f32 %v3840, 1.442695
      %v3961 = vpow.pop %v3960
      %v3962 = vmul.f32 %v3841, 1.442695
      %v3963 = vpow.pop %v3962
      %v3964 = vmul.f32 %v3842, 1.442695
      %v3965 = vpow.pop %v3964
      %v3966 = vmul.f32 %v3843, 1.442695
      %v3967 = vpow.pop %v3966
      %v3968 = vmul.f32 %v3844, 1.442695
      %v3969 = vpow.pop %v3968
      %v3970 = vmul.f32 %v3845, 1.442695
      %v3971 = vpow.pop %v3970
      %v3972 = vmul.f32 %v3846, 1.442695
      %v3973 = vpow.pop %v3972
      %v3974 = vmul.f32 %v3847, 1.442695
      %v3975 = vpow.pop %v3974
      %v3976 = vmul.f32 %v3848, 1.442695
      %v3977 = vpow.pop %v3976
      %v3978 = vmul.f32 %v3849, 1.442695
      %v3979 = vpow.pop %v3978
      %v3980 = vmul.f32 %v3850, 1.442695
      %v3981 = vpow.pop %v3980
      %v3982 = vmul.f32 %v3851, 1.442695
      %v3983 = vpow.pop %v3982
      %v3984 = vmul.f32 %v3852, 1.442695
      %v3985 = vpow.pop %v3984
      %v3986 = vmul.f32 %v3853, 1.442695
      %v3987 = vpow.pop %v3986
      %v3988 = vmul.f32 %v3854, 1.442695
      %v3989 = vpow.pop %v3988
      %v3990 = vmul.f32 %v3855, 1.442695
      %v3991 = vpow.pop %v3990
      %v3992 = vmul.f32 %v3856, 1.442695
      %v3993 = vpow.pop %v3992
      %v3994 = vmul.f32 %v3857, 1.442695
      %v3995 = vpow.pop %v3994
      %v3996 = vmul.f32 %v3858, 1.442695
      %v3997 = vpow.pop %v3996
      %v3998 = vmul.f32 %v3859, 1.442695
      %v3999 = vpow.pop %v3998
      %v4000 = vmul.f32 %v3860, 1.442695
      %v4001 = vpow.pop %v4000
      %v4002 = vmul.f32 %v3861, 1.442695
      %v4003 = vpow.pop %v4002
      %v4004 = vmul.f32 %v3862, 1.442695
      %v4005 = vpow.pop %v4004
      %v4006 = vmul.f32 %v3863, 1.442695
      %v4007 = vpow.pop %v4006
      %v4008 = vmul.f32 %v3864, 1.442695
      %v4009 = vpow.pop %v4008
      %v4010 = vmul.f32 %v3865, 1.442695
      %v4011 = vpow.pop %v4010
      %v4012 = vmul.f32 %v3866, 1.442695
      %v4013 = vpow.pop %v4012
      %v4014 = vmul.f32 %v3867, 1.442695
      %v4015 = vpow.pop %v4014
      %v4016 = vmul.f32 %v3868, 1.442695
      %v4017 = vpow.pop %v4016
      %v4018 = vmul.f32 %v3869, 1.442695
      %v4019 = vpow.pop %v4018
      %v4020 = vmul.f32 %v3870, 1.442695
      %v4021 = vpow.pop %v4020
      %v4022 = vmul.f32 %v3871, 1.442695
      %v4023 = vpow.pop %v4022
      %v4024 = vmul.f32 %v3872, 1.442695
      %v4025 = vpow.pop %v4024
      %v4026 = vmul.f32 %v3873, 1.442695
      %v4027 = vpow.pop %v4026
      %v4028 = vadd.f32 %v3875, 1.0
      %v4029 = vadd.f32 %v3877, 1.0
      %v4030 = vadd.f32 %v3879, 1.0
      %v4031 = vadd.f32 %v3881, 1.0
      %v4032 = vadd.f32 %v3883, 1.0
      %v4033 = vadd.f32 %v3885, 1.0
      %v4034 = vadd.f32 %v3887, 1.0
      %v4035 = vadd.f32 %v3889, 1.0
      %v4036 = vadd.f32 %v3891, 1.0
      %v4037 = vadd.f32 %v3893, 1.0
      %v4038 = vadd.f32 %v3895, 1.0
      %v4039 = vadd.f32 %v3897, 1.0
      %v4040 = vadd.f32 %v3899, 1.0
      %v4041 = vadd.f32 %v3901, 1.0
      %v4042 = vadd.f32 %v3903, 1.0
      %v4043 = vadd.f32 %v3905, 1.0
      %v4044 = vadd.f32 %v3907, 1.0
      %v4045 = vadd.f32 %v3909, 1.0
      %v4046 = vadd.f32 %v3911, 1.0
      %v4047 = vadd.f32 %v3913, 1.0
      %v4048 = vadd.f32 %v3915, 1.0
      %v4049 = vadd.f32 %v3917, 1.0
      %v4050 = vadd.f32 %v3919, 1.0
      %v4051 = vadd.f32 %v3921, 1.0
      %v4052 = vadd.f32 %v3923, 1.0
      %v4053 = vadd.f32 %v3925, 1.0
      %v4054 = vadd.f32 %v3927, 1.0
      %v4055 = vadd.f32 %v3929, 1.0
      %v4056 = vadd.f32 %v3931, 1.0
      %v4057 = vadd.f32 %v3933, 1.0
      %v4058 = vadd.f32 %v3935, 1.0
      %v4059 = vadd.f32 %v3937, 1.0
      %v4060 = vadd.f32 %v3939, 1.0
      %v4061 = vadd.f32 %v3941, 1.0
      %v4062 = vadd.f32 %v3943, 1.0
      %v4063 = vadd.f32 %v3945, 1.0
      %v4064 = vadd.f32 %v3947, 1.0
      %v4065 = vadd.f32 %v3949, 1.0
      %v4066 = vadd.f32 %v3951, 1.0
      %v4067 = vadd.f32 %v3953, 1.0
      %v4068 = vadd.f32 %v3955, 1.0
      %v4069 = vadd.f32 %v3957, 1.0
      %v4070 = vadd.f32 %v3959, 1.0
      %v4071 = vadd.f32 %v3961, 1.0
      %v4072 = vadd.f32 %v3963, 1.0
      %v4073 = vadd.f32 %v3965, 1.0
      %v4074 = vadd.f32 %v3967, 1.0
      %v4075 = vadd.f32 %v3969, 1.0
      %v4076 = vadd.f32 %v3971, 1.0
      %v4077 = vadd.f32 %v3973, 1.0
      %v4078 = vadd.f32 %v3975, 1.0
      %v4079 = vadd.f32 %v3977, 1.0
      %v4080 = vadd.f32 %v3979, 1.0
      %v4081 = vadd.f32 %v3981, 1.0
      %v4082 = vadd.f32 %v3983, 1.0
      %v4083 = vadd.f32 %v3985, 1.0
      %v4084 = vadd.f32 %v3987, 1.0
      %v4085 = vadd.f32 %v3989, 1.0
      %v4086 = vadd.f32 %v3991, 1.0
      %v4087 = vadd.f32 %v3993, 1.0
      %v4088 = vadd.f32 %v3995, 1.0
      %v4089 = vadd.f32 %v3997, 1.0
      %v4090 = vadd.f32 %v3999, 1.0
      %v4091 = vadd.f32 %v4001, 1.0
      %v4092 = vadd.f32 %v4003, 1.0
      %v4093 = vadd.f32 %v4005, 1.0
      %v4094 = vadd.f32 %v4007, 1.0
      %v4095 = vadd.f32 %v4009, 1.0
      %v4096 = vadd.f32 %v4011, 1.0
      %v4097 = vadd.f32 %v4013, 1.0
      %v4098 = vadd.f32 %v4015, 1.0
      %v4099 = vadd.f32 %v4017, 1.0
      %v4100 = vadd.f32 %v4019, 1.0
      %v4101 = vadd.f32 %v4021, 1.0
      %v4102 = vadd.f32 %v4023, 1.0
      %v4103 = vadd.f32 %v4025, 1.0
      %v4104 = vadd.f32 %v4027, 1.0
      %v4105 = vrcp.pop %v4028
      %v4106 = vmul.f32 1.0, %v4105
      %v4107 = vrcp.pop %v4029
      %v4108 = vmul.f32 1.0, %v4107
      %v4109 = vrcp.pop %v4030
      %v4110 = vmul.f32 1.0, %v4109
      %v4111 = vrcp.pop %v4031
      %v4112 = vmul.f32 1.0, %v4111
      %v4113 = vrcp.pop %v4032
      %v4114 = vmul.f32 1.0, %v4113
      %v4115 = vrcp.pop %v4033
      %v4116 = vmul.f32 1.0, %v4115
      %v4117 = vrcp.pop %v4034
      %v4118 = vmul.f32 1.0, %v4117
      %v4119 = vrcp.pop %v4035
      %v4120 = vmul.f32 1.0, %v4119
      %v4121 = vrcp.pop %v4036
      %v4122 = vmul.f32 1.0, %v4121
      %v4123 = vrcp.pop %v4037
      %v4124 = vmul.f32 1.0, %v4123
      %v4125 = vrcp.pop %v4038
      %v4126 = vmul.f32 1.0, %v4125
      %v4127 = vrcp.pop %v4039
      %v4128 = vmul.f32 1.0, %v4127
      %v4129 = vrcp.pop %v4040
      %v4130 = vmul.f32 1.0, %v4129
      %v4131 = vrcp.pop %v4041
      %v4132 = vmul.f32 1.0, %v4131
      %v4133 = vrcp.pop %v4042
      %v4134 = vmul.f32 1.0, %v4133
      %v4135 = vrcp.pop %v4043
      %v4136 = vmul.f32 1.0, %v4135
      %v4137 = vrcp.pop %v4044
      %v4138 = vmul.f32 1.0, %v4137
      %v4139 = vrcp.pop %v4045
      %v4140 = vmul.f32 1.0, %v4139
      %v4141 = vrcp.pop %v4046
      %v4142 = vmul.f32 1.0, %v4141
      %v4143 = vrcp.pop %v4047
      %v4144 = vmul.f32 1.0, %v4143
      %v4145 = vrcp.pop %v4048
      %v4146 = vmul.f32 1.0, %v4145
      %v4147 = vrcp.pop %v4049
      %v4148 = vmul.f32 1.0, %v4147
      %v4149 = vrcp.pop %v4050
      %v4150 = vmul.f32 1.0, %v4149
      %v4151 = vrcp.pop %v4051
      %v4152 = vmul.f32 1.0, %v4151
      %v4153 = vrcp.pop %v4052
      %v4154 = vmul.f32 1.0, %v4153
      %v4155 = vrcp.pop %v4053
      %v4156 = vmul.f32 1.0, %v4155
      %v4157 = vrcp.pop %v4054
      %v4158 = vmul.f32 1.0, %v4157
      %v4159 = vrcp.pop %v4055
      %v4160 = vmul.f32 1.0, %v4159
      %v4161 = vrcp.pop %v4056
      %v4162 = vmul.f32 1.0, %v4161
      %v4163 = vrcp.pop %v4057
      %v4164 = vmul.f32 1.0, %v4163
      %v4165 = vrcp.pop %v4058
      %v4166 = vmul.f32 1.0, %v4165
      %v4167 = vrcp.pop %v4059
      %v4168 = vmul.f32 1.0, %v4167
      %v4169 = vrcp.pop %v4060
      %v4170 = vmul.f32 1.0, %v4169
      %v4171 = vrcp.pop %v4061
      %v4172 = vmul.f32 1.0, %v4171
      %v4173 = vrcp.pop %v4062
      %v4174 = vmul.f32 1.0, %v4173
      %v4175 = vrcp.pop %v4063
      %v4176 = vmul.f32 1.0, %v4175
      %v4177 = vrcp.pop %v4064
      %v4178 = vmul.f32 1.0, %v4177
      %v4179 = vrcp.pop %v4065
      %v4180 = vmul.f32 1.0, %v4179
      %v4181 = vrcp.pop %v4066
      %v4182 = vmul.f32 1.0, %v4181
      %v4183 = vrcp.pop %v4067
      %v4184 = vmul.f32 1.0, %v4183
      %v4185 = vrcp.pop %v4068
      %v4186 = vmul.f32 1.0, %v4185
      %v4187 = vrcp.pop %v4069
      %v4188 = vmul.f32 1.0, %v4187
      %v4189 = vrcp.pop %v4070
      %v4190 = vmul.f32 1.0, %v4189
      %v4191 = vrcp.pop %v4071
      %v4192 = vmul.f32 1.0, %v4191
      %v4193 = vrcp.pop %v4072
      %v4194 = vmul.f32 1.0, %v4193
      %v4195 = vrcp.pop %v4073
      %v4196 = vmul.f32 1.0, %v4195
      %v4197 = vrcp.pop %v4074
      %v4198 = vmul.f32 1.0, %v4197
      %v4199 = vrcp.pop %v4075
      %v4200 = vmul.f32 1.0, %v4199
      %v4201 = vrcp.pop %v4076
      %v4202 = vmul.f32 1.0, %v4201
      %v4203 = vrcp.pop %v4077
      %v4204 = vmul.f32 1.0, %v4203
      %v4205 = vrcp.pop %v4078
      %v4206 = vmul.f32 1.0, %v4205
      %v4207 = vrcp.pop %v4079
      %v4208 = vmul.f32 1.0, %v4207
      %v4209 = vrcp.pop %v4080
      %v4210 = vmul.f32 1.0, %v4209
      %v4211 = vrcp.pop %v4081
      %v4212 = vmul.f32 1.0, %v4211
      %v4213 = vrcp.pop %v4082
      %v4214 = vmul.f32 1.0, %v4213
      %v4215 = vrcp.pop %v4083
      %v4216 = vmul.f32 1.0, %v4215
      %v4217 = vrcp.pop %v4084
      %v4218 = vmul.f32 1.0, %v4217
      %v4219 = vrcp.pop %v4085
      %v4220 = vmul.f32 1.0, %v4219
      %v4221 = vrcp.pop %v4086
      %v4222 = vmul.f32 1.0, %v4221
      %v4223 = vrcp.pop %v4087
      %v4224 = vmul.f32 1.0, %v4223
      %v4225 = vrcp.pop %v4088
      %v4226 = vmul.f32 1.0, %v4225
      %v4227 = vrcp.pop %v4089
      %v4228 = vmul.f32 1.0, %v4227
      %v4229 = vrcp.pop %v4090
      %v4230 = vmul.f32 1.0, %v4229
      %v4231 = vrcp.pop %v4091
      %v4232 = vmul.f32 1.0, %v4231
      %v4233 = vrcp.pop %v4092
      %v4234 = vmul.f32 1.0, %v4233
      %v4235 = vrcp.pop %v4093
      %v4236 = vmul.f32 1.0, %v4235
      %v4237 = vrcp.pop %v4094
      %v4238 = vmul.f32 1.0, %v4237
      %v4239 = vrcp.pop %v4095
      %v4240 = vmul.f32 1.0, %v4239
      %v4241 = vrcp.pop %v4096
      %v4242 = vmul.f32 1.0, %v4241
      %v4243 = vrcp.pop %v4097
      %v4244 = vmul.f32 1.0, %v4243
      %v4245 = vrcp.pop %v4098
      %v4246 = vmul.f32 1.0, %v4245
      %v4247 = vrcp.pop %v4099
      %v4248 = vmul.f32 1.0, %v4247
      %v4249 = vrcp.pop %v4100
      %v4250 = vmul.f32 1.0, %v4249
      %v4251 = vrcp.pop %v4101
      %v4252 = vmul.f32 1.0, %v4251
      %v4253 = vrcp.pop %v4102
      %v4254 = vmul.f32 1.0, %v4253
      %v4255 = vrcp.pop %v4103
      %v4256 = vmul.f32 1.0, %v4255
      %v4257 = vrcp.pop %v4104
      %v4258 = vmul.f32 1.0, %v4257
      %v4259 = vpack.c.bf16 %v4108, %v4106
      %v4260 = vpack.c.bf16 %v4112, %v4110
      %v4261 = vpack.c.bf16 %v4116, %v4114
      %v4262 = vpack.c.bf16 %v4120, %v4118
      %v4263 = vpack.c.bf16 %v4124, %v4122
      %v4264 = vpack.c.bf16 %v4128, %v4126
      %v4265 = vpack.c.bf16 %v4132, %v4130
      %v4266 = vpack.c.bf16 %v4136, %v4134
      %v4267 = vpack.c.bf16 %v4140, %v4138
      %v4268 = vpack.c.bf16 %v4144, %v4142
      %v4269 = vpack.c.bf16 %v4148, %v4146
      %v4270 = vpack.c.bf16 %v4152, %v4150
      %v4271 = vpack.c.bf16 %v4156, %v4154
      %v4272 = vpack.c.bf16 %v4160, %v4158
      %v4273 = vpack.c.bf16 %v4164, %v4162
      %v4274 = vpack.c.bf16 %v4168, %v4166
      %v4275 = vpack.c.bf16 %v4172, %v4170
      %v4276 = vpack.c.bf16 %v4176, %v4174
      %v4277 = vpack.c.bf16 %v4180, %v4178
      %v4278 = vpack.c.bf16 %v4184, %v4182
      %v4279 = vpack.c.bf16 %v4188, %v4186
      %v4280 = vpack.c.bf16 %v4192, %v4190
      %v4281 = vpack.c.bf16 %v4196, %v4194
      %v4282 = vpack.c.bf16 %v4200, %v4198
      %v4283 = vpack.c.bf16 %v4204, %v4202
      %v4284 = vpack.c.bf16 %v4208, %v4206
      %v4285 = vpack.c.bf16 %v4212, %v4210
      %v4286 = vpack.c.bf16 %v4216, %v4214
      %v4287 = vpack.c.bf16 %v4220, %v4218
      %v4288 = vpack.c.bf16 %v4224, %v4222
      %v4289 = vpack.c.bf16 %v4228, %v4226
      %v4290 = vpack.c.bf16 %v4232, %v4230
      %v4291 = vpack.c.bf16 %v4236, %v4234
      %v4292 = vpack.c.bf16 %v4240, %v4238
      %v4293 = vpack.c.bf16 %v4244, %v4242
      %v4294 = vpack.c.bf16 %v4248, %v4246
      %v4295 = vpack.c.bf16 %v4252, %v4250
      %v4296 = vpack.c.bf16 %v4256, %v4254
      %v4297 = vpack.c.bf16 %v4258, %v4258
      %v4337 = vunpack.c.l.b16 %v4259
      %v4338 = vunpack.c.h.b16 %v4259
      %v4339 = vunpack.c.l.b16 %v4260
      %v4340 = vunpack.c.h.b16 %v4260
      %v4341 = vunpack.c.l.b16 %v4261
      %v4342 = vunpack.c.h.b16 %v4261
      %v4343 = vunpack.c.l.b16 %v4262
      %v4344 = vunpack.c.h.b16 %v4262
      %v4345 = vunpack.c.l.b16 %v4263
      %v4346 = vunpack.c.h.b16 %v4263
      %v4347 = vunpack.c.l.b16 %v4264
      %v4348 = vunpack.c.h.b16 %v4264
      %v4349 = vunpack.c.l.b16 %v4265
      %v4350 = vunpack.c.h.b16 %v4265
      %v4351 = vunpack.c.l.b16 %v4266
      %v4352 = vunpack.c.h.b16 %v4266
      %v4353 = vunpack.c.l.b16 %v4267
      %v4354 = vunpack.c.h.b16 %v4267
      %v4355 = vunpack.c.l.b16 %v4268
      %v4356 = vunpack.c.h.b16 %v4268
      %v4357 = vunpack.c.l.b16 %v4269
      %v4358 = vunpack.c.h.b16 %v4269
      %v4359 = vunpack.c.l.b16 %v4270
      %v4360 = vunpack.c.h.b16 %v4270
      %v4361 = vunpack.c.l.b16 %v4271
      %v4362 = vunpack.c.h.b16 %v4271
      %v4363 = vunpack.c.l.b16 %v4272
      %v4364 = vunpack.c.h.b16 %v4272
      %v4365 = vunpack.c.l.b16 %v4273
      %v4366 = vunpack.c.h.b16 %v4273
      %v4367 = vunpack.c.l.b16 %v4274
      %v4368 = vunpack.c.h.b16 %v4274
      %v4369 = vunpack.c.l.b16 %v4275
      %v4370 = vunpack.c.h.b16 %v4275
      %v4371 = vunpack.c.l.b16 %v4276
      %v4372 = vunpack.c.h.b16 %v4276
      %v4373 = vunpack.c.l.b16 %v4277
      %v4374 = vunpack.c.h.b16 %v4277
      %v4375 = vunpack.c.l.b16 %v4278
      %v4376 = vunpack.c.h.b16 %v4278
      %v4377 = vunpack.c.l.b16 %v4279
      %v4378 = vunpack.c.h.b16 %v4279
      %v4379 = vunpack.c.l.b16 %v4280
      %v4380 = vunpack.c.h.b16 %v4280
      %v4381 = vunpack.c.l.b16 %v4281
      %v4382 = vunpack.c.h.b16 %v4281
      %v4383 = vunpack.c.l.b16 %v4282
      %v4384 = vunpack.c.h.b16 %v4282
      %v4385 = vunpack.c.l.b16 %v4283
      %v4386 = vunpack.c.h.b16 %v4283
      %v4387 = vunpack.c.l.b16 %v4284
      %v4388 = vunpack.c.h.b16 %v4284
      %v4389 = vunpack.c.l.b16 %v4285
      %v4390 = vunpack.c.h.b16 %v4285
      %v4391 = vunpack.c.l.b16 %v4286
      %v4392 = vunpack.c.h.b16 %v4286
      %v4393 = vunpack.c.l.b16 %v4287
      %v4394 = vunpack.c.h.b16 %v4287
      %v4395 = vunpack.c.l.b16 %v4288
      %v4396 = vunpack.c.h.b16 %v4288
      %v4397 = vunpack.c.l.b16 %v4289
      %v4398 = vunpack.c.h.b16 %v4289
      %v4399 = vunpack.c.l.b16 %v4290
      %v4400 = vunpack.c.h.b16 %v4290
      %v4401 = vunpack.c.l.b16 %v4291
      %v4402 = vunpack.c.h.b16 %v4291
      %v4403 = vunpack.c.l.b16 %v4292
      %v4404 = vunpack.c.h.b16 %v4292
      %v4405 = vunpack.c.l.b16 %v4293
      %v4406 = vunpack.c.h.b16 %v4293
      %v4407 = vunpack.c.l.b16 %v4294
      %v4408 = vunpack.c.h.b16 %v4294
      %v4409 = vunpack.c.l.b16 %v4295
      %v4410 = vunpack.c.h.b16 %v4295
      %v4411 = vunpack.c.l.b16 %v4296
      %v4412 = vunpack.c.h.b16 %v4296
      %v4413 = vunpack.c.l.b16 %v4297
      %v4414 = vpack.c.b16 %v4337, %v4337
      %v4415 = vpack.c.b16 %v4338, %v4338
      %v4416 = vpack.c.b16 %v4339, %v4339
      %v4417 = vpack.c.b16 %v4340, %v4340
      %v4418 = vpack.c.b16 %v4341, %v4341
      %v4419 = vpack.c.b16 %v4342, %v4342
      %v4420 = vpack.c.b16 %v4343, %v4343
      %v4421 = vpack.c.b16 %v4344, %v4344
      %v4422 = vpack.c.b16 %v4345, %v4345
      %v4423 = vpack.c.b16 %v4346, %v4346
      %v4424 = vpack.c.b16 %v4347, %v4347
      %v4425 = vpack.c.b16 %v4348, %v4348
      %v4426 = vpack.c.b16 %v4349, %v4349
      %v4427 = vpack.c.b16 %v4350, %v4350
      %v4428 = vpack.c.b16 %v4351, %v4351
      %v4429 = vpack.c.b16 %v4352, %v4352
      %v4430 = vpack.c.b16 %v4353, %v4353
      %v4431 = vpack.c.b16 %v4354, %v4354
      %v4432 = vpack.c.b16 %v4355, %v4355
      %v4433 = vpack.c.b16 %v4356, %v4356
      %v4434 = vpack.c.b16 %v4357, %v4357
      %v4435 = vpack.c.b16 %v4358, %v4358
      %v4436 = vpack.c.b16 %v4359, %v4359
      %v4437 = vpack.c.b16 %v4360, %v4360
      %v4438 = vpack.c.b16 %v4361, %v4361
      %v4439 = vpack.c.b16 %v4362, %v4362
      %v4440 = vpack.c.b16 %v4363, %v4363
      %v4441 = vpack.c.b16 %v4364, %v4364
      %v4442 = vpack.c.b16 %v4365, %v4365
      %v4443 = vpack.c.b16 %v4366, %v4366
      %v4444 = vpack.c.b16 %v4367, %v4367
      %v4445 = vpack.c.b16 %v4368, %v4368
      %v4446 = vpack.c.b16 %v4369, %v4369
      %v4447 = vpack.c.b16 %v4370, %v4370
      %v4448 = vpack.c.b16 %v4371, %v4371
      %v4449 = vpack.c.b16 %v4372, %v4372
      %v4450 = vpack.c.b16 %v4373, %v4373
      %v4451 = vpack.c.b16 %v4374, %v4374
      %v4452 = vpack.c.b16 %v4375, %v4375
      %v4453 = vpack.c.b16 %v4376, %v4376
      %v4454 = vpack.c.b16 %v4377, %v4377
      %v4455 = vpack.c.b16 %v4378, %v4378
      %v4456 = vpack.c.b16 %v4379, %v4379
      %v4457 = vpack.c.b16 %v4380, %v4380
      %v4458 = vpack.c.b16 %v4381, %v4381
      %v4459 = vpack.c.b16 %v4382, %v4382
      %v4460 = vpack.c.b16 %v4383, %v4383
      %v4461 = vpack.c.b16 %v4384, %v4384
      %v4462 = vpack.c.b16 %v4385, %v4385
      %v4463 = vpack.c.b16 %v4386, %v4386
      %v4464 = vpack.c.b16 %v4387, %v4387
      %v4465 = vpack.c.b16 %v4388, %v4388
      %v4466 = vpack.c.b16 %v4389, %v4389
      %v4467 = vpack.c.b16 %v4390, %v4390
      %v4468 = vpack.c.b16 %v4391, %v4391
      %v4469 = vpack.c.b16 %v4392, %v4392
      %v4470 = vpack.c.b16 %v4393, %v4393
      %v4471 = vpack.c.b16 %v4394, %v4394
      %v4472 = vpack.c.b16 %v4395, %v4395
      %v4473 = vpack.c.b16 %v4396, %v4396
      %v4474 = vpack.c.b16 %v4397, %v4397
      %v4475 = vpack.c.b16 %v4398, %v4398
      %v4476 = vpack.c.b16 %v4399, %v4399
      %v4477 = vpack.c.b16 %v4400, %v4400
      %v4478 = vpack.c.b16 %v4401, %v4401
      %v4479 = vpack.c.b16 %v4402, %v4402
      %v4480 = vpack.c.b16 %v4403, %v4403
      %v4481 = vpack.c.b16 %v4404, %v4404
      %v4482 = vpack.c.b16 %v4405, %v4405
      %v4483 = vpack.c.b16 %v4406, %v4406
      %v4484 = vpack.c.b16 %v4407, %v4407
      %v4485 = vpack.c.b16 %v4408, %v4408
      %v4486 = vpack.c.b16 %v4409, %v4409
      %v4487 = vpack.c.b16 %v4410, %v4410
      %v4488 = vpack.c.b16 %v4411, %v4411
      %v4489 = vpack.c.b16 %v4412, %v4412
      %v4490 = vpack.c.b16 %v4413, %v4413
      %vm4568 = vcmask 27648
      %4569 = vst.msk [vmem:[%s266] sm:$0xf] %vm4568, %v4414
      %4570 = vst.msk [vmem:[%s266 + $0x4] sm:$0xf] %vm4568, %v4415
      %4571 = vst.msk [vmem:[%s266 + $0x8] sm:$0xf] %vm4568, %v4416
      %4572 = vst.msk [vmem:[%s266 + $0xc] sm:$0xf] %vm4568, %v4417
      %4573 = vst.msk [vmem:[%s266 + $0x10] sm:$0xf] %vm4568, %v4418
      %4574 = vst.msk [vmem:[%s266 + $0x14] sm:$0xf] %vm4568, %v4419
      %4575 = vst.msk [vmem:[%s266 + $0x18] sm:$0xf] %vm4568, %v4420
      %4576 = vst.msk [vmem:[%s266 + $0x1c] sm:$0xf] %vm4568, %v4421
      %4577 = vst.msk [vmem:[%s266 + $0x20] sm:$0xf] %vm4568, %v4422
      %4578 = vst.msk [vmem:[%s266 + $0x24] sm:$0xf] %vm4568, %v4423
      %4579 = vst.msk [vmem:[%s266 + $0x28] sm:$0xf] %vm4568, %v4424
      %4580 = vst.msk [vmem:[%s266 + $0x2c] sm:$0xf] %vm4568, %v4425
      %4581 = vst.msk [vmem:[%s266 + $0x30] sm:$0xf] %vm4568, %v4426
      %4582 = vst.msk [vmem:[%s266 + $0x34] sm:$0xf] %vm4568, %v4427
      %4583 = vst.msk [vmem:[%s266 + $0x38] sm:$0xf] %vm4568, %v4428
      %4584 = vst.msk [vmem:[%s266 + $0x3c] sm:$0xf] %vm4568, %v4429
      %4585 = vst.msk [vmem:[%s266 + $0x40] sm:$0xf] %vm4568, %v4430
      %4586 = vst.msk [vmem:[%s266 + $0x44] sm:$0xf] %vm4568, %v4431
      %4587 = vst.msk [vmem:[%s266 + $0x48] sm:$0xf] %vm4568, %v4432
      %4588 = vst.msk [vmem:[%s266 + $0x4c] sm:$0xf] %vm4568, %v4433
      %4589 = vst.msk [vmem:[%s266 + $0x50] sm:$0xf] %vm4568, %v4434
      %4590 = vst.msk [vmem:[%s266 + $0x54] sm:$0xf] %vm4568, %v4435
      %4591 = vst.msk [vmem:[%s266 + $0x58] sm:$0xf] %vm4568, %v4436
      %4592 = vst.msk [vmem:[%s266 + $0x5c] sm:$0xf] %vm4568, %v4437
      %4593 = vst.msk [vmem:[%s266 + $0x60] sm:$0xf] %vm4568, %v4438
      %4594 = vst.msk [vmem:[%s266 + $0x64] sm:$0xf] %vm4568, %v4439
      %4595 = vst.msk [vmem:[%s266 + $0x68] sm:$0xf] %vm4568, %v4440
      %4596 = vst.msk [vmem:[%s266 + $0x6c] sm:$0xf] %vm4568, %v4441
      %4597 = vst.msk [vmem:[%s266 + $0x70] sm:$0xf] %vm4568, %v4442
      %4598 = vst.msk [vmem:[%s266 + $0x74] sm:$0xf] %vm4568, %v4443
      %4599 = vst.msk [vmem:[%s266 + $0x78] sm:$0xf] %vm4568, %v4444
      %4600 = vst.msk [vmem:[%s266 + $0x7c] sm:$0xf] %vm4568, %v4445
      %4601 = vst.msk [vmem:[%s266 + $0x80] sm:$0xf] %vm4568, %v4446
      %4602 = vst.msk [vmem:[%s266 + $0x84] sm:$0xf] %vm4568, %v4447
      %4603 = vst.msk [vmem:[%s266 + $0x88] sm:$0xf] %vm4568, %v4448
      %4604 = vst.msk [vmem:[%s266 + $0x8c] sm:$0xf] %vm4568, %v4449
      %4605 = vst.msk [vmem:[%s266 + $0x90] sm:$0xf] %vm4568, %v4450
      %4606 = vst.msk [vmem:[%s266 + $0x94] sm:$0xf] %vm4568, %v4451
      %4607 = vst.msk [vmem:[%s266 + $0x98] sm:$0xf] %vm4568, %v4452
      %4608 = vst.msk [vmem:[%s266 + $0x9c] sm:$0xf] %vm4568, %v4453
      %4609 = vst.msk [vmem:[%s266 + $0xa0] sm:$0xf] %vm4568, %v4454
      %4610 = vst.msk [vmem:[%s266 + $0xa4] sm:$0xf] %vm4568, %v4455
      %4611 = vst.msk [vmem:[%s266 + $0xa8] sm:$0xf] %vm4568, %v4456
      %4612 = vst.msk [vmem:[%s266 + $0xac] sm:$0xf] %vm4568, %v4457
      %4613 = vst.msk [vmem:[%s266 + $0xb0] sm:$0xf] %vm4568, %v4458
      %4614 = vst.msk [vmem:[%s266 + $0xb4] sm:$0xf] %vm4568, %v4459
      %4615 = vst.msk [vmem:[%s266 + $0xb8] sm:$0xf] %vm4568, %v4460
      %4616 = vst.msk [vmem:[%s266 + $0xbc] sm:$0xf] %vm4568, %v4461
      %4617 = vst.msk [vmem:[%s266 + $0xc0] sm:$0xf] %vm4568, %v4462
      %4618 = vst.msk [vmem:[%s266 + $0xc4] sm:$0xf] %vm4568, %v4463
      %4619 = vst.msk [vmem:[%s266 + $0xc8] sm:$0xf] %vm4568, %v4464
      %4620 = vst.msk [vmem:[%s266 + $0xcc] sm:$0xf] %vm4568, %v4465
      %4621 = vst.msk [vmem:[%s266 + $0xd0] sm:$0xf] %vm4568, %v4466
      %4622 = vst.msk [vmem:[%s266 + $0xd4] sm:$0xf] %vm4568, %v4467
      %4623 = vst.msk [vmem:[%s266 + $0xd8] sm:$0xf] %vm4568, %v4468
      %4624 = vst.msk [vmem:[%s266 + $0xdc] sm:$0xf] %vm4568, %v4469
      %4625 = vst.msk [vmem:[%s266 + $0xe0] sm:$0xf] %vm4568, %v4470
      %4626 = vst.msk [vmem:[%s266 + $0xe4] sm:$0xf] %vm4568, %v4471
      %4627 = vst.msk [vmem:[%s266 + $0xe8] sm:$0xf] %vm4568, %v4472
      %4628 = vst.msk [vmem:[%s266 + $0xec] sm:$0xf] %vm4568, %v4473
      %4629 = vst.msk [vmem:[%s266 + $0xf0] sm:$0xf] %vm4568, %v4474
      %4630 = vst.msk [vmem:[%s266 + $0xf4] sm:$0xf] %vm4568, %v4475
      %4631 = vst.msk [vmem:[%s266 + $0xf8] sm:$0xf] %vm4568, %v4476
      %4632 = vst.msk [vmem:[%s266 + $0xfc] sm:$0xf] %vm4568, %v4477
      %4633 = vst.msk [vmem:[%s266 + $0x100] sm:$0xf] %vm4568, %v4478
      %4634 = vst.msk [vmem:[%s266 + $0x104] sm:$0xf] %vm4568, %v4479
      %4635 = vst.msk [vmem:[%s266 + $0x108] sm:$0xf] %vm4568, %v4480
      %4636 = vst.msk [vmem:[%s266 + $0x10c] sm:$0xf] %vm4568, %v4481
      %4637 = vst.msk [vmem:[%s266 + $0x110] sm:$0xf] %vm4568, %v4482
      %4638 = vst.msk [vmem:[%s266 + $0x114] sm:$0xf] %vm4568, %v4483
      %4639 = vst.msk [vmem:[%s266 + $0x118] sm:$0xf] %vm4568, %v4484
      %4640 = vst.msk [vmem:[%s266 + $0x11c] sm:$0xf] %vm4568, %v4485
      %4641 = vst.msk [vmem:[%s266 + $0x120] sm:$0xf] %vm4568, %v4486
      %4642 = vst.msk [vmem:[%s266 + $0x124] sm:$0xf] %vm4568, %v4487
      %4643 = vst.msk [vmem:[%s266 + $0x128] sm:$0xf] %vm4568, %v4488
      %4644 = vst.msk [vmem:[%s266 + $0x12c] sm:$0xf] %vm4568, %v4489
      %vm4645 = vcmask 25600
      %4646 = vst.msk [vmem:[%s266 + $0x130] sm:$0x3] %vm4645, %v4490
      %4724 = vrot.lane.b32.xlu0 %v3488, 124
      %v4725 = vpop.permute.xlu0 %4724
      %4726 = vrot.lane.b32.xlu0 %v3491, 124
      %v4727 = vpop.permute.xlu0 %4726
      %4728 = vrot.lane.b32.xlu0 %v3496, 124
      %v4729 = vpop.permute.xlu0 %4728
      %4730 = vrot.lane.b32.xlu0 %v3499, 124
      %v4731 = vpop.permute.xlu0 %4730
      %4732 = vrot.lane.b32.xlu0 %v3504, 124
      %v4733 = vpop.permute.xlu0 %4732
      %4734 = vrot.lane.b32.xlu0 %v3507, 124
      %v4735 = vpop.permute.xlu0 %4734
      %4736 = vrot.lane.b32.xlu0 %v3512, 124
      %v4737 = vpop.permute.xlu0 %4736
      %4738 = vrot.lane.b32.xlu0 %v3515, 124
      %v4739 = vpop.permute.xlu0 %4738
      %4740 = vrot.lane.b32.xlu0 %v3520, 124
      %v4741 = vpop.permute.xlu0 %4740
      %4742 = vrot.lane.b32.xlu0 %v3523, 124
      %v4743 = vpop.permute.xlu0 %4742
      %4744 = vrot.lane.b32.xlu0 %v3528, 124
      %v4745 = vpop.permute.xlu0 %4744
      %4746 = vrot.lane.b32.xlu0 %v3531, 124
      %v4747 = vpop.permute.xlu0 %4746
      %4748 = vrot.lane.b32.xlu0 %v3536, 124
      %v4749 = vpop.permute.xlu0 %4748
      %4750 = vrot.lane.b32.xlu0 %v3539, 124
      %v4751 = vpop.permute.xlu0 %4750
      %4752 = vrot.lane.b32.xlu0 %v3544, 124
      %v4753 = vpop.permute.xlu0 %4752
      %4754 = vrot.lane.b32.xlu0 %v3547, 124
      %v4755 = vpop.permute.xlu0 %4754
      %4756 = vrot.lane.b32.xlu0 %v3552, 124
      %v4757 = vpop.permute.xlu0 %4756
      %4758 = vrot.lane.b32.xlu0 %v3555, 124
      %v4759 = vpop.permute.xlu0 %4758
      %4760 = vrot.lane.b32.xlu0 %v3560, 124
      %v4761 = vpop.permute.xlu0 %4760
      %4762 = vrot.lane.b32.xlu0 %v3563, 124
      %v4763 = vpop.permute.xlu0 %4762
      %4764 = vrot.lane.b32.xlu0 %v3568, 124
      %v4765 = vpop.permute.xlu0 %4764
      %4766 = vrot.lane.b32.xlu0 %v3571, 124
      %v4767 = vpop.permute.xlu0 %4766
      %4768 = vrot.lane.b32.xlu0 %v3576, 124
      %v4769 = vpop.permute.xlu0 %4768
      %4770 = vrot.lane.b32.xlu0 %v3579, 124
      %v4771 = vpop.permute.xlu0 %4770
      %4772 = vrot.lane.b32.xlu0 %v3584, 124
      %v4773 = vpop.permute.xlu0 %4772
      %4774 = vrot.lane.b32.xlu0 %v3587, 124
      %v4775 = vpop.permute.xlu0 %4774
      %4776 = vrot.lane.b32.xlu0 %v3592, 124
      %v4777 = vpop.permute.xlu0 %4776
      %4778 = vrot.lane.b32.xlu0 %v3595, 124
      %v4779 = vpop.permute.xlu0 %4778
      %4780 = vrot.lane.b32.xlu0 %v3600, 124
      %v4781 = vpop.permute.xlu0 %4780
      %4782 = vrot.lane.b32.xlu0 %v3603, 124
      %v4783 = vpop.permute.xlu0 %4782
      %4784 = vrot.lane.b32.xlu0 %v3608, 124
      %v4785 = vpop.permute.xlu0 %4784
      %4786 = vrot.lane.b32.xlu0 %v3611, 124
      %v4787 = vpop.permute.xlu0 %4786
      %4788 = vrot.lane.b32.xlu0 %v3616, 124
      %v4789 = vpop.permute.xlu0 %4788
      %4790 = vrot.lane.b32.xlu0 %v3619, 124
      %v4791 = vpop.permute.xlu0 %4790
      %4792 = vrot.lane.b32.xlu0 %v3624, 124
      %v4793 = vpop.permute.xlu0 %4792
      %4794 = vrot.lane.b32.xlu0 %v3627, 124
      %v4795 = vpop.permute.xlu0 %4794
      %4796 = vrot.lane.b32.xlu0 %v3632, 124
      %v4797 = vpop.permute.xlu0 %4796
      %4798 = vrot.lane.b32.xlu0 %v3635, 124
      %v4799 = vpop.permute.xlu0 %4798
      %4800 = vrot.lane.b32.xlu0 %v3640, 124
      %v4801 = vpop.permute.xlu0 %4800
      %4802 = vrot.lane.b32.xlu0 %v3643, 124
      %v4803 = vpop.permute.xlu0 %4802
      %4804 = vrot.lane.b32.xlu0 %v3648, 124
      %v4805 = vpop.permute.xlu0 %4804
      %4806 = vrot.lane.b32.xlu0 %v3651, 124
      %v4807 = vpop.permute.xlu0 %4806
      %4808 = vrot.lane.b32.xlu0 %v3656, 124
      %v4809 = vpop.permute.xlu0 %4808
      %4810 = vrot.lane.b32.xlu0 %v3659, 124
      %v4811 = vpop.permute.xlu0 %4810
      %4812 = vrot.lane.b32.xlu0 %v3664, 124
      %v4813 = vpop.permute.xlu0 %4812
      %4814 = vrot.lane.b32.xlu0 %v3667, 124
      %v4815 = vpop.permute.xlu0 %4814
      %4816 = vrot.lane.b32.xlu0 %v3672, 124
      %v4817 = vpop.permute.xlu0 %4816
      %4818 = vrot.lane.b32.xlu0 %v3675, 124
      %v4819 = vpop.permute.xlu0 %4818
      %4820 = vrot.lane.b32.xlu0 %v3680, 124
      %v4821 = vpop.permute.xlu0 %4820
      %4822 = vrot.lane.b32.xlu0 %v3683, 124
      %v4823 = vpop.permute.xlu0 %4822
      %4824 = vrot.lane.b32.xlu0 %v3688, 124
      %v4825 = vpop.permute.xlu0 %4824
      %4826 = vrot.lane.b32.xlu0 %v3691, 124
      %v4827 = vpop.permute.xlu0 %4826
      %4828 = vrot.lane.b32.xlu0 %v3696, 124
      %v4829 = vpop.permute.xlu0 %4828
      %4830 = vrot.lane.b32.xlu0 %v3699, 124
      %v4831 = vpop.permute.xlu0 %4830
      %4832 = vrot.lane.b32.xlu0 %v3704, 124
      %v4833 = vpop.permute.xlu0 %4832
      %4834 = vrot.lane.b32.xlu0 %v3707, 124
      %v4835 = vpop.permute.xlu0 %4834
      %4836 = vrot.lane.b32.xlu0 %v3712, 124
      %v4837 = vpop.permute.xlu0 %4836
      %4838 = vrot.lane.b32.xlu0 %v3715, 124
      %v4839 = vpop.permute.xlu0 %4838
      %4840 = vrot.lane.b32.xlu0 %v3720, 124
      %v4841 = vpop.permute.xlu0 %4840
      %4842 = vrot.lane.b32.xlu0 %v3723, 124
      %v4843 = vpop.permute.xlu0 %4842
      %4844 = vrot.lane.b32.xlu0 %v3728, 124
      %v4845 = vpop.permute.xlu0 %4844
      %4846 = vrot.lane.b32.xlu0 %v3731, 124
      %v4847 = vpop.permute.xlu0 %4846
      %4848 = vrot.lane.b32.xlu0 %v3736, 124
      %v4849 = vpop.permute.xlu0 %4848
      %4850 = vrot.lane.b32.xlu0 %v3739, 124
      %v4851 = vpop.permute.xlu0 %4850
      %4852 = vrot.lane.b32.xlu0 %v3744, 124
      %v4853 = vpop.permute.xlu0 %4852
      %4854 = vrot.lane.b32.xlu0 %v3747, 124
      %v4855 = vpop.permute.xlu0 %4854
      %4856 = vrot.lane.b32.xlu0 %v3752, 124
      %v4857 = vpop.permute.xlu0 %4856
      %4858 = vrot.lane.b32.xlu0 %v3755, 124
      %v4859 = vpop.permute.xlu0 %4858
      %4860 = vrot.lane.b32.xlu0 %v3760, 124
      %v4861 = vpop.permute.xlu0 %4860
      %4862 = vrot.lane.b32.xlu0 %v3763, 124
      %v4863 = vpop.permute.xlu0 %4862
      %4864 = vrot.lane.b32.xlu0 %v3768, 124
      %v4865 = vpop.permute.xlu0 %4864
      %4866 = vrot.lane.b32.xlu0 %v3771, 124
      %v4867 = vpop.permute.xlu0 %4866
      %4868 = vrot.lane.b32.xlu0 %v3776, 124
      %v4869 = vpop.permute.xlu0 %4868
      %4870 = vrot.lane.b32.xlu0 %v3779, 124
      %v4871 = vpop.permute.xlu0 %4870
      %4872 = vrot.lane.b32.xlu0 %v3784, 124
      %v4873 = vpop.permute.xlu0 %4872
      %4874 = vrot.lane.b32.xlu0 %v3787, 124
      %v4875 = vpop.permute.xlu0 %4874
      %4876 = vrot.lane.b32.xlu0 %v3792, 124
      %v4877 = vpop.permute.xlu0 %4876
      %4955 = vst.msk [vmem:[%s271] sm:$0xff] %vm1895, %v4725
      %4956 = vst.msk [vmem:[%s271 + $0x8] sm:$0xff] %vm1895, %v4727
      %4957 = vst.msk [vmem:[%s271 + $0x10] sm:$0xff] %vm1895, %v4729
      %4958 = vst.msk [vmem:[%s271 + $0x18] sm:$0xff] %vm1895, %v4731
      %4959 = vst.msk [vmem:[%s271 + $0x20] sm:$0xff] %vm1895, %v4733
      %4960 = vst.msk [vmem:[%s271 + $0x28] sm:$0xff] %vm1895, %v4735
      %4961 = vst.msk [vmem:[%s271 + $0x30] sm:$0xff] %vm1895, %v4737
      %4962 = vst.msk [vmem:[%s271 + $0x38] sm:$0xff] %vm1895, %v4739
      %4963 = vst.msk [vmem:[%s271 + $0x40] sm:$0xff] %vm1895, %v4741
      %4964 = vst.msk [vmem:[%s271 + $0x48] sm:$0xff] %vm1895, %v4743
      %4965 = vst.msk [vmem:[%s271 + $0x50] sm:$0xff] %vm1895, %v4745
      %4966 = vst.msk [vmem:[%s271 + $0x58] sm:$0xff] %vm1895, %v4747
      %4967 = vst.msk [vmem:[%s271 + $0x60] sm:$0xff] %vm1895, %v4749
      %4968 = vst.msk [vmem:[%s271 + $0x68] sm:$0xff] %vm1895, %v4751
      %4969 = vst.msk [vmem:[%s271 + $0x70] sm:$0xff] %vm1895, %v4753
      %4970 = vst.msk [vmem:[%s271 + $0x78] sm:$0xff] %vm1895, %v4755
      %4971 = vst.msk [vmem:[%s271 + $0x80] sm:$0xff] %vm1895, %v4757
      %4972 = vst.msk [vmem:[%s271 + $0x88] sm:$0xff] %vm1895, %v4759
      %4973 = vst.msk [vmem:[%s271 + $0x90] sm:$0xff] %vm1895, %v4761
      %4974 = vst.msk [vmem:[%s271 + $0x98] sm:$0xff] %vm1895, %v4763
      %4975 = vst.msk [vmem:[%s271 + $0xa0] sm:$0xff] %vm1895, %v4765
      %4976 = vst.msk [vmem:[%s271 + $0xa8] sm:$0xff] %vm1895, %v4767
      %4977 = vst.msk [vmem:[%s271 + $0xb0] sm:$0xff] %vm1895, %v4769
      %4978 = vst.msk [vmem:[%s271 + $0xb8] sm:$0xff] %vm1895, %v4771
      %4979 = vst.msk [vmem:[%s271 + $0xc0] sm:$0xff] %vm1895, %v4773
      %4980 = vst.msk [vmem:[%s271 + $0xc8] sm:$0xff] %vm1895, %v4775
      %4981 = vst.msk [vmem:[%s271 + $0xd0] sm:$0xff] %vm1895, %v4777
      %4982 = vst.msk [vmem:[%s271 + $0xd8] sm:$0xff] %vm1895, %v4779
      %4983 = vst.msk [vmem:[%s271 + $0xe0] sm:$0xff] %vm1895, %v4781
      %4984 = vst.msk [vmem:[%s271 + $0xe8] sm:$0xff] %vm1895, %v4783
      %4985 = vst.msk [vmem:[%s271 + $0xf0] sm:$0xff] %vm1895, %v4785
      %4986 = vst.msk [vmem:[%s271 + $0xf8] sm:$0xff] %vm1895, %v4787
      %4987 = vst.msk [vmem:[%s271 + $0x100] sm:$0xff] %vm1895, %v4789
      %4988 = vst.msk [vmem:[%s271 + $0x108] sm:$0xff] %vm1895, %v4791
      %4989 = vst.msk [vmem:[%s271 + $0x110] sm:$0xff] %vm1895, %v4793
      %4990 = vst.msk [vmem:[%s271 + $0x118] sm:$0xff] %vm1895, %v4795
      %4991 = vst.msk [vmem:[%s271 + $0x120] sm:$0xff] %vm1895, %v4797
      %4992 = vst.msk [vmem:[%s271 + $0x128] sm:$0xff] %vm1895, %v4799
      %4993 = vst.msk [vmem:[%s271 + $0x130] sm:$0xff] %vm1895, %v4801
      %4994 = vst.msk [vmem:[%s271 + $0x138] sm:$0xff] %vm1895, %v4803
      %4995 = vst.msk [vmem:[%s271 + $0x140] sm:$0xff] %vm1895, %v4805
      %4996 = vst.msk [vmem:[%s271 + $0x148] sm:$0xff] %vm1895, %v4807
      %4997 = vst.msk [vmem:[%s271 + $0x150] sm:$0xff] %vm1895, %v4809
      %4998 = vst.msk [vmem:[%s271 + $0x158] sm:$0xff] %vm1895, %v4811
      %4999 = vst.msk [vmem:[%s271 + $0x160] sm:$0xff] %vm1895, %v4813
      %5000 = vst.msk [vmem:[%s271 + $0x168] sm:$0xff] %vm1895, %v4815
      %5001 = vst.msk [vmem:[%s271 + $0x170] sm:$0xff] %vm1895, %v4817
      %5002 = vst.msk [vmem:[%s271 + $0x178] sm:$0xff] %vm1895, %v4819
      %5003 = vst.msk [vmem:[%s271 + $0x180] sm:$0xff] %vm1895, %v4821
      %5004 = vst.msk [vmem:[%s271 + $0x188] sm:$0xff] %vm1895, %v4823
      %5005 = vst.msk [vmem:[%s271 + $0x190] sm:$0xff] %vm1895, %v4825
      %5006 = vst.msk [vmem:[%s271 + $0x198] sm:$0xff] %vm1895, %v4827
      %5007 = vst.msk [vmem:[%s271 + $0x1a0] sm:$0xff] %vm1895, %v4829
      %5008 = vst.msk [vmem:[%s271 + $0x1a8] sm:$0xff] %vm1895, %v4831
      %5009 = vst.msk [vmem:[%s271 + $0x1b0] sm:$0xff] %vm1895, %v4833
      %5010 = vst.msk [vmem:[%s271 + $0x1b8] sm:$0xff] %vm1895, %v4835
      %5011 = vst.msk [vmem:[%s271 + $0x1c0] sm:$0xff] %vm1895, %v4837
      %5012 = vst.msk [vmem:[%s271 + $0x1c8] sm:$0xff] %vm1895, %v4839
      %5013 = vst.msk [vmem:[%s271 + $0x1d0] sm:$0xff] %vm1895, %v4841
      %5014 = vst.msk [vmem:[%s271 + $0x1d8] sm:$0xff] %vm1895, %v4843
      %5015 = vst.msk [vmem:[%s271 + $0x1e0] sm:$0xff] %vm1895, %v4845
      %5016 = vst.msk [vmem:[%s271 + $0x1e8] sm:$0xff] %vm1895, %v4847
      %5017 = vst.msk [vmem:[%s271 + $0x1f0] sm:$0xff] %vm1895, %v4849
      %5018 = vst.msk [vmem:[%s271 + $0x1f8] sm:$0xff] %vm1895, %v4851
      %5019 = vst.msk [vmem:[%s271 + $0x200] sm:$0xff] %vm1895, %v4853
      %5020 = vst.msk [vmem:[%s271 + $0x208] sm:$0xff] %vm1895, %v4855
      %5021 = vst.msk [vmem:[%s271 + $0x210] sm:$0xff] %vm1895, %v4857
      %5022 = vst.msk [vmem:[%s271 + $0x218] sm:$0xff] %vm1895, %v4859
      %5023 = vst.msk [vmem:[%s271 + $0x220] sm:$0xff] %vm1895, %v4861
      %5024 = vst.msk [vmem:[%s271 + $0x228] sm:$0xff] %vm1895, %v4863
      %5025 = vst.msk [vmem:[%s271 + $0x230] sm:$0xff] %vm1895, %v4865
      %5026 = vst.msk [vmem:[%s271 + $0x238] sm:$0xff] %vm1895, %v4867
      %5027 = vst.msk [vmem:[%s271 + $0x240] sm:$0xff] %vm1895, %v4869
      %5028 = vst.msk [vmem:[%s271 + $0x248] sm:$0xff] %vm1895, %v4871
      %5029 = vst.msk [vmem:[%s271 + $0x250] sm:$0xff] %vm1895, %v4873
      %5030 = vst.msk [vmem:[%s271 + $0x258] sm:$0xff] %vm1895, %v4875
      %vm5031 = vcmask 11264
      %5032 = vst.msk [vmem:[%s271 + $0x260] sm:$0xf] %vm5031, %v4877
      %p5033 = scmp.lt.s32.totalorder %s19, 1
      %s5034 = scalar_select %p5033, %s19, 1
      %s5035 = smul.addr %s5034, 77
      %s5036 = smul.addr %s5035, 4
      %s5037 = scalar_lea.vmem %s6, %s5036
      %p5038 = scmp.lt.s32.totalorder %s19, 1
      %s5039 = scalar_select %p5038, %s19, 1
      %s5040 = smul.addr %s5039, 77
      %s5041 = smul.addr %s5040, 8
      %s5042 = scalar_lea.vmem %s7, %s5041
      // Predicated region
      $region45: #{tpu_custom_call.1} parent=43 // pred_check
        %p5043 = pneg %p163
      $region46: #{tpu_custom_call.1} parent=43 // pred_check_branch
        %5045 = sbr.rel (%p5043) target = $region48
      $region47: #{tpu_custom_call.1} parent=43 // pred_region
        _
      $region48: #{tpu_custom_call.1} parent=43 // pred_fallthru
        _
      // Predicated region
      $region49: #{tpu_custom_call.1} parent=43 // pred_check
        %p5046 = pneg %p189
      $region50: #{tpu_custom_call.1} parent=43 // pred_check_branch
        %5048 = sbr.rel (%p5046) target = $region52
      $region51: #{tpu_custom_call.1} parent=43 // pred_region
        _
      $region52: #{tpu_custom_call.1} parent=43 // pred_fallthru
        _
    $region44: #{tpu_custom_call.1} parent=5 // pred_fallthru
      _
    %p5049 = scmp.le.s32.totalorder 2, %s14
    // Predicated region
    $region53: #{tpu_custom_call.1} parent=5 // pred_check
      %p5050 = pneg %p5049
    $region54: #{tpu_custom_call.1} parent=5 // pred_check_branch
      %5052 = sbr.rel (%p5050) target = $region56
    $region55: #{tpu_custom_call.1} parent=5 // pred_region
      %s5053 = ssub.s32 %s14, 2
      // Predicated region
      $region57: #{tpu_custom_call.1} parent=55 // pred_check
        %p5054 = pneg %p169
      $region58: #{tpu_custom_call.1} parent=55 // pred_check_branch
        %5056 = sbr.rel (%p5054) target = $region60
      $region59: #{tpu_custom_call.1} parent=55 // pred_region
        %p5057 = scmp.lt.s32.totalorder %s20, 1
        %s5058 = scalar_select %p5057, %s20, 1
        %s5059 = smul.addr %s5058, 77
        %s5060 = smul.addr %s5059, 4
        %s5061 = scalar_lea.vmem %s6, %s5060
      $region60: #{tpu_custom_call.1} parent=55 // pred_fallthru
        _
      // Predicated region
      $region61: #{tpu_custom_call.1} parent=55 // pred_check
        %p5062 = pneg %p195
      $region62: #{tpu_custom_call.1} parent=55 // pred_check_branch
        %5064 = sbr.rel (%p5062) target = $region64
      $region63: #{tpu_custom_call.1} parent=55 // pred_region
        %p5065 = scmp.lt.s32.totalorder %s20, 1
        %s5066 = scalar_select %p5065, %s20, 1
        %s5067 = smul.addr %s5066, 77
        %s5068 = smul.addr %s5067, 8
        %s5069 = scalar_lea.vmem %s7, %s5068
      $region64: #{tpu_custom_call.1} parent=55 // pred_fallthru
        _
    $region56: #{tpu_custom_call.1} parent=5 // pred_fallthru
      _
  $region6: #{tpu_custom_call.1} parent=0 // loop_footer
    %s18 = sadd.s32 1, %s14
  $region7: #{tpu_custom_call.1} parent=0 // loop_footer_branch
    %13 = sbr.rel target = $region3
  $region8: #{tpu_custom_call.1} parent=0 // loop_exit
    _

</llo_original>
